<compile_context>
chip_gen: v6e
topology: v6e:2x2x1
jax: 0.10.0
libtpu: 0.0.40
codegen_flags: <defaults>
</compile_context>

<pallas_src>
import math

import jax
import jax.numpy as jnp
from jax import lax
from jax.experimental import pallas as pl
from jax.experimental.pallas import tpu as pltpu

_MIB = 1024 * 1024


def _gelu_exact(x):
    # nn.GELU() default = exact erf-based GELU (kept in f32 to match PyTorch).
    # TODO(synk): tanh-approx GELU would use the (idle) EUP slot on v5e, but is
    # not bit-compatible with the module's exact GELU, so it is not used here.
    return 0.5 * x * (1.0 + lax.erf(x * (1.0 / math.sqrt(2.0))))


def _mlp_and_normalize(x_ref, w1_ref, b1_ref, w2_ref, b2_ref, w3_ref, b3_ref,
                       proj_ref, xn_ref):
    """out_dim-independent work: 3-layer MLP projection and F.normalize(x)."""
    x = x_ref[...].astype(jnp.float32)

    h = jnp.dot(x.astype(jnp.bfloat16), w1_ref[...],
                preferred_element_type=jnp.float32) + b1_ref[...]
    h = _gelu_exact(h)
    h = jnp.dot(h.astype(jnp.bfloat16), w2_ref[...],
                preferred_element_type=jnp.float32) + b2_ref[...]
    h = _gelu_exact(h)
    proj = jnp.dot(h.astype(jnp.bfloat16), w3_ref[...],
                   preferred_element_type=jnp.float32) + b3_ref[...]
    proj_ref[...] = proj.astype(proj_ref.dtype)

    # F.normalize(x, dim=-1, p=2) == x * rsqrt(max(sum(x^2), eps^2)), eps=1e-12
    ss = jnp.sum(x * x, axis=-1, keepdims=True)
    xn = x * lax.rsqrt(jnp.maximum(ss, 1e-24))
    xn_ref[...] = xn.astype(xn_ref.dtype)
    return xn


def _dino_head_kernel_resident(x_ref, w1_ref, b1_ref, w2_ref, b2_ref, w3_ref,
                               b3_ref, wl_ref, proj_ref, logits_ref, xn_ref):
    """1-D grid over batch; W_eff fully VMEM-resident."""
    xn = _mlp_and_normalize(x_ref, w1_ref, b1_ref, w2_ref, b2_ref, w3_ref,
                            b3_ref, proj_ref, xn_ref)
    logits = jnp.dot(xn.astype(jnp.bfloat16), wl_ref[...],
                     preferred_element_type=jnp.float32)
    logits_ref[...] = logits.astype(logits_ref.dtype)


def _dino_head_kernel_tiled(x_ref, w1_ref, b1_ref, w2_ref, b2_ref, w3_ref,
                            b3_ref, wl_ref, proj_ref, logits_ref, xn_ref,
                            xn_bf16):
    """2-D grid (batch tiles, out_dim tiles); W_eff streamed over out_dim."""
    j = pl.program_id(1)

    @pl.when(j == 0)
    def _():
        xn = _mlp_and_normalize(x_ref, w1_ref, b1_ref, w2_ref, b2_ref, w3_ref,
                                b3_ref, proj_ref, xn_ref)
        xn_bf16[...] = xn.astype(jnp.bfloat16)   # cached once per batch tile

    logits = jnp.dot(xn_bf16[...], wl_ref[...],
                     preferred_element_type=jnp.float32)
    logits_ref[...] = logits.astype(logits_ref.dtype)


def prepare_params(params):
    """One-time parameter prep, hoisted out of the per-forward wrapper.

    Folds torch weight_norm(dim=0): W = g * v / ||v||_row, transposes to
    (in_dim, out_dim), and casts all matmul weights to bf16 MXU operands."""
    v = params["v"].astype(jnp.float32)
    g = params["g"].astype(jnp.float32)
    w_eff = (g * v * lax.rsqrt(jnp.sum(v * v, axis=-1, keepdims=True))).T
    return {
        "w1": params["w1"].astype(jnp.bfloat16),
        "b1": params["b1"].astype(jnp.float32).reshape(1, -1),
        "w2": params["w2"].astype(jnp.bfloat16),
        "b2": params["b2"].astype(jnp.float32).reshape(1, -1),
        "w3": params["w3"].astype(jnp.bfloat16),
        "b3": params["b3"].astype(jnp.float32).reshape(1, -1),
        "w_eff": w_eff.astype(jnp.bfloat16),
    }


def _pick_block(n, want, align):
    """Largest multiple of `align` that is <= min(want, n) and divides n."""
    b = max(align, min(want, n))
    b = (b // align) * align
    while n % b != 0:
        b -= align
    return b


def _default_vmem_limit():
    """Generation-aware scoped-VMEM limit (~72% of physical VMEM)."""
    try:
        phys = int(pltpu.get_tpu_info().vmem_capacity_bytes)
    except Exception:
        phys = 64 * _MIB          # conservative (v7x per-TC) fallback
    return min(int(phys * 0.72), 100 * _MIB)


def dino_head_forward(x, prep, *, block_b=512, block_out=512,
                      force_tiled=False, resident_weff_bytes=12 * _MIB,
                      logits_dtype=jnp.float32):
    """Forward of DINOHead_eccvGCD: returns (x_proj, logits, normalize(x))."""
    B, in_dim = x.shape
    hidden = prep["w1"].shape[1]
    bottleneck = prep["w3"].shape[1]
    out_dim = prep["w_eff"].shape[1]

    assert B % 8 == 0, "batch must be a multiple of 8"
    assert out_dim % 128 == 0, "out_dim must be a multiple of 128"

    block_b = _pick_block(B, block_b, 8)
    vmem_limit = _default_vmem_limit()

    # Resident path when the bf16 W_eff comfortably fits in VMEM.
    resident = (not force_tiled) and (in_dim * out_dim * 2 <= resident_weff_bytes)

    out_shape = (
        jax.ShapeDtypeStruct((B, bottleneck), jnp.float32),   # x_proj
        jax.ShapeDtypeStruct((B, out_dim), logits_dtype),     # logits
        jax.ShapeDtypeStruct((B, in_dim), jnp.float32),       # normalize(x)
    )
    weight_args = (prep["w1"], prep["b1"], prep["w2"], prep["b2"],
                   prep["w3"], prep["b3"])

    def build_and_call(single_buffer_weights):
        # Constant-index-map weights are fetched once; Buffered(1) avoids the
        # default double buffer and roughly halves resident-weight VMEM.
        wmode = ({"pipeline_mode": pl.Buffered(1)}
                 if single_buffer_weights else {})

        if resident:
            const = lambda i: (0, 0)
            in_specs = [
                pl.BlockSpec((block_b, in_dim), lambda i: (i, 0)),        # x tile
                pl.BlockSpec((in_dim, hidden), const, **wmode),           # w1
                pl.BlockSpec((1, hidden), const, **wmode),                # b1
                pl.BlockSpec((hidden, hidden), const, **wmode),           # w2
                pl.BlockSpec((1, hidden), const, **wmode),                # b2
                pl.BlockSpec((hidden, bottleneck), const, **wmode),       # w3
                pl.BlockSpec((1, bottleneck), const, **wmode),            # b3
                pl.BlockSpec((in_dim, out_dim), const, **wmode),          # W_eff (resident)
            ]
            out_specs = (
                pl.BlockSpec((block_b, bottleneck), lambda i: (i, 0)),
                pl.BlockSpec((block_b, out_dim), lambda i: (i, 0)),
                pl.BlockSpec((block_b, in_dim), lambda i: (i, 0)),
            )
            return pl.pallas_call(
                _dino_head_kernel_resident,
                grid=(B // block_b,),
                in_specs=in_specs,
                out_specs=out_specs,
                out_shape=out_shape,
                compiler_params=pltpu.CompilerParams(
                    dimension_semantics=("parallel",),
                    vmem_limit_bytes=vmem_limit),
            )(x, *weight_args, prep["w_eff"])

        # Tiled path (large out_dim): stream W_eff / logits over 512-wide
        # lane-dense out_dim tiles.
        bo = _pick_block(out_dim, block_out, 128)
        const = lambda i, j: (0, 0)
        in_specs = [
            pl.BlockSpec((block_b, in_dim), lambda i, j: (i, 0)),         # x tile
            pl.BlockSpec((in_dim, hidden), const, **wmode),               # w1
            pl.BlockSpec((1, hidden), const, **wmode),                    # b1
            pl.BlockSpec((hidden, hidden), const, **wmode),               # w2
            pl.BlockSpec((1, hidden), const, **wmode),                    # b2
            pl.BlockSpec((hidden, bottleneck), const, **wmode),           # w3
            pl.BlockSpec((1, bottleneck), const, **wmode),                # b3
            pl.BlockSpec((in_dim, bo), lambda i, j: (0, j)),              # W_eff tile
        ]
        out_specs = (
            pl.BlockSpec((block_b, bottleneck), lambda i, j: (i, 0)),     # x_proj
            pl.BlockSpec((block_b, bo), lambda i, j: (i, j)),             # logits
            pl.BlockSpec((block_b, in_dim), lambda i, j: (i, 0)),         # normalize(x)
        )
        return pl.pallas_call(
            _dino_head_kernel_tiled,
            grid=(B // block_b, out_dim // bo),
            in_specs=in_specs,
            out_specs=out_specs,
            out_shape=out_shape,
            scratch_shapes=[pltpu.VMEM((block_b, in_dim), jnp.bfloat16)],
            compiler_params=pltpu.CompilerParams(
                dimension_semantics=("parallel", "arbitrary"),
                vmem_limit_bytes=vmem_limit),
        )(x, *weight_args, prep["w_eff"])

    try:
        return build_and_call(True)
    except Exception:
        # Fallback if Buffered(1) single-buffering is not supported by this
        # JAX version; semantics are identical, only VMEM footprint differs.
        return build_and_call(False)


def init_params(key, in_dim, out_dim, hidden_dim, bottleneck_dim):
    """Synthetic init mirroring the PyTorch module (trunc_normal std=0.02,
    zero bias; weight_norm 'v' (out_dim, in_dim), 'g' filled with 1).
    MLP weights are stored pre-transposed to (in, out) so the kernel does x@W."""
    k1, k2, k3, k4 = jax.random.split(key, 4)

    def tn(k, shape, std=0.02):
        return std * jax.random.truncated_normal(k, -2.0, 2.0, shape, jnp.float32)

    return {
        "w1": tn(k1, (in_dim, hidden_dim)),
        "b1": jnp.zeros((1, hidden_dim), jnp.float32),
        "w2": tn(k2, (hidden_dim, hidden_dim)),
        "b2": jnp.zeros((1, hidden_dim), jnp.float32),
        "w3": tn(k3, (hidden_dim, bottleneck_dim)),
        "b3": jnp.zeros((1, bottleneck_dim), jnp.float32),
        "v": tn(k4, (out_dim, in_dim)),
        "g": jnp.ones((out_dim, 1), jnp.float32),
    }


def reference_forward(x, p):
    """Pure-JAX f32 reference of the PyTorch forward (correctness check)."""
    h = jax.nn.gelu(x @ p["w1"] + p["b1"], approximate=False)
    h = jax.nn.gelu(h @ p["w2"] + p["b2"], approximate=False)
    x_proj = h @ p["w3"] + p["b3"]
    xn = x / jnp.maximum(
        jnp.sqrt(jnp.sum(x * x, axis=-1, keepdims=True)), 1e-12)
    w_eff = p["g"] * p["v"] / jnp.sqrt(
        jnp.sum(p["v"] * p["v"], axis=-1, keepdims=True))
    logits = xn @ w_eff.T
    return x_proj, logits, xn


if __name__ == "__main__":
    # Small, (8,128)-aligned shapes consistent with the module structure.
    B, IN_DIM, OUT_DIM = 256, 128, 512
    HIDDEN, BOTTLENECK = 256, 128

    key = jax.random.PRNGKey(0)
    kx, kp = jax.random.split(key)
    x = jax.random.normal(kx, (B, IN_DIM), jnp.float32)
    params = init_params(kp, IN_DIM, OUT_DIM, HIDDEN, BOTTLENECK)
    prep = prepare_params(params)

    r_proj, r_logits, r_xn = reference_forward(x, params)

    # Path 1 (default at this out_dim): 1-D grid, W_eff fully VMEM-resident.
    out_resident = dino_head_forward(x, prep)
    jax.block_until_ready(out_resident)

    # Path 2 (production path for huge out_dim): 2-D grid, W_eff streamed.
    # Forced here with small tiles so both kernels are exercised.
    out_tiled = dino_head_forward(x, prep, block_b=128, block_out=256,
                                  force_tiled=True)
    jax.block_until_ready(out_tiled)

    for (x_proj, logits, x_norm) in (out_resident, out_tiled):
        assert x_proj.shape == (B, BOTTLENECK)
        assert logits.shape == (B, OUT_DIM)
        assert x_norm.shape == (B, IN_DIM)
        # bf16 MXU matmuls -> bf16-appropriate tolerances for matmul outputs.
        assert jnp.allclose(x_proj, r_proj, atol=3e-3, rtol=3e-2)
        assert jnp.allclose(logits, r_logits, atol=5e-3, rtol=3e-2)
        assert jnp.allclose(x_norm, r_xn, atol=1e-5, rtol=1e-4)

    print("KERNEL_OK")
</pallas_src>

<mosaic_0001>
module attributes {stable_mosaic.version = 11 : i64} {
  func.func @_dino_head_kernel_resident(%arg0: i32, %arg1: memref<256x128xf32, #tpu.memory_space<vmem>>, %arg2: memref<128x256xbf16, #tpu.memory_space<vmem>>, %arg3: memref<1x256xf32, #tpu.memory_space<vmem>>, %arg4: memref<256x256xbf16, #tpu.memory_space<vmem>>, %arg5: memref<1x256xf32, #tpu.memory_space<vmem>>, %arg6: memref<256x128xbf16, #tpu.memory_space<vmem>>, %arg7: memref<1x128xf32, #tpu.memory_space<vmem>>, %arg8: memref<128x512xbf16, #tpu.memory_space<vmem>>, %arg9: memref<256x128xf32, #tpu.memory_space<vmem>>, %arg10: memref<256x512xf32, #tpu.memory_space<vmem>>, %arg11: memref<256x128xf32, #tpu.memory_space<vmem>>) attributes {dimension_semantics = [#tpu.dimension_semantics<parallel>], iteration_bounds = array<i64: 1>, scalar_prefetch = 0 : i64, scratch_operands = 0 : i64, tpu.core_type = #tpu.core_type<tc>, window_params = [{transform_indices = @transform_0, window_bounds = array<i64: 256, 128>}, {pipeline_mode = #tpu.pipeline_mode<synchronous>, transform_indices = @transform_1, window_bounds = array<i64: 128, 256>}, {pipeline_mode = #tpu.pipeline_mode<synchronous>, transform_indices = @transform_2, window_bounds = array<i64: 1, 256>}, {pipeline_mode = #tpu.pipeline_mode<synchronous>, transform_indices = @transform_3, window_bounds = array<i64: 256, 256>}, {pipeline_mode = #tpu.pipeline_mode<synchronous>, transform_indices = @transform_4, window_bounds = array<i64: 1, 256>}, {pipeline_mode = #tpu.pipeline_mode<synchronous>, transform_indices = @transform_5, window_bounds = array<i64: 256, 128>}, {pipeline_mode = #tpu.pipeline_mode<synchronous>, transform_indices = @transform_6, window_bounds = array<i64: 1, 128>}, {pipeline_mode = #tpu.pipeline_mode<synchronous>, transform_indices = @transform_7, window_bounds = array<i64: 128, 512>}, {transform_indices = @transform_8, window_bounds = array<i64: 256, 128>}, {transform_indices = @transform_9, window_bounds = array<i64: 256, 512>}, {transform_indices = @transform_10, window_bounds = array<i64: 256, 128>}]} {
    %c0 = arith.constant 0 : index
    %c0_0 = arith.constant 0 : index
    %0 = vector.load %arg1[%c0, %c0_0] : memref<256x128xf32, #tpu.memory_space<vmem>>, vector<256x128xf32>
    %1 = arith.truncf %0 : vector<256x128xf32> to vector<256x128xbf16>
    %c0_1 = arith.constant 0 : index
    %c0_2 = arith.constant 0 : index
    %2 = vector.load %arg2[%c0_1, %c0_2] : memref<128x256xbf16, #tpu.memory_space<vmem>>, vector<128x256xbf16>
    %cst = arith.constant dense<0.000000e+00> : vector<256x256xf32>
    %3 = tpu.matmul %1, %2, %cst {dimension_numbers = #tpu.dot_dimension_numbers<[1], [0], [0], [1], [0, 0, 1, 1], [], []>} : vector<256x128xbf16>, vector<128x256xbf16>, vector<256x256xf32> -> vector<256x256xf32>
    %c0_3 = arith.constant 0 : index
    %c0_4 = arith.constant 0 : index
    %4 = vector.load %arg3[%c0_3, %c0_4] : memref<1x256xf32, #tpu.memory_space<vmem>>, vector<1x256xf32>
    %5 = vector.broadcast %4 : vector<1x256xf32> to vector<256x256xf32>
    %6 = arith.addf %3, %5 : vector<256x256xf32>
    %cst_5 = arith.constant 5.000000e-01 : f32
    %7 = vector.broadcast %cst_5 : f32 to vector<256x256xf32>
    %8 = arith.mulf %7, %6 : vector<256x256xf32>
    %cst_6 = arith.constant 0.707106769 : f32
    %9 = vector.broadcast %cst_6 : f32 to vector<256x256xf32>
    %10 = arith.mulf %6, %9 : vector<256x256xf32>
    %11 = math.erf %10 : vector<256x256xf32>
    %cst_7 = arith.constant 1.000000e+00 : f32
    %12 = vector.broadcast %cst_7 : f32 to vector<256x256xf32>
    %13 = arith.addf %12, %11 : vector<256x256xf32>
    %14 = arith.mulf %8, %13 : vector<256x256xf32>
    %15 = arith.truncf %14 : vector<256x256xf32> to vector<256x256xbf16>
    %c0_8 = arith.constant 0 : index
    %c0_9 = arith.constant 0 : index
    %16 = vector.load %arg4[%c0_8, %c0_9] : memref<256x256xbf16, #tpu.memory_space<vmem>>, vector<256x256xbf16>
    %cst_10 = arith.constant dense<0.000000e+00> : vector<256x256xf32>
    %17 = tpu.matmul %15, %16, %cst_10 {dimension_numbers = #tpu.dot_dimension_numbers<[1], [0], [0], [1], [0, 0, 1, 1], [], []>} : vector<256x256xbf16>, vector<256x256xbf16>, vector<256x256xf32> -> vector<256x256xf32>
    %c0_11 = arith.constant 0 : index
    %c0_12 = arith.constant 0 : index
    %18 = vector.load %arg5[%c0_11, %c0_12] : memref<1x256xf32, #tpu.memory_space<vmem>>, vector<1x256xf32>
    %19 = vector.broadcast %18 : vector<1x256xf32> to vector<256x256xf32>
    %20 = arith.addf %17, %19 : vector<256x256xf32>
    %cst_13 = arith.constant 5.000000e-01 : f32
    %21 = vector.broadcast %cst_13 : f32 to vector<256x256xf32>
    %22 = arith.mulf %21, %20 : vector<256x256xf32>
    %cst_14 = arith.constant 0.707106769 : f32
    %23 = vector.broadcast %cst_14 : f32 to vector<256x256xf32>
    %24 = arith.mulf %20, %23 : vector<256x256xf32>
    %25 = math.erf %24 : vector<256x256xf32>
    %cst_15 = arith.constant 1.000000e+00 : f32
    %26 = vector.broadcast %cst_15 : f32 to vector<256x256xf32>
    %27 = arith.addf %26, %25 : vector<256x256xf32>
    %28 = arith.mulf %22, %27 : vector<256x256xf32>
    %29 = arith.truncf %28 : vector<256x256xf32> to vector<256x256xbf16>
    %c0_16 = arith.constant 0 : index
    %c0_17 = arith.constant 0 : index
    %30 = vector.load %arg6[%c0_16, %c0_17] : memref<256x128xbf16, #tpu.memory_space<vmem>>, vector<256x128xbf16>
    %cst_18 = arith.constant dense<0.000000e+00> : vector<256x128xf32>
    %31 = tpu.matmul %29, %30, %cst_18 {dimension_numbers = #tpu.dot_dimension_numbers<[1], [0], [0], [1], [0, 0, 1, 1], [], []>} : vector<256x256xbf16>, vector<256x128xbf16>, vector<256x128xf32> -> vector<256x128xf32>
    %c0_19 = arith.constant 0 : index
    %c0_20 = arith.constant 0 : index
    %32 = vector.load %arg7[%c0_19, %c0_20] : memref<1x128xf32, #tpu.memory_space<vmem>>, vector<1x128xf32>
    %33 = vector.broadcast %32 : vector<1x128xf32> to vector<256x128xf32>
    %34 = arith.addf %31, %33 : vector<256x128xf32>
    %c0_21 = arith.constant 0 : index
    %c0_22 = arith.constant 0 : index
    %35 = vector.load %arg9[%c0_21, %c0_22] : memref<256x128xf32, #tpu.memory_space<vmem>>, vector<256x128xf32>
    tpu.vector_store %arg9[%c0_21, %c0_22], %34 {strides = array<i32>} : memref<256x128xf32, #tpu.memory_space<vmem>>, vector<256x128xf32>,
    %36 = arith.mulf %0, %0 : vector<256x128xf32>
    %cst_23 = arith.constant dense<0.000000e+00> : vector<256xf32>
    %37 = vector.multi_reduction <add>, %36, %cst_23 [1] : vector<256x128xf32> to vector<256xf32>
    %38 = vector.shape_cast %37 : vector<256xf32> to vector<256x1xf32>
    %cst_24 = arith.constant 1.000000e-24 : f32
    %39 = vector.broadcast %cst_24 : f32 to vector<256x1xf32>
    %40 = arith.maximumf %38, %39 : vector<256x1xf32>
    %41 = math.rsqrt %40 : vector<256x1xf32>
    %42 = vector.broadcast %41 : vector<256x1xf32> to vector<256x128xf32>
    %43 = arith.mulf %0, %42 : vector<256x128xf32>
    %c0_25 = arith.constant 0 : index
    %c0_26 = arith.constant 0 : index
    %44 = vector.load %arg11[%c0_25, %c0_26] : memref<256x128xf32, #tpu.memory_space<vmem>>, vector<256x128xf32>
    tpu.vector_store %arg11[%c0_25, %c0_26], %43 {strides = array<i32>} : memref<256x128xf32, #tpu.memory_space<vmem>>, vector<256x128xf32>,
    %45 = arith.truncf %43 : vector<256x128xf32> to vector<256x128xbf16>
    %c0_27 = arith.constant 0 : index
    %c0_28 = arith.constant 0 : index
    %46 = vector.load %arg8[%c0_27, %c0_28] : memref<128x512xbf16, #tpu.memory_space<vmem>>, vector<128x512xbf16>
    %cst_29 = arith.constant dense<0.000000e+00> : vector<256x512xf32>
    %47 = tpu.matmul %45, %46, %cst_29 {dimension_numbers = #tpu.dot_dimension_numbers<[1], [0], [0], [1], [0, 0, 1, 1], [], []>} : vector<256x128xbf16>, vector<128x512xbf16>, vector<256x512xf32> -> vector<256x512xf32>
    %c0_30 = arith.constant 0 : index
    %c0_31 = arith.constant 0 : index
    %48 = vector.load %arg10[%c0_30, %c0_31] : memref<256x512xf32, #tpu.memory_space<vmem>>, vector<256x512xf32>
    tpu.vector_store %arg10[%c0_30, %c0_31], %47 {strides = array<i32>} : memref<256x512xf32, #tpu.memory_space<vmem>>, vector<256x512xf32>,
    return
  }
  func.func @transform_0(%arg0: i32) -> (i32, i32) {
    %c0_i32 = arith.constant 0 : i32
    %c0_i32_0 = arith.constant 0 : i32
    return %arg0, %c0_i32 : i32, i32
  }
  func.func @transform_1(%arg0: i32) -> (i32, i32) {
    %c0_i32 = arith.constant 0 : i32
    %c0_i32_0 = arith.constant 0 : i32
    %c0_i32_1 = arith.constant 0 : i32
    return %c0_i32, %c0_i32_0 : i32, i32
  }
  func.func @transform_2(%arg0: i32) -> (i32, i32) {
    %c0_i32 = arith.constant 0 : i32
    %c0_i32_0 = arith.constant 0 : i32
    %c0_i32_1 = arith.constant 0 : i32
    return %c0_i32, %c0_i32_0 : i32, i32
  }
  func.func @transform_3(%arg0: i32) -> (i32, i32) {
    %c0_i32 = arith.constant 0 : i32
    %c0_i32_0 = arith.constant 0 : i32
    %c0_i32_1 = arith.constant 0 : i32
    return %c0_i32, %c0_i32_0 : i32, i32
  }
  func.func @transform_4(%arg0: i32) -> (i32, i32) {
    %c0_i32 = arith.constant 0 : i32
    %c0_i32_0 = arith.constant 0 : i32
    %c0_i32_1 = arith.constant 0 : i32
    return %c0_i32, %c0_i32_0 : i32, i32
  }
  func.func @transform_5(%arg0: i32) -> (i32, i32) {
    %c0_i32 = arith.constant 0 : i32
    %c0_i32_0 = arith.constant 0 : i32
    %c0_i32_1 = arith.constant 0 : i32
    return %c0_i32, %c0_i32_0 : i32, i32
  }
  func.func @transform_6(%arg0: i32) -> (i32, i32) {
    %c0_i32 = arith.constant 0 : i32
    %c0_i32_0 = arith.constant 0 : i32
    %c0_i32_1 = arith.constant 0 : i32
    return %c0_i32, %c0_i32_0 : i32, i32
  }
  func.func @transform_7(%arg0: i32) -> (i32, i32) {
    %c0_i32 = arith.constant 0 : i32
    %c0_i32_0 = arith.constant 0 : i32
    %c0_i32_1 = arith.constant 0 : i32
    return %c0_i32, %c0_i32_0 : i32, i32
  }
  func.func @transform_8(%arg0: i32) -> (i32, i32) {
    %c0_i32 = arith.constant 0 : i32
    %c0_i32_0 = arith.constant 0 : i32
    return %arg0, %c0_i32 : i32, i32
  }
  func.func @transform_9(%arg0: i32) -> (i32, i32) {
    %c0_i32 = arith.constant 0 : i32
    %c0_i32_0 = arith.constant 0 : i32
    return %arg0, %c0_i32 : i32, i32
  }
  func.func @transform_10(%arg0: i32) -> (i32, i32) {
    %c0_i32 = arith.constant 0 : i32
    %c0_i32_0 = arith.constant 0 : i32
    return %arg0, %c0_i32 : i32, i32
  }
}

module attributes {stable_mosaic.version = 11 : i64} {
  func.func @_dino_head_kernel_resident(%arg0: i32, %arg1: memref<256x128xf32, #tpu.memory_space<vmem>>, %arg2: memref<128x256xbf16, #tpu.memory_space<vmem>>, %arg3: memref<1x256xf32, #tpu.memory_space<vmem>>, %arg4: memref<256x256xbf16, #tpu.memory_space<vmem>>, %arg5: memref<1x256xf32, #tpu.memory_space<vmem>>, %arg6: memref<256x128xbf16, #tpu.memory_space<vmem>>, %arg7: memref<1x128xf32, #tpu.memory_space<vmem>>, %arg8: memref<128x512xbf16, #tpu.memory_space<vmem>>, %arg9: memref<256x128xf32, #tpu.memory_space<vmem>>, %arg10: memref<256x512xf32, #tpu.memory_space<vmem>>, %arg11: memref<256x128xf32, #tpu.memory_space<vmem>>) attributes {dimension_semantics = [#tpu.dimension_semantics<parallel>], iteration_bounds = array<i64: 1>, scalar_prefetch = 0 : i64, scratch_operands = 0 : i64, tpu.core_type = #tpu.core_type<tc>, window_params = [{transform_indices = @transform_0, window_bounds = array<i64: 256, 128>}, {pipeline_mode = #tpu.pipeline_mode<synchronous>, transform_indices = @transform_1, window_bounds = array<i64: 128, 256>}, {pipeline_mode = #tpu.pipeline_mode<synchronous>, transform_indices = @transform_2, window_bounds = array<i64: 1, 256>}, {pipeline_mode = #tpu.pipeline_mode<synchronous>, transform_indices = @transform_3, window_bounds = array<i64: 256, 256>}, {pipeline_mode = #tpu.pipeline_mode<synchronous>, transform_indices = @transform_4, window_bounds = array<i64: 1, 256>}, {pipeline_mode = #tpu.pipeline_mode<synchronous>, transform_indices = @transform_5, window_bounds = array<i64: 256, 128>}, {pipeline_mode = #tpu.pipeline_mode<synchronous>, transform_indices = @transform_6, window_bounds = array<i64: 1, 128>}, {pipeline_mode = #tpu.pipeline_mode<synchronous>, transform_indices = @transform_7, window_bounds = array<i64: 128, 512>}, {transform_indices = @transform_8, window_bounds = array<i64: 256, 128>}, {transform_indices = @transform_9, window_bounds = array<i64: 256, 512>}, {transform_indices = @transform_10, window_bounds = array<i64: 256, 128>}]} {
    %c0 = arith.constant 0 : index
    %c0_0 = arith.constant 0 : index
    %0 = vector.load %arg1[%c0, %c0_0] : memref<256x128xf32, #tpu.memory_space<vmem>>, vector<256x128xf32>
    %1 = arith.truncf %0 : vector<256x128xf32> to vector<256x128xbf16>
    %c0_1 = arith.constant 0 : index
    %c0_2 = arith.constant 0 : index
    %2 = vector.load %arg2[%c0_1, %c0_2] : memref<128x256xbf16, #tpu.memory_space<vmem>>, vector<128x256xbf16>
    %cst = arith.constant dense<0.000000e+00> : vector<256x256xf32>
    %3 = tpu.matmul %1, %2, %cst {dimension_numbers = #tpu.dot_dimension_numbers<[1], [0], [0], [1], [0, 0, 1, 1], [], []>} : vector<256x128xbf16>, vector<128x256xbf16>, vector<256x256xf32> -> vector<256x256xf32>
    %c0_3 = arith.constant 0 : index
    %c0_4 = arith.constant 0 : index
    %4 = vector.load %arg3[%c0_3, %c0_4] : memref<1x256xf32, #tpu.memory_space<vmem>>, vector<1x256xf32>
    %5 = vector.broadcast %4 : vector<1x256xf32> to vector<256x256xf32>
    %6 = arith.addf %3, %5 : vector<256x256xf32>
    %cst_5 = arith.constant 5.000000e-01 : f32
    %7 = vector.broadcast %cst_5 : f32 to vector<256x256xf32>
    %8 = arith.mulf %7, %6 : vector<256x256xf32>
    %cst_6 = arith.constant 0.707106769 : f32
    %9 = vector.broadcast %cst_6 : f32 to vector<256x256xf32>
    %10 = arith.mulf %6, %9 : vector<256x256xf32>
    %11 = math.erf %10 : vector<256x256xf32>
    %cst_7 = arith.constant 1.000000e+00 : f32
    %12 = vector.broadcast %cst_7 : f32 to vector<256x256xf32>
    %13 = arith.addf %12, %11 : vector<256x256xf32>
    %14 = arith.mulf %8, %13 : vector<256x256xf32>
    %15 = arith.truncf %14 : vector<256x256xf32> to vector<256x256xbf16>
    %c0_8 = arith.constant 0 : index
    %c0_9 = arith.constant 0 : index
    %16 = vector.load %arg4[%c0_8, %c0_9] : memref<256x256xbf16, #tpu.memory_space<vmem>>, vector<256x256xbf16>
    %cst_10 = arith.constant dense<0.000000e+00> : vector<256x256xf32>
    %17 = tpu.matmul %15, %16, %cst_10 {dimension_numbers = #tpu.dot_dimension_numbers<[1], [0], [0], [1], [0, 0, 1, 1], [], []>} : vector<256x256xbf16>, vector<256x256xbf16>, vector<256x256xf32> -> vector<256x256xf32>
    %c0_11 = arith.constant 0 : index
    %c0_12 = arith.constant 0 : index
    %18 = vector.load %arg5[%c0_11, %c0_12] : memref<1x256xf32, #tpu.memory_space<vmem>>, vector<1x256xf32>
    %19 = vector.broadcast %18 : vector<1x256xf32> to vector<256x256xf32>
    %20 = arith.addf %17, %19 : vector<256x256xf32>
    %cst_13 = arith.constant 5.000000e-01 : f32
    %21 = vector.broadcast %cst_13 : f32 to vector<256x256xf32>
    %22 = arith.mulf %21, %20 : vector<256x256xf32>
    %cst_14 = arith.constant 0.707106769 : f32
    %23 = vector.broadcast %cst_14 : f32 to vector<256x256xf32>
    %24 = arith.mulf %20, %23 : vector<256x256xf32>
    %25 = math.erf %24 : vector<256x256xf32>
    %cst_15 = arith.constant 1.000000e+00 : f32
    %26 = vector.broadcast %cst_15 : f32 to vector<256x256xf32>
    %27 = arith.addf %26, %25 : vector<256x256xf32>
    %28 = arith.mulf %22, %27 : vector<256x256xf32>
    %29 = arith.truncf %28 : vector<256x256xf32> to vector<256x256xbf16>
    %c0_16 = arith.constant 0 : index
    %c0_17 = arith.constant 0 : index
    %30 = vector.load %arg6[%c0_16, %c0_17] : memref<256x128xbf16, #tpu.memory_space<vmem>>, vector<256x128xbf16>
    %cst_18 = arith.constant dense<0.000000e+00> : vector<256x128xf32>
    %31 = tpu.matmul %29, %30, %cst_18 {dimension_numbers = #tpu.dot_dimension_numbers<[1], [0], [0], [1], [0, 0, 1, 1], [], []>} : vector<256x256xbf16>, vector<256x128xbf16>, vector<256x128xf32> -> vector<256x128xf32>
    %c0_19 = arith.constant 0 : index
    %c0_20 = arith.constant 0 : index
    %32 = vector.load %arg7[%c0_19, %c0_20] : memref<1x128xf32, #tpu.memory_space<vmem>>, vector<1x128xf32>
    %33 = vector.broadcast %32 : vector<1x128xf32> to vector<256x128xf32>
    %34 = arith.addf %31, %33 : vector<256x128xf32>
    %c0_21 = arith.constant 0 : index
    %c0_22 = arith.constant 0 : index
    %35 = vector.load %arg9[%c0_21, %c0_22] : memref<256x128xf32, #tpu.memory_space<vmem>>, vector<256x128xf32>
    tpu.vector_store %arg9[%c0_21, %c0_22], %34 {strides = array<i32>} : memref<256x128xf32, #tpu.memory_space<vmem>>, vector<256x128xf32>,
    %36 = arith.mulf %0, %0 : vector<256x128xf32>
    %cst_23 = arith.constant dense<0.000000e+00> : vector<256xf32>
    %37 = vector.multi_reduction <add>, %36, %cst_23 [1] : vector<256x128xf32> to vector<256xf32>
    %38 = vector.shape_cast %37 : vector<256xf32> to vector<256x1xf32>
    %cst_24 = arith.constant 1.000000e-24 : f32
    %39 = vector.broadcast %cst_24 : f32 to vector<256x1xf32>
    %40 = arith.maximumf %38, %39 : vector<256x1xf32>
    %41 = math.rsqrt %40 : vector<256x1xf32>
    %42 = vector.broadcast %41 : vector<256x1xf32> to vector<256x128xf32>
    %43 = arith.mulf %0, %42 : vector<256x128xf32>
    %c0_25 = arith.constant 0 : index
    %c0_26 = arith.constant 0 : index
    %44 = vector.load %arg11[%c0_25, %c0_26] : memref<256x128xf32, #tpu.memory_space<vmem>>, vector<256x128xf32>
    tpu.vector_store %arg11[%c0_25, %c0_26], %43 {strides = array<i32>} : memref<256x128xf32, #tpu.memory_space<vmem>>, vector<256x128xf32>,
    %45 = arith.truncf %43 : vector<256x128xf32> to vector<256x128xbf16>
    %c0_27 = arith.constant 0 : index
    %c0_28 = arith.constant 0 : index
    %46 = vector.load %arg8[%c0_27, %c0_28] : memref<128x512xbf16, #tpu.memory_space<vmem>>, vector<128x512xbf16>
    %cst_29 = arith.constant dense<0.000000e+00> : vector<256x512xf32>
    %47 = tpu.matmul %45, %46, %cst_29 {dimension_numbers = #tpu.dot_dimension_numbers<[1], [0], [0], [1], [0, 0, 1, 1], [], []>} : vector<256x128xbf16>, vector<128x512xbf16>, vector<256x512xf32> -> vector<256x512xf32>
    %c0_30 = arith.constant 0 : index
    %c0_31 = arith.constant 0 : index
    %48 = vector.load %arg10[%c0_30, %c0_31] : memref<256x512xf32, #tpu.memory_space<vmem>>, vector<256x512xf32>
    tpu.vector_store %arg10[%c0_30, %c0_31], %47 {strides = array<i32>} : memref<256x512xf32, #tpu.memory_space<vmem>>, vector<256x512xf32>,
    return
  }
  func.func @transform_0(%arg0: i32) -> (i32, i32) {
    %c0_i32 = arith.constant 0 : i32
    %c0_i32_0 = arith.constant 0 : i32
    return %arg0, %c0_i32 : i32, i32
  }
  func.func @transform_1(%arg0: i32) -> (i32, i32) {
    %c0_i32 = arith.constant 0 : i32
    %c0_i32_0 = arith.constant 0 : i32
    %c0_i32_1 = arith.constant 0 : i32
    return %c0_i32, %c0_i32_0 : i32, i32
  }
  func.func @transform_2(%arg0: i32) -> (i32, i32) {
    %c0_i32 = arith.constant 0 : i32
    %c0_i32_0 = arith.constant 0 : i32
    %c0_i32_1 = arith.constant 0 : i32
    return %c0_i32, %c0_i32_0 : i32, i32
  }
  func.func @transform_3(%arg0: i32) -> (i32, i32) {
    %c0_i32 = arith.constant 0 : i32
    %c0_i32_0 = arith.constant 0 : i32
    %c0_i32_1 = arith.constant 0 : i32
    return %c0_i32, %c0_i32_0 : i32, i32
  }
  func.func @transform_4(%arg0: i32) -> (i32, i32) {
    %c0_i32 = arith.constant 0 : i32
    %c0_i32_0 = arith.constant 0 : i32
    %c0_i32_1 = arith.constant 0 : i32
    return %c0_i32, %c0_i32_0 : i32, i32
  }
  func.func @transform_5(%arg0: i32) -> (i32, i32) {
    %c0_i32 = arith.constant 0 : i32
    %c0_i32_0 = arith.constant 0 : i32
    %c0_i32_1 = arith.constant 0 : i32
    return %c0_i32, %c0_i32_0 : i32, i32
  }
  func.func @transform_6(%arg0: i32) -> (i32, i32) {
    %c0_i32 = arith.constant 0 : i32
    %c0_i32_0 = arith.constant 0 : i32
    %c0_i32_1 = arith.constant 0 : i32
    return %c0_i32, %c0_i32_0 : i32, i32
  }
  func.func @transform_7(%arg0: i32) -> (i32, i32) {
    %c0_i32 = arith.constant 0 : i32
    %c0_i32_0 = arith.constant 0 : i32
    %c0_i32_1 = arith.constant 0 : i32
    return %c0_i32, %c0_i32_0 : i32, i32
  }
  func.func @transform_8(%arg0: i32) -> (i32, i32) {
    %c0_i32 = arith.constant 0 : i32
    %c0_i32_0 = arith.constant 0 : i32
    return %arg0, %c0_i32 : i32, i32
  }
  func.func @transform_9(%arg0: i32) -> (i32, i32) {
    %c0_i32 = arith.constant 0 : i32
    %c0_i32_0 = arith.constant 0 : i32
    return %arg0, %c0_i32 : i32, i32
  }
  func.func @transform_10(%arg0: i32) -> (i32, i32) {
    %c0_i32 = arith.constant 0 : i32
    %c0_i32_0 = arith.constant 0 : i32
    return %arg0, %c0_i32 : i32, i32
  }
}

</mosaic_0001>

<llo_original>
// kernel: tpu_custom_call.1
$region0: #{tpu_custom_call.1}
  #allocation0 [shape = 'u32[]', space=smem, size = 0x4, offset = 0x4, fixed_abs, tag = 'smem constant byte address 0x4 - core index']
  #allocation1 [shape = 'u32[144,128]{1,0:T(1,128)}', space=vmem, size = 0x12000, scoped, tag = 'internal scratch']
  %s0 = inlined_call_operand.hbm [shape: f32[256,128], index: 0, kind: input, shape index: {}]
  %s1 = inlined_call_operand.hbm [shape: bf16[128,256], index: 1, kind: input, shape index: {}]
  %s2 = inlined_call_operand.vmem [shape: f32[1,256], index: 2, kind: input, shape index: {}]
  %s3 = inlined_call_operand.hbm [shape: bf16[256,256], index: 3, kind: input, shape index: {}]
  %s4 = inlined_call_operand.vmem [shape: f32[1,256], index: 4, kind: input, shape index: {}]
  %s5 = inlined_call_operand.hbm [shape: bf16[256,128], index: 5, kind: input, shape index: {}]
  %s6 = inlined_call_operand.vmem [shape: f32[1,128], index: 6, kind: input, shape index: {}]
  %s7 = inlined_call_operand.hbm [shape: bf16[128,512], index: 7, kind: input, shape index: {}]
  %s8 = inlined_call_operand.hbm [shape: f32[256,128], index: 8, kind: output, shape index: {0}]
  %s9 = inlined_call_operand.hbm [shape: f32[256,512], index: 9, kind: output, shape index: {1}]
  %s10 = inlined_call_operand.hbm [shape: f32[256,128], index: 10, kind: output, shape index: {2}]
  %11 = xla_tuple %s8, %s9, %s10
  %s12 = sld [smem:[#allocation0]]
  $region78: #{tpu_custom_call.1} parent=0
    _
  %s14 = ssub.s32 1, %s12
  %s15 = scalar_select 0, %s14, %s12
  $region1: #{tpu_custom_call.1} parent=0
    #allocation2 [shape = 'u8[131072]{0}', space=vmem, size = 0x20000, scoped, tag = 'input window, operand 0, single buffered']
    #allocation3 [shape = 's32[1]{0}', space=sflag, size = 0x4, scoped, tag = 'scoped memory for tpu_custom_call.1']
    #allocation4 [shape = 's32[1]{0}', space=sflag, size = 0x4, scoped, tag = 'scoped memory for tpu_custom_call.1']
    #allocation5 [shape = 'u8[65536]{0}', space=vmem, size = 0x10000, scoped, tag = 'input window, operand 1, single buffered']
    #allocation6 [shape = 's32[1]{0}', space=sflag, size = 0x4, scoped, tag = 'scoped memory for tpu_custom_call.1']
    #allocation7 [shape = 'u8[131072]{0}', space=vmem, size = 0x20000, scoped, tag = 'input window, operand 3, single buffered']
    #allocation8 [shape = 'u8[65536]{0}', space=vmem, size = 0x10000, scoped, tag = 'input window, operand 5, single buffered']
    #allocation9 [shape = 's32[1]{0}', space=sflag, size = 0x4, scoped, tag = 'scoped memory for tpu_custom_call.1']
    #allocation10 [shape = 'u8[131072]{0}', space=vmem, size = 0x20000, scoped, tag = 'input window, operand 7, single buffered']
    #allocation11 [shape = 'u8[131072]{0}', space=vmem, size = 0x20000, scoped, tag = 'output window, operand 0, single buffered']
    #allocation12 [shape = 'u8[524288]{0}', space=vmem, size = 0x80000, scoped, tag = 'output window, operand 1, single buffered']
    #allocation13 [shape = 's32[1]{0}', space=sflag, size = 0x4, scoped, tag = 'scoped memory for tpu_custom_call.1']
    #allocation14 [shape = 'u8[131072]{0}', space=vmem, size = 0x20000, scoped, tag = 'output window, operand 2, single buffered']
    %16 = vsyncpa [#allocation3], 0
    %17 = vsyncpa [#allocation6], 0
    %18 = vsyncpa [#allocation9], 0
    %19 = vsyncpa [#allocation4], 0
    %20 = vsyncpa [#allocation13], 0
    // Predicated region
    $region2: #{tpu_custom_call.1} parent=1 // pred_check
      _
    $region3: #{tpu_custom_call.1} parent=1 // pred_check_branch
      %22 = sbr.rel (0) target = $region5
    $region4: #{tpu_custom_call.1} parent=1 // pred_region
      %s24 = ssub.s32 4096, 4096
      %25 = vsyncadd [#allocation3], %s24
      %s26 = sshll.u32 [#allocation2], 4
      %s27 = int_to_ptr.vmem [resolvable:$true] %s26
      %32 = dma.hbm_to_vmem [thread:$0]  %s0, 4096, %s27, [#allocation3], 128, 128, 8
    $region5: #{tpu_custom_call.1} parent=1 // pred_fallthru
      _
    // Predicated region
    $region6: #{tpu_custom_call.1} parent=1 // pred_check
      _
    $region7: #{tpu_custom_call.1} parent=1 // pred_check_branch
      %34 = sbr.rel (0) target = $region9
    $region8: #{tpu_custom_call.1} parent=1 // pred_region
      %s36 = ssub.s32 2048, 2048
      %37 = vsyncadd [#allocation6], %s36
      %s38 = sshll.u32 [#allocation5], 4
      %s39 = int_to_ptr.vmem [resolvable:$true] %s38
      %44 = dma.hbm_to_vmem [thread:$0]  %s1, 2048, %s39, [#allocation6], 128, 128, 8
    $region9: #{tpu_custom_call.1} parent=1 // pred_fallthru
      _
    // Predicated region
    $region10: #{tpu_custom_call.1} parent=1 // pred_check
      _
    $region11: #{tpu_custom_call.1} parent=1 // pred_check_branch
      %46 = sbr.rel (0) target = $region13
    $region12: #{tpu_custom_call.1} parent=1 // pred_region
      _
    $region13: #{tpu_custom_call.1} parent=1 // pred_fallthru
      _
    // Predicated region
    $region14: #{tpu_custom_call.1} parent=1 // pred_check
      _
    $region15: #{tpu_custom_call.1} parent=1 // pred_check_branch
      %48 = sbr.rel (0) target = $region17
    $region16: #{tpu_custom_call.1} parent=1 // pred_region
      %s50 = ssub.s32 4096, 4096
      %51 = vsyncadd [#allocation6], %s50
      %s52 = sshll.u32 [#allocation7], 4
      %s53 = int_to_ptr.vmem [resolvable:$true] %s52
      %58 = dma.hbm_to_vmem [thread:$0]  %s3, 4096, %s53, [#allocation6], 128, 128, 8
    $region17: #{tpu_custom_call.1} parent=1 // pred_fallthru
      _
    // Predicated region
    $region18: #{tpu_custom_call.1} parent=1 // pred_check
      _
    $region19: #{tpu_custom_call.1} parent=1 // pred_check_branch
      %60 = sbr.rel (0) target = $region21
    $region20: #{tpu_custom_call.1} parent=1 // pred_region
      _
    $region21: #{tpu_custom_call.1} parent=1 // pred_fallthru
      _
    // Predicated region
    $region22: #{tpu_custom_call.1} parent=1 // pred_check
      _
    $region23: #{tpu_custom_call.1} parent=1 // pred_check_branch
      %62 = sbr.rel (0) target = $region25
    $region24: #{tpu_custom_call.1} parent=1 // pred_region
      %s64 = ssub.s32 2048, 2048
      %65 = vsyncadd [#allocation9], %s64
      %s66 = sshll.u32 [#allocation8], 4
      %s67 = int_to_ptr.vmem [resolvable:$true] %s66
      %72 = dma.hbm_to_vmem [thread:$0]  %s5, 2048, %s67, [#allocation9], 64, 64, 4
    $region25: #{tpu_custom_call.1} parent=1 // pred_fallthru
      _
    // Predicated region
    $region26: #{tpu_custom_call.1} parent=1 // pred_check
      _
    $region27: #{tpu_custom_call.1} parent=1 // pred_check_branch
      %74 = sbr.rel (0) target = $region29
    $region28: #{tpu_custom_call.1} parent=1 // pred_region
      _
    $region29: #{tpu_custom_call.1} parent=1 // pred_fallthru
      _
    // Predicated region
    $region30: #{tpu_custom_call.1} parent=1 // pred_check
      _
    $region31: #{tpu_custom_call.1} parent=1 // pred_check_branch
      %76 = sbr.rel (0) target = $region33
    $region32: #{tpu_custom_call.1} parent=1 // pred_region
      %s78 = ssub.s32 4096, 4096
      %79 = vsyncadd [#allocation9], %s78
      %s80 = sshll.u32 [#allocation10], 4
      %s81 = int_to_ptr.vmem [resolvable:$true] %s80
      %86 = dma.hbm_to_vmem [thread:$0]  %s7, 4096, %s81, [#allocation9], 256, 256, 16
    $region33: #{tpu_custom_call.1} parent=1 // pred_fallthru
      _
    // Predicated region
    $region34: #{tpu_custom_call.1} parent=1 // pred_check
      _
    $region35: #{tpu_custom_call.1} parent=1 // pred_check_branch
      %88 = sbr.rel (0) target = $region37
    $region36: #{tpu_custom_call.1} parent=1 // pred_region
      %89 = dma.done [#allocation3], 4096
    $region37: #{tpu_custom_call.1} parent=1 // pred_fallthru
      _
    // Predicated region
    $region38: #{tpu_custom_call.1} parent=1 // pred_check
      _
    $region39: #{tpu_custom_call.1} parent=1 // pred_check_branch
      %91 = sbr.rel (0) target = $region41
    $region40: #{tpu_custom_call.1} parent=1 // pred_region
      %92 = dma.done [#allocation6], 2048
    $region41: #{tpu_custom_call.1} parent=1 // pred_fallthru
      _
    // Predicated region
    $region42: #{tpu_custom_call.1} parent=1 // pred_check
      _
    $region43: #{tpu_custom_call.1} parent=1 // pred_check_branch
      %94 = sbr.rel (0) target = $region45
    $region44: #{tpu_custom_call.1} parent=1 // pred_region
      %95 = dma.done [#allocation6], 4096
    $region45: #{tpu_custom_call.1} parent=1 // pred_fallthru
      _
    // Predicated region
    $region46: #{tpu_custom_call.1} parent=1 // pred_check
      _
    $region47: #{tpu_custom_call.1} parent=1 // pred_check_branch
      %97 = sbr.rel (0) target = $region49
    $region48: #{tpu_custom_call.1} parent=1 // pred_region
      %98 = dma.done [#allocation9], 2048
    $region49: #{tpu_custom_call.1} parent=1 // pred_fallthru
      _
    // Predicated region
    $region50: #{tpu_custom_call.1} parent=1 // pred_check
      _
    $region51: #{tpu_custom_call.1} parent=1 // pred_check_branch
      %100 = sbr.rel (0) target = $region53
    $region52: #{tpu_custom_call.1} parent=1 // pred_region
      %101 = dma.done [#allocation9], 4096
    $region53: #{tpu_custom_call.1} parent=1 // pred_fallthru
      _
    %v103 = vld [vmem:[#allocation2] sm:$0xff]
    %v104 = vld [vmem:[#allocation2 + $0x8] sm:$0xff]
    %v105 = vld [vmem:[#allocation2 + $0x10] sm:$0xff]
    %v106 = vld [vmem:[#allocation2 + $0x18] sm:$0xff]
    %v107 = vld [vmem:[#allocation2 + $0x20] sm:$0xff]
    %v108 = vld [vmem:[#allocation2 + $0x28] sm:$0xff]
    %v109 = vld [vmem:[#allocation2 + $0x30] sm:$0xff]
    %v110 = vld [vmem:[#allocation2 + $0x38] sm:$0xff]
    %v111 = vld [vmem:[#allocation2 + $0x40] sm:$0xff]
    %v112 = vld [vmem:[#allocation2 + $0x48] sm:$0xff]
    %v113 = vld [vmem:[#allocation2 + $0x50] sm:$0xff]
    %v114 = vld [vmem:[#allocation2 + $0x58] sm:$0xff]
    %v115 = vld [vmem:[#allocation2 + $0x60] sm:$0xff]
    %v116 = vld [vmem:[#allocation2 + $0x68] sm:$0xff]
    %v117 = vld [vmem:[#allocation2 + $0x70] sm:$0xff]
    %v118 = vld [vmem:[#allocation2 + $0x78] sm:$0xff]
    %v119 = vld [vmem:[#allocation2 + $0x80] sm:$0xff]
    %v120 = vld [vmem:[#allocation2 + $0x88] sm:$0xff]
    %v121 = vld [vmem:[#allocation2 + $0x90] sm:$0xff]
    %v122 = vld [vmem:[#allocation2 + $0x98] sm:$0xff]
    %v123 = vld [vmem:[#allocation2 + $0xa0] sm:$0xff]
    %v124 = vld [vmem:[#allocation2 + $0xa8] sm:$0xff]
    %v125 = vld [vmem:[#allocation2 + $0xb0] sm:$0xff]
    %v126 = vld [vmem:[#allocation2 + $0xb8] sm:$0xff]
    %v127 = vld [vmem:[#allocation2 + $0xc0] sm:$0xff]
    %v128 = vld [vmem:[#allocation2 + $0xc8] sm:$0xff]
    %v129 = vld [vmem:[#allocation2 + $0xd0] sm:$0xff]
    %v130 = vld [vmem:[#allocation2 + $0xd8] sm:$0xff]
    %v131 = vld [vmem:[#allocation2 + $0xe0] sm:$0xff]
    %v132 = vld [vmem:[#allocation2 + $0xe8] sm:$0xff]
    %v133 = vld [vmem:[#allocation2 + $0xf0] sm:$0xff]
    %v134 = vld [vmem:[#allocation2 + $0xf8] sm:$0xff]
    %v135 = vpack.c.bf16 %v104, %v103
    %v136 = vpack.c.bf16 %v106, %v105
    %v137 = vpack.c.bf16 %v108, %v107
    %v138 = vpack.c.bf16 %v110, %v109
    %v139 = vpack.c.bf16 %v112, %v111
    %v140 = vpack.c.bf16 %v114, %v113
    %v141 = vpack.c.bf16 %v116, %v115
    %v142 = vpack.c.bf16 %v118, %v117
    %v143 = vpack.c.bf16 %v120, %v119
    %v144 = vpack.c.bf16 %v122, %v121
    %v145 = vpack.c.bf16 %v124, %v123
    %v146 = vpack.c.bf16 %v126, %v125
    %v147 = vpack.c.bf16 %v128, %v127
    %v148 = vpack.c.bf16 %v130, %v129
    %v149 = vpack.c.bf16 %v132, %v131
    %v150 = vpack.c.bf16 %v134, %v133
    %v151 = vld [vmem:[#allocation5] sm:$0xff]
    %v152 = vld [vmem:[#allocation5 + $0x8] sm:$0xff]
    %v153 = vld [vmem:[#allocation5 + $0x10] sm:$0xff]
    %v154 = vld [vmem:[#allocation5 + $0x18] sm:$0xff]
    %v155 = vld [vmem:[#allocation5 + $0x20] sm:$0xff]
    %v156 = vld [vmem:[#allocation5 + $0x28] sm:$0xff]
    %v157 = vld [vmem:[#allocation5 + $0x30] sm:$0xff]
    %v158 = vld [vmem:[#allocation5 + $0x38] sm:$0xff]
    %v159 = vld [vmem:[#allocation5 + $0x40] sm:$0xff]
    %v160 = vld [vmem:[#allocation5 + $0x48] sm:$0xff]
    %v161 = vld [vmem:[#allocation5 + $0x50] sm:$0xff]
    %v162 = vld [vmem:[#allocation5 + $0x58] sm:$0xff]
    %v163 = vld [vmem:[#allocation5 + $0x60] sm:$0xff]
    %v164 = vld [vmem:[#allocation5 + $0x68] sm:$0xff]
    %v165 = vld [vmem:[#allocation5 + $0x70] sm:$0xff]
    %v166 = vld [vmem:[#allocation5 + $0x78] sm:$0xff]
    %v167 = vld [vmem:[%s2] sm:$0x3]
    %v169 = vlaneseq
    %v170 = vshrl.u32 %v169, 7
    %v171 = vsub.s32 0, %v170
    %v172 = vrot.slane %v167, %v171
    %v173 = vlaneseq
    %v174 = vshrl.u32 %v173, 7
    %v175 = vsub.s32 1, %v174
    %v176 = vrot.slane %v167, %v175
    %v195 = vunpack.c.l.b16 %v151
    %v196 = vunpack.c.h.b16 %v151
    %v197 = vunpack.c.l.b16 %v152
    %v198 = vunpack.c.h.b16 %v152
    %v199 = vunpack.c.l.b16 %v153
    %v200 = vunpack.c.h.b16 %v153
    %v201 = vunpack.c.l.b16 %v154
    %v202 = vunpack.c.h.b16 %v154
    %v203 = vunpack.c.l.b16 %v155
    %v204 = vunpack.c.h.b16 %v155
    %v205 = vunpack.c.l.b16 %v156
    %v206 = vunpack.c.h.b16 %v156
    %v207 = vunpack.c.l.b16 %v157
    %v208 = vunpack.c.h.b16 %v157
    %v209 = vunpack.c.l.b16 %v158
    %v210 = vunpack.c.h.b16 %v158
    %v211 = vunpack.c.l.b16 %v159
    %v212 = vunpack.c.h.b16 %v159
    %v213 = vunpack.c.l.b16 %v160
    %v214 = vunpack.c.h.b16 %v160
    %v215 = vunpack.c.l.b16 %v161
    %v216 = vunpack.c.h.b16 %v161
    %v217 = vunpack.c.l.b16 %v162
    %v218 = vunpack.c.h.b16 %v162
    %v219 = vunpack.c.l.b16 %v163
    %v220 = vunpack.c.h.b16 %v163
    %v221 = vunpack.c.l.b16 %v164
    %v222 = vunpack.c.h.b16 %v164
    %v223 = vunpack.c.l.b16 %v165
    %v224 = vunpack.c.h.b16 %v165
    %v225 = vunpack.c.l.b16 %v166
    %v226 = vunpack.c.h.b16 %v166
    %v227 = vpack.c.b16 %v197, %v195
    %v228 = vpack.c.b16 %v198, %v196
    %v229 = vpack.c.b16 %v201, %v199
    %v230 = vpack.c.b16 %v202, %v200
    %v231 = vpack.c.b16 %v205, %v203
    %v232 = vpack.c.b16 %v206, %v204
    %v233 = vpack.c.b16 %v209, %v207
    %v234 = vpack.c.b16 %v210, %v208
    %v235 = vpack.c.b16 %v213, %v211
    %v236 = vpack.c.b16 %v214, %v212
    %v237 = vpack.c.b16 %v217, %v215
    %v238 = vpack.c.b16 %v218, %v216
    %v239 = vpack.c.b16 %v221, %v219
    %v240 = vpack.c.b16 %v222, %v220
    %v241 = vpack.c.b16 %v225, %v223
    %v242 = vpack.c.b16 %v226, %v224
    %259 = vmatprep.subr.bf16.mxu0 %v242
    %260 = vmatpush1.bf16.msra.mxu0 %v241
    %261 = vmatprep.subr.bf16.mxu0 %v240
    %262 = vmatpush1.bf16.msra.mxu0 %v239
    %263 = vmatprep.subr.bf16.mxu0 %v238
    %264 = vmatpush1.bf16.msra.mxu0 %v237
    %265 = vmatprep.subr.bf16.mxu0 %v236
    %266 = vmatpush1.bf16.msra.mxu0 %v235
    %267 = vmatprep.subr.bf16.mxu0 %v234
    %268 = vmatpush1.bf16.msra.mxu0 %v233
    %269 = vmatprep.subr.bf16.mxu0 %v232
    %270 = vmatpush1.bf16.msra.mxu0 %v231
    %271 = vmatprep.subr.bf16.mxu0 %v230
    %272 = vmatpush1.bf16.msra.mxu0 %v229
    %273 = vmatprep.subr.bf16.mxu0 %v228
    %274 = vmatpush1.bf16.msra.mxu0 %v227
    %275 = vmatprep.subr.bf16.mxu0 0
    %276 = vmatpush2.bf16.msra.mxu0 0
    %277 = vmatprep.subr.bf16.mxu0 0
    %278 = vmatpush2.bf16.msra.mxu0 0
    %279 = vmatprep.subr.bf16.mxu0 0
    %280 = vmatpush2.bf16.msra.mxu0 0
    %281 = vmatprep.subr.bf16.mxu0 0
    %282 = vmatpush2.bf16.msra.mxu0 0
    %283 = vmatprep.subr.bf16.mxu0 0
    %284 = vmatpush2.bf16.msra.mxu0 0
    %285 = vmatprep.subr.bf16.mxu0 0
    %286 = vmatpush2.bf16.msra.mxu0 0
    %287 = vmatprep.subr.bf16.mxu0 0
    %288 = vmatpush2.bf16.msra.mxu0 0
    %289 = vmatprep.subr.bf16.mxu0 0
    %290 = vmatpush2.bf16.msra.mxu0 0
    %291 = vmatprep.mubr.bf16.mxu0 0
    %292 = vmatmul.mubr.bf16.gmra.mxu0 %v135
    %v293 = vpop.f32.mrf.mxu0
    %v294 = vadd.f32 %v172, %v293
    %v295 = vpop.f32.mrf.mxu0
    %v296 = vadd.f32 %v176, %v295
    %v297 = vpop.f32.mrf.mxu0
    %v298 = vadd.f32 %v172, %v297
    %v299 = vpop.f32.mrf.mxu0
    %v300 = vadd.f32 %v176, %v299
    %301 = vmatprep.mubr.bf16.mxu0 0
    %302 = vmatmul.mubr.bf16.gmra.mxu0 %v136
    %v303 = vpop.f32.mrf.mxu0
    %v304 = vadd.f32 %v172, %v303
    %v305 = vpop.f32.mrf.mxu0
    %v306 = vadd.f32 %v176, %v305
    %v307 = vpop.f32.mrf.mxu0
    %v308 = vadd.f32 %v172, %v307
    %v309 = vpop.f32.mrf.mxu0
    %v310 = vadd.f32 %v176, %v309
    %311 = vmatprep.mubr.bf16.mxu0 0
    %312 = vmatmul.mubr.bf16.gmra.mxu0 %v137
    %v313 = vpop.f32.mrf.mxu0
    %v314 = vadd.f32 %v172, %v313
    %v315 = vpop.f32.mrf.mxu0
    %v316 = vadd.f32 %v176, %v315
    %v317 = vpop.f32.mrf.mxu0
    %v318 = vadd.f32 %v172, %v317
    %v319 = vpop.f32.mrf.mxu0
    %v320 = vadd.f32 %v176, %v319
    %321 = vmatprep.mubr.bf16.mxu0 0
    %322 = vmatmul.mubr.bf16.gmra.mxu0 %v138
    %v323 = vpop.f32.mrf.mxu0
    %v324 = vadd.f32 %v172, %v323
    %v325 = vpop.f32.mrf.mxu0
    %v326 = vadd.f32 %v176, %v325
    %v327 = vpop.f32.mrf.mxu0
    %v328 = vadd.f32 %v172, %v327
    %v329 = vpop.f32.mrf.mxu0
    %v330 = vadd.f32 %v176, %v329
    %331 = vmatprep.mubr.bf16.mxu0 0
    %332 = vmatmul.mubr.bf16.gmra.mxu0 %v139
    %v333 = vpop.f32.mrf.mxu0
    %v334 = vadd.f32 %v172, %v333
    %v335 = vpop.f32.mrf.mxu0
    %v336 = vadd.f32 %v176, %v335
    %v337 = vpop.f32.mrf.mxu0
    %v338 = vadd.f32 %v172, %v337
    %v339 = vpop.f32.mrf.mxu0
    %v340 = vadd.f32 %v176, %v339
    %341 = vmatprep.mubr.bf16.mxu0 0
    %342 = vmatmul.mubr.bf16.gmra.mxu0 %v140
    %v343 = vpop.f32.mrf.mxu0
    %v344 = vadd.f32 %v172, %v343
    %v345 = vpop.f32.mrf.mxu0
    %v346 = vadd.f32 %v176, %v345
    %v347 = vpop.f32.mrf.mxu0
    %v348 = vadd.f32 %v172, %v347
    %v349 = vpop.f32.mrf.mxu0
    %v350 = vadd.f32 %v176, %v349
    %351 = vmatprep.mubr.bf16.mxu0 0
    %352 = vmatmul.mubr.bf16.gmra.mxu0 %v141
    %v353 = vpop.f32.mrf.mxu0
    %v354 = vadd.f32 %v172, %v353
    %v355 = vpop.f32.mrf.mxu0
    %v356 = vadd.f32 %v176, %v355
    %v357 = vpop.f32.mrf.mxu0
    %v358 = vadd.f32 %v172, %v357
    %v359 = vpop.f32.mrf.mxu0
    %v360 = vadd.f32 %v176, %v359
    %361 = vmatprep.mubr.bf16.mxu0 0
    %362 = vmatmul.mubr.bf16.gmra.mxu0 %v142
    %v363 = vpop.f32.mrf.mxu0
    %v364 = vadd.f32 %v172, %v363
    %v365 = vpop.f32.mrf.mxu0
    %v366 = vadd.f32 %v176, %v365
    %v367 = vpop.f32.mrf.mxu0
    %v368 = vadd.f32 %v172, %v367
    %v369 = vpop.f32.mrf.mxu0
    %v370 = vadd.f32 %v176, %v369
    %371 = vmatprep.mubr.bf16.mxu0 0
    %372 = vmatmul.mubr.bf16.gmra.mxu0 %v143
    %v373 = vpop.f32.mrf.mxu0
    %v374 = vadd.f32 %v172, %v373
    %v375 = vpop.f32.mrf.mxu0
    %v376 = vadd.f32 %v176, %v375
    %v377 = vpop.f32.mrf.mxu0
    %v378 = vadd.f32 %v172, %v377
    %v379 = vpop.f32.mrf.mxu0
    %v380 = vadd.f32 %v176, %v379
    %381 = vmatprep.mubr.bf16.mxu0 0
    %382 = vmatmul.mubr.bf16.gmra.mxu0 %v144
    %v383 = vpop.f32.mrf.mxu0
    %v384 = vadd.f32 %v172, %v383
    %v385 = vpop.f32.mrf.mxu0
    %v386 = vadd.f32 %v176, %v385
    %v387 = vpop.f32.mrf.mxu0
    %v388 = vadd.f32 %v172, %v387
    %v389 = vpop.f32.mrf.mxu0
    %v390 = vadd.f32 %v176, %v389
    %391 = vmatprep.mubr.bf16.mxu0 0
    %392 = vmatmul.mubr.bf16.gmra.mxu0 %v145
    %v393 = vpop.f32.mrf.mxu0
    %v394 = vadd.f32 %v172, %v393
    %v395 = vpop.f32.mrf.mxu0
    %v396 = vadd.f32 %v176, %v395
    %v397 = vpop.f32.mrf.mxu0
    %v398 = vadd.f32 %v172, %v397
    %v399 = vpop.f32.mrf.mxu0
    %v400 = vadd.f32 %v176, %v399
    %401 = vmatprep.mubr.bf16.mxu0 0
    %402 = vmatmul.mubr.bf16.gmra.mxu0 %v146
    %v403 = vpop.f32.mrf.mxu0
    %v404 = vadd.f32 %v172, %v403
    %v405 = vpop.f32.mrf.mxu0
    %v406 = vadd.f32 %v176, %v405
    %v407 = vpop.f32.mrf.mxu0
    %v408 = vadd.f32 %v172, %v407
    %v409 = vpop.f32.mrf.mxu0
    %v410 = vadd.f32 %v176, %v409
    %411 = vmatprep.mubr.bf16.mxu0 0
    %412 = vmatmul.mubr.bf16.gmra.mxu0 %v147
    %v413 = vpop.f32.mrf.mxu0
    %v414 = vadd.f32 %v172, %v413
    %v415 = vpop.f32.mrf.mxu0
    %v416 = vadd.f32 %v176, %v415
    %v417 = vpop.f32.mrf.mxu0
    %v418 = vadd.f32 %v172, %v417
    %v419 = vpop.f32.mrf.mxu0
    %v420 = vadd.f32 %v176, %v419
    %421 = vmatprep.mubr.bf16.mxu0 0
    %422 = vmatmul.mubr.bf16.gmra.mxu0 %v148
    %v423 = vpop.f32.mrf.mxu0
    %v424 = vadd.f32 %v172, %v423
    %v425 = vpop.f32.mrf.mxu0
    %v426 = vadd.f32 %v176, %v425
    %v427 = vpop.f32.mrf.mxu0
    %v428 = vadd.f32 %v172, %v427
    %v429 = vpop.f32.mrf.mxu0
    %v430 = vadd.f32 %v176, %v429
    %431 = vmatprep.mubr.bf16.mxu0 0
    %432 = vmatmul.mubr.bf16.gmra.mxu0 %v149
    %v433 = vpop.f32.mrf.mxu0
    %v434 = vadd.f32 %v172, %v433
    %v435 = vpop.f32.mrf.mxu0
    %v436 = vadd.f32 %v176, %v435
    %v437 = vpop.f32.mrf.mxu0
    %v438 = vadd.f32 %v172, %v437
    %v439 = vpop.f32.mrf.mxu0
    %v440 = vadd.f32 %v176, %v439
    %441 = vmatprep.mubr.bf16.mxu0 0
    %442 = vmatmul.mubr.bf16.gmra.mxu0 %v150
    %v443 = vpop.f32.mrf.mxu0
    %v444 = vadd.f32 %v172, %v443
    %v445 = vpop.f32.mrf.mxu0
    %v446 = vadd.f32 %v176, %v445
    %v447 = vpop.f32.mrf.mxu0
    %v448 = vadd.f32 %v172, %v447
    %v449 = vpop.f32.mrf.mxu0
    %v450 = vadd.f32 %v176, %v449
    %451 = vdwg.mxu0
    %v452 = vmul.f32 %v294, 0.5
    %v453 = vmul.f32 %v296, 0.5
    %v454 = vmul.f32 %v298, 0.5
    %v455 = vmul.f32 %v300, 0.5
    %v456 = vmul.f32 %v304, 0.5
    %v457 = vmul.f32 %v306, 0.5
    %v458 = vmul.f32 %v308, 0.5
    %v459 = vmul.f32 %v310, 0.5
    %v460 = vmul.f32 %v314, 0.5
    %v461 = vmul.f32 %v316, 0.5
    %v462 = vmul.f32 %v318, 0.5
    %v463 = vmul.f32 %v320, 0.5
    %v464 = vmul.f32 %v324, 0.5
    %v465 = vmul.f32 %v326, 0.5
    %v466 = vmul.f32 %v328, 0.5
    %v467 = vmul.f32 %v330, 0.5
    %v468 = vmul.f32 %v334, 0.5
    %v469 = vmul.f32 %v336, 0.5
    %v470 = vmul.f32 %v338, 0.5
    %v471 = vmul.f32 %v340, 0.5
    %v472 = vmul.f32 %v344, 0.5
    %v473 = vmul.f32 %v346, 0.5
    %v474 = vmul.f32 %v348, 0.5
    %v475 = vmul.f32 %v350, 0.5
    %v476 = vmul.f32 %v354, 0.5
    %v477 = vmul.f32 %v356, 0.5
    %v478 = vmul.f32 %v358, 0.5
    %v479 = vmul.f32 %v360, 0.5
    %v480 = vmul.f32 %v364, 0.5
    %v481 = vmul.f32 %v366, 0.5
    %v482 = vmul.f32 %v368, 0.5
    %v483 = vmul.f32 %v370, 0.5
    %v484 = vmul.f32 %v374, 0.5
    %v485 = vmul.f32 %v376, 0.5
    %v486 = vmul.f32 %v378, 0.5
    %v487 = vmul.f32 %v380, 0.5
    %v488 = vmul.f32 %v384, 0.5
    %v489 = vmul.f32 %v386, 0.5
    %v490 = vmul.f32 %v388, 0.5
    %v491 = vmul.f32 %v390, 0.5
    %v492 = vmul.f32 %v394, 0.5
    %v493 = vmul.f32 %v396, 0.5
    %v494 = vmul.f32 %v398, 0.5
    %v495 = vmul.f32 %v400, 0.5
    %v496 = vmul.f32 %v404, 0.5
    %v497 = vmul.f32 %v406, 0.5
    %v498 = vmul.f32 %v408, 0.5
    %v499 = vmul.f32 %v410, 0.5
    %v500 = vmul.f32 %v414, 0.5
    %v501 = vmul.f32 %v416, 0.5
    %v502 = vmul.f32 %v418, 0.5
    %v503 = vmul.f32 %v420, 0.5
    %v504 = vmul.f32 %v424, 0.5
    %v505 = vmul.f32 %v426, 0.5
    %v506 = vmul.f32 %v428, 0.5
    %v507 = vmul.f32 %v430, 0.5
    %v508 = vmul.f32 %v434, 0.5
    %v509 = vmul.f32 %v436, 0.5
    %v510 = vmul.f32 %v438, 0.5
    %v511 = vmul.f32 %v440, 0.5
    %v512 = vmul.f32 %v444, 0.5
    %v513 = vmul.f32 %v446, 0.5
    %v514 = vmul.f32 %v448, 0.5
    %v515 = vmul.f32 %v450, 0.5
    %v516 = vmul.f32 %v294, 0.70710677
    %v517 = vmul.f32 %v296, 0.70710677
    %v518 = vmul.f32 %v298, 0.70710677
    %v519 = vmul.f32 %v300, 0.70710677
    %v520 = vmul.f32 %v304, 0.70710677
    %v521 = vmul.f32 %v306, 0.70710677
    %v522 = vmul.f32 %v308, 0.70710677
    %v523 = vmul.f32 %v310, 0.70710677
    %v524 = vmul.f32 %v314, 0.70710677
    %v525 = vmul.f32 %v316, 0.70710677
    %v526 = vmul.f32 %v318, 0.70710677
    %v527 = vmul.f32 %v320, 0.70710677
    %v528 = vmul.f32 %v324, 0.70710677
    %v529 = vmul.f32 %v326, 0.70710677
    %v530 = vmul.f32 %v328, 0.70710677
    %v531 = vmul.f32 %v330, 0.70710677
    %v532 = vmul.f32 %v334, 0.70710677
    %v533 = vmul.f32 %v336, 0.70710677
    %v534 = vmul.f32 %v338, 0.70710677
    %v535 = vmul.f32 %v340, 0.70710677
    %v536 = vmul.f32 %v344, 0.70710677
    %v537 = vmul.f32 %v346, 0.70710677
    %v538 = vmul.f32 %v348, 0.70710677
    %v539 = vmul.f32 %v350, 0.70710677
    %v540 = vmul.f32 %v354, 0.70710677
    %v541 = vmul.f32 %v356, 0.70710677
    %v542 = vmul.f32 %v358, 0.70710677
    %v543 = vmul.f32 %v360, 0.70710677
    %v544 = vmul.f32 %v364, 0.70710677
    %v545 = vmul.f32 %v366, 0.70710677
    %v546 = vmul.f32 %v368, 0.70710677
    %v547 = vmul.f32 %v370, 0.70710677
    %v548 = vmul.f32 %v374, 0.70710677
    %v549 = vmul.f32 %v376, 0.70710677
    %v550 = vmul.f32 %v378, 0.70710677
    %v551 = vmul.f32 %v380, 0.70710677
    %v552 = vmul.f32 %v384, 0.70710677
    %v553 = vmul.f32 %v386, 0.70710677
    %v554 = vmul.f32 %v388, 0.70710677
    %v555 = vmul.f32 %v390, 0.70710677
    %v556 = vmul.f32 %v394, 0.70710677
    %v557 = vmul.f32 %v396, 0.70710677
    %v558 = vmul.f32 %v398, 0.70710677
    %v559 = vmul.f32 %v400, 0.70710677
    %v560 = vmul.f32 %v404, 0.70710677
    %v561 = vmul.f32 %v406, 0.70710677
    %v562 = vmul.f32 %v408, 0.70710677
    %v563 = vmul.f32 %v410, 0.70710677
    %v564 = vmul.f32 %v414, 0.70710677
    %v565 = vmul.f32 %v416, 0.70710677
    %v566 = vmul.f32 %v418, 0.70710677
    %v567 = vmul.f32 %v420, 0.70710677
    %v568 = vmul.f32 %v424, 0.70710677
    %v569 = vmul.f32 %v426, 0.70710677
    %v570 = vmul.f32 %v428, 0.70710677
    %v571 = vmul.f32 %v430, 0.70710677
    %v572 = vmul.f32 %v434, 0.70710677
    %v573 = vmul.f32 %v436, 0.70710677
    %v574 = vmul.f32 %v438, 0.70710677
    %v575 = vmul.f32 %v440, 0.70710677
    %v576 = vmul.f32 %v444, 0.70710677
    %v577 = vmul.f32 %v446, 0.70710677
    %v578 = vmul.f32 %v448, 0.70710677
    %v579 = vmul.f32 %v450, 0.70710677
    %v580 = verf.f32.pop %v516
    %v581 = verf.f32.pop %v517
    %v582 = verf.f32.pop %v518
    %v583 = verf.f32.pop %v519
    %v584 = verf.f32.pop %v520
    %v585 = verf.f32.pop %v521
    %v586 = verf.f32.pop %v522
    %v587 = verf.f32.pop %v523
    %v588 = verf.f32.pop %v524
    %v589 = verf.f32.pop %v525
    %v590 = verf.f32.pop %v526
    %v591 = verf.f32.pop %v527
    %v592 = verf.f32.pop %v528
    %v593 = verf.f32.pop %v529
    %v594 = verf.f32.pop %v530
    %v595 = verf.f32.pop %v531
    %v596 = verf.f32.pop %v532
    %v597 = verf.f32.pop %v533
    %v598 = verf.f32.pop %v534
    %v599 = verf.f32.pop %v535
    %v600 = verf.f32.pop %v536
    %v601 = verf.f32.pop %v537
    %v602 = verf.f32.pop %v538
    %v603 = verf.f32.pop %v539
    %v604 = verf.f32.pop %v540
    %v605 = verf.f32.pop %v541
    %v606 = verf.f32.pop %v542
    %v607 = verf.f32.pop %v543
    %v608 = verf.f32.pop %v544
    %v609 = verf.f32.pop %v545
    %v610 = verf.f32.pop %v546
    %v611 = verf.f32.pop %v547
    %v612 = verf.f32.pop %v548
    %v613 = verf.f32.pop %v549
    %v614 = verf.f32.pop %v550
    %v615 = verf.f32.pop %v551
    %v616 = verf.f32.pop %v552
    %v617 = verf.f32.pop %v553
    %v618 = verf.f32.pop %v554
    %v619 = verf.f32.pop %v555
    %v620 = verf.f32.pop %v556
    %v621 = verf.f32.pop %v557
    %v622 = verf.f32.pop %v558
    %v623 = verf.f32.pop %v559
    %v624 = verf.f32.pop %v560
    %v625 = verf.f32.pop %v561
    %v626 = verf.f32.pop %v562
    %v627 = verf.f32.pop %v563
    %v628 = verf.f32.pop %v564
    %v629 = verf.f32.pop %v565
    %v630 = verf.f32.pop %v566
    %v631 = verf.f32.pop %v567
    %v632 = verf.f32.pop %v568
    %v633 = verf.f32.pop %v569
    %v634 = verf.f32.pop %v570
    %v635 = verf.f32.pop %v571
    %v636 = verf.f32.pop %v572
    %v637 = verf.f32.pop %v573
    %v638 = verf.f32.pop %v574
    %v639 = verf.f32.pop %v575
    %v640 = verf.f32.pop %v576
    %v641 = verf.f32.pop %v577
    %v642 = verf.f32.pop %v578
    %v643 = verf.f32.pop %v579
    %v644 = vadd.f32 %v580, 1.0
    %v645 = vadd.f32 %v581, 1.0
    %v646 = vadd.f32 %v582, 1.0
    %v647 = vadd.f32 %v583, 1.0
    %v648 = vadd.f32 %v584, 1.0
    %v649 = vadd.f32 %v585, 1.0
    %v650 = vadd.f32 %v586, 1.0
    %v651 = vadd.f32 %v587, 1.0
    %v652 = vadd.f32 %v588, 1.0
    %v653 = vadd.f32 %v589, 1.0
    %v654 = vadd.f32 %v590, 1.0
    %v655 = vadd.f32 %v591, 1.0
    %v656 = vadd.f32 %v592, 1.0
    %v657 = vadd.f32 %v593, 1.0
    %v658 = vadd.f32 %v594, 1.0
    %v659 = vadd.f32 %v595, 1.0
    %v660 = vadd.f32 %v596, 1.0
    %v661 = vadd.f32 %v597, 1.0
    %v662 = vadd.f32 %v598, 1.0
    %v663 = vadd.f32 %v599, 1.0
    %v664 = vadd.f32 %v600, 1.0
    %v665 = vadd.f32 %v601, 1.0
    %v666 = vadd.f32 %v602, 1.0
    %v667 = vadd.f32 %v603, 1.0
    %v668 = vadd.f32 %v604, 1.0
    %v669 = vadd.f32 %v605, 1.0
    %v670 = vadd.f32 %v606, 1.0
    %v671 = vadd.f32 %v607, 1.0
    %v672 = vadd.f32 %v608, 1.0
    %v673 = vadd.f32 %v609, 1.0
    %v674 = vadd.f32 %v610, 1.0
    %v675 = vadd.f32 %v611, 1.0
    %v676 = vadd.f32 %v612, 1.0
    %v677 = vadd.f32 %v613, 1.0
    %v678 = vadd.f32 %v614, 1.0
    %v679 = vadd.f32 %v615, 1.0
    %v680 = vadd.f32 %v616, 1.0
    %v681 = vadd.f32 %v617, 1.0
    %v682 = vadd.f32 %v618, 1.0
    %v683 = vadd.f32 %v619, 1.0
    %v684 = vadd.f32 %v620, 1.0
    %v685 = vadd.f32 %v621, 1.0
    %v686 = vadd.f32 %v622, 1.0
    %v687 = vadd.f32 %v623, 1.0
    %v688 = vadd.f32 %v624, 1.0
    %v689 = vadd.f32 %v625, 1.0
    %v690 = vadd.f32 %v626, 1.0
    %v691 = vadd.f32 %v627, 1.0
    %v692 = vadd.f32 %v628, 1.0
    %v693 = vadd.f32 %v629, 1.0
    %v694 = vadd.f32 %v630, 1.0
    %v695 = vadd.f32 %v631, 1.0
    %v696 = vadd.f32 %v632, 1.0
    %v697 = vadd.f32 %v633, 1.0
    %v698 = vadd.f32 %v634, 1.0
    %v699 = vadd.f32 %v635, 1.0
    %v700 = vadd.f32 %v636, 1.0
    %v701 = vadd.f32 %v637, 1.0
    %v702 = vadd.f32 %v638, 1.0
    %v703 = vadd.f32 %v639, 1.0
    %v704 = vadd.f32 %v640, 1.0
    %v705 = vadd.f32 %v641, 1.0
    %v706 = vadd.f32 %v642, 1.0
    %v707 = vadd.f32 %v643, 1.0
    %v708 = vmul.f32 %v452, %v644
    %v709 = vmul.f32 %v453, %v645
    %v710 = vmul.f32 %v454, %v646
    %v711 = vmul.f32 %v455, %v647
    %v712 = vmul.f32 %v456, %v648
    %v713 = vmul.f32 %v457, %v649
    %v714 = vmul.f32 %v458, %v650
    %v715 = vmul.f32 %v459, %v651
    %v716 = vmul.f32 %v460, %v652
    %v717 = vmul.f32 %v461, %v653
    %v718 = vmul.f32 %v462, %v654
    %v719 = vmul.f32 %v463, %v655
    %v720 = vmul.f32 %v464, %v656
    %v721 = vmul.f32 %v465, %v657
    %v722 = vmul.f32 %v466, %v658
    %v723 = vmul.f32 %v467, %v659
    %v724 = vmul.f32 %v468, %v660
    %v725 = vmul.f32 %v469, %v661
    %v726 = vmul.f32 %v470, %v662
    %v727 = vmul.f32 %v471, %v663
    %v728 = vmul.f32 %v472, %v664
    %v729 = vmul.f32 %v473, %v665
    %v730 = vmul.f32 %v474, %v666
    %v731 = vmul.f32 %v475, %v667
    %v732 = vmul.f32 %v476, %v668
    %v733 = vmul.f32 %v477, %v669
    %v734 = vmul.f32 %v478, %v670
    %v735 = vmul.f32 %v479, %v671
    %v736 = vmul.f32 %v480, %v672
    %v737 = vmul.f32 %v481, %v673
    %v738 = vmul.f32 %v482, %v674
    %v739 = vmul.f32 %v483, %v675
    %v740 = vmul.f32 %v484, %v676
    %v741 = vmul.f32 %v485, %v677
    %v742 = vmul.f32 %v486, %v678
    %v743 = vmul.f32 %v487, %v679
    %v744 = vmul.f32 %v488, %v680
    %v745 = vmul.f32 %v489, %v681
    %v746 = vmul.f32 %v490, %v682
    %v747 = vmul.f32 %v491, %v683
    %v748 = vmul.f32 %v492, %v684
    %v749 = vmul.f32 %v493, %v685
    %v750 = vmul.f32 %v494, %v686
    %v751 = vmul.f32 %v495, %v687
    %v752 = vmul.f32 %v496, %v688
    %v753 = vmul.f32 %v497, %v689
    %v754 = vmul.f32 %v498, %v690
    %v755 = vmul.f32 %v499, %v691
    %v756 = vmul.f32 %v500, %v692
    %v757 = vmul.f32 %v501, %v693
    %v758 = vmul.f32 %v502, %v694
    %v759 = vmul.f32 %v503, %v695
    %v760 = vmul.f32 %v504, %v696
    %v761 = vmul.f32 %v505, %v697
    %v762 = vmul.f32 %v506, %v698
    %v763 = vmul.f32 %v507, %v699
    %v764 = vmul.f32 %v508, %v700
    %v765 = vmul.f32 %v509, %v701
    %v766 = vmul.f32 %v510, %v702
    %v767 = vmul.f32 %v511, %v703
    %v768 = vmul.f32 %v512, %v704
    %v769 = vmul.f32 %v513, %v705
    %v770 = vmul.f32 %v514, %v706
    %v771 = vmul.f32 %v515, %v707
    %v772 = vpack.c.bf16 %v710, %v708
    %v773 = vpack.c.bf16 %v711, %v709
    %v774 = vpack.c.bf16 %v714, %v712
    %v775 = vpack.c.bf16 %v715, %v713
    %v776 = vpack.c.bf16 %v718, %v716
    %v777 = vpack.c.bf16 %v719, %v717
    %v778 = vpack.c.bf16 %v722, %v720
    %v779 = vpack.c.bf16 %v723, %v721
    %v780 = vpack.c.bf16 %v726, %v724
    %v781 = vpack.c.bf16 %v727, %v725
    %v782 = vpack.c.bf16 %v730, %v728
    %v783 = vpack.c.bf16 %v731, %v729
    %v784 = vpack.c.bf16 %v734, %v732
    %v785 = vpack.c.bf16 %v735, %v733
    %v786 = vpack.c.bf16 %v738, %v736
    %v787 = vpack.c.bf16 %v739, %v737
    %v788 = vpack.c.bf16 %v742, %v740
    %v789 = vpack.c.bf16 %v743, %v741
    %v790 = vpack.c.bf16 %v746, %v744
    %v791 = vpack.c.bf16 %v747, %v745
    %v792 = vpack.c.bf16 %v750, %v748
    %v793 = vpack.c.bf16 %v751, %v749
    %v794 = vpack.c.bf16 %v754, %v752
    %v795 = vpack.c.bf16 %v755, %v753
    %v796 = vpack.c.bf16 %v758, %v756
    %v797 = vpack.c.bf16 %v759, %v757
    %v798 = vpack.c.bf16 %v762, %v760
    %v799 = vpack.c.bf16 %v763, %v761
    %v800 = vpack.c.bf16 %v766, %v764
    %v801 = vpack.c.bf16 %v767, %v765
    %v802 = vpack.c.bf16 %v770, %v768
    %v803 = vpack.c.bf16 %v771, %v769
    %v804 = vld [vmem:[#allocation7] sm:$0xff]
    %v805 = vld [vmem:[#allocation7 + $0x8] sm:$0xff]
    %v806 = vld [vmem:[#allocation7 + $0x10] sm:$0xff]
    %v807 = vld [vmem:[#allocation7 + $0x18] sm:$0xff]
    %v808 = vld [vmem:[#allocation7 + $0x20] sm:$0xff]
    %v809 = vld [vmem:[#allocation7 + $0x28] sm:$0xff]
    %v810 = vld [vmem:[#allocation7 + $0x30] sm:$0xff]
    %v811 = vld [vmem:[#allocation7 + $0x38] sm:$0xff]
    %v812 = vld [vmem:[#allocation7 + $0x40] sm:$0xff]
    %v813 = vld [vmem:[#allocation7 + $0x48] sm:$0xff]
    %v814 = vld [vmem:[#allocation7 + $0x50] sm:$0xff]
    %v815 = vld [vmem:[#allocation7 + $0x58] sm:$0xff]
    %v816 = vld [vmem:[#allocation7 + $0x60] sm:$0xff]
    %v817 = vld [vmem:[#allocation7 + $0x68] sm:$0xff]
    %v818 = vld [vmem:[#allocation7 + $0x70] sm:$0xff]
    %v819 = vld [vmem:[#allocation7 + $0x78] sm:$0xff]
    %v820 = vld [vmem:[#allocation7 + $0x80] sm:$0xff]
    %v821 = vld [vmem:[#allocation7 + $0x88] sm:$0xff]
    %v822 = vld [vmem:[#allocation7 + $0x90] sm:$0xff]
    %v823 = vld [vmem:[#allocation7 + $0x98] sm:$0xff]
    %v824 = vld [vmem:[#allocation7 + $0xa0] sm:$0xff]
    %v825 = vld [vmem:[#allocation7 + $0xa8] sm:$0xff]
    %v826 = vld [vmem:[#allocation7 + $0xb0] sm:$0xff]
    %v827 = vld [vmem:[#allocation7 + $0xb8] sm:$0xff]
    %v828 = vld [vmem:[#allocation7 + $0xc0] sm:$0xff]
    %v829 = vld [vmem:[#allocation7 + $0xc8] sm:$0xff]
    %v830 = vld [vmem:[#allocation7 + $0xd0] sm:$0xff]
    %v831 = vld [vmem:[#allocation7 + $0xd8] sm:$0xff]
    %v832 = vld [vmem:[#allocation7 + $0xe0] sm:$0xff]
    %v833 = vld [vmem:[#allocation7 + $0xe8] sm:$0xff]
    %v834 = vld [vmem:[#allocation7 + $0xf0] sm:$0xff]
    %v835 = vld [vmem:[#allocation7 + $0xf8] sm:$0xff]
    %v836 = vld [vmem:[%s4] sm:$0x3]
    %v838 = vlaneseq
    %v839 = vshrl.u32 %v838, 7
    %v840 = vsub.s32 0, %v839
    %v841 = vrot.slane %v836, %v840
    %v842 = vlaneseq
    %v843 = vshrl.u32 %v842, 7
    %v844 = vsub.s32 1, %v843
    %v845 = vrot.slane %v836, %v844
    %v880 = vunpack.c.l.b16 %v804
    %v881 = vunpack.c.h.b16 %v804
    %v882 = vunpack.c.l.b16 %v805
    %v883 = vunpack.c.h.b16 %v805
    %v884 = vunpack.c.l.b16 %v806
    %v885 = vunpack.c.h.b16 %v806
    %v886 = vunpack.c.l.b16 %v807
    %v887 = vunpack.c.h.b16 %v807
    %v888 = vunpack.c.l.b16 %v808
    %v889 = vunpack.c.h.b16 %v808
    %v890 = vunpack.c.l.b16 %v809
    %v891 = vunpack.c.h.b16 %v809
    %v892 = vunpack.c.l.b16 %v810
    %v893 = vunpack.c.h.b16 %v810
    %v894 = vunpack.c.l.b16 %v811
    %v895 = vunpack.c.h.b16 %v811
    %v896 = vunpack.c.l.b16 %v812
    %v897 = vunpack.c.h.b16 %v812
    %v898 = vunpack.c.l.b16 %v813
    %v899 = vunpack.c.h.b16 %v813
    %v900 = vunpack.c.l.b16 %v814
    %v901 = vunpack.c.h.b16 %v814
    %v902 = vunpack.c.l.b16 %v815
    %v903 = vunpack.c.h.b16 %v815
    %v904 = vunpack.c.l.b16 %v816
    %v905 = vunpack.c.h.b16 %v816
    %v906 = vunpack.c.l.b16 %v817
    %v907 = vunpack.c.h.b16 %v817
    %v908 = vunpack.c.l.b16 %v818
    %v909 = vunpack.c.h.b16 %v818
    %v910 = vunpack.c.l.b16 %v819
    %v911 = vunpack.c.h.b16 %v819
    %v912 = vunpack.c.l.b16 %v820
    %v913 = vunpack.c.h.b16 %v820
    %v914 = vunpack.c.l.b16 %v821
    %v915 = vunpack.c.h.b16 %v821
    %v916 = vunpack.c.l.b16 %v822
    %v917 = vunpack.c.h.b16 %v822
    %v918 = vunpack.c.l.b16 %v823
    %v919 = vunpack.c.h.b16 %v823
    %v920 = vunpack.c.l.b16 %v824
    %v921 = vunpack.c.h.b16 %v824
    %v922 = vunpack.c.l.b16 %v825
    %v923 = vunpack.c.h.b16 %v825
    %v924 = vunpack.c.l.b16 %v826
    %v925 = vunpack.c.h.b16 %v826
    %v926 = vunpack.c.l.b16 %v827
    %v927 = vunpack.c.h.b16 %v827
    %v928 = vunpack.c.l.b16 %v828
    %v929 = vunpack.c.h.b16 %v828
    %v930 = vunpack.c.l.b16 %v829
    %v931 = vunpack.c.h.b16 %v829
    %v932 = vunpack.c.l.b16 %v830
    %v933 = vunpack.c.h.b16 %v830
    %v934 = vunpack.c.l.b16 %v831
    %v935 = vunpack.c.h.b16 %v831
    %v936 = vunpack.c.l.b16 %v832
    %v937 = vunpack.c.h.b16 %v832
    %v938 = vunpack.c.l.b16 %v833
    %v939 = vunpack.c.h.b16 %v833
    %v940 = vunpack.c.l.b16 %v834
    %v941 = vunpack.c.h.b16 %v834
    %v942 = vunpack.c.l.b16 %v835
    %v943 = vunpack.c.h.b16 %v835
    %v944 = vpack.c.b16 %v882, %v880
    %v945 = vpack.c.b16 %v883, %v881
    %v946 = vpack.c.b16 %v886, %v884
    %v947 = vpack.c.b16 %v887, %v885
    %v948 = vpack.c.b16 %v890, %v888
    %v949 = vpack.c.b16 %v891, %v889
    %v950 = vpack.c.b16 %v894, %v892
    %v951 = vpack.c.b16 %v895, %v893
    %v952 = vpack.c.b16 %v898, %v896
    %v953 = vpack.c.b16 %v899, %v897
    %v954 = vpack.c.b16 %v902, %v900
    %v955 = vpack.c.b16 %v903, %v901
    %v956 = vpack.c.b16 %v906, %v904
    %v957 = vpack.c.b16 %v907, %v905
    %v958 = vpack.c.b16 %v910, %v908
    %v959 = vpack.c.b16 %v911, %v909
    %v960 = vpack.c.b16 %v914, %v912
    %v961 = vpack.c.b16 %v915, %v913
    %v962 = vpack.c.b16 %v918, %v916
    %v963 = vpack.c.b16 %v919, %v917
    %v964 = vpack.c.b16 %v922, %v920
    %v965 = vpack.c.b16 %v923, %v921
    %v966 = vpack.c.b16 %v926, %v924
    %v967 = vpack.c.b16 %v927, %v925
    %v968 = vpack.c.b16 %v930, %v928
    %v969 = vpack.c.b16 %v931, %v929
    %v970 = vpack.c.b16 %v934, %v932
    %v971 = vpack.c.b16 %v935, %v933
    %v972 = vpack.c.b16 %v938, %v936
    %v973 = vpack.c.b16 %v939, %v937
    %v974 = vpack.c.b16 %v942, %v940
    %v975 = vpack.c.b16 %v943, %v941
    %1008 = vmatprep.subr.bf16.mxu0 %v959
    %1009 = vmatpush1.bf16.msra.mxu0 %v958
    %1010 = vmatprep.subr.bf16.mxu0 %v957
    %1011 = vmatpush1.bf16.msra.mxu0 %v956
    %1012 = vmatprep.subr.bf16.mxu0 %v955
    %1013 = vmatpush1.bf16.msra.mxu0 %v954
    %1014 = vmatprep.subr.bf16.mxu0 %v953
    %1015 = vmatpush1.bf16.msra.mxu0 %v952
    %1016 = vmatprep.subr.bf16.mxu0 %v951
    %1017 = vmatpush1.bf16.msra.mxu0 %v950
    %1018 = vmatprep.subr.bf16.mxu0 %v949
    %1019 = vmatpush1.bf16.msra.mxu0 %v948
    %1020 = vmatprep.subr.bf16.mxu0 %v947
    %1021 = vmatpush1.bf16.msra.mxu0 %v946
    %1022 = vmatprep.subr.bf16.mxu0 %v945
    %1023 = vmatpush1.bf16.msra.mxu0 %v944
    %1024 = vmatprep.subr.bf16.mxu0 %v975
    %1025 = vmatpush2.bf16.msra.mxu0 %v974
    %1026 = vmatprep.subr.bf16.mxu0 %v973
    %1027 = vmatpush2.bf16.msra.mxu0 %v972
    %1028 = vmatprep.subr.bf16.mxu0 %v971
    %1029 = vmatpush2.bf16.msra.mxu0 %v970
    %1030 = vmatprep.subr.bf16.mxu0 %v969
    %1031 = vmatpush2.bf16.msra.mxu0 %v968
    %1032 = vmatprep.subr.bf16.mxu0 %v967
    %1033 = vmatpush2.bf16.msra.mxu0 %v966
    %1034 = vmatprep.subr.bf16.mxu0 %v965
    %1035 = vmatpush2.bf16.msra.mxu0 %v964
    %1036 = vmatprep.subr.bf16.mxu0 %v963
    %1037 = vmatpush2.bf16.msra.mxu0 %v962
    %1038 = vmatprep.subr.bf16.mxu0 %v961
    %1039 = vmatpush2.bf16.msra.mxu0 %v960
    %1040 = vmatprep.mubr.bf16.mxu0 %v773
    %1041 = vmatmul.mubr.bf16.gmra.mxu0 %v772
    %v1042 = vpop.f32.mrf.mxu0
    %v1043 = vadd.f32 %v841, %v1042
    %v1044 = vpop.f32.mrf.mxu0
    %v1045 = vadd.f32 %v845, %v1044
    %v1046 = vpop.f32.mrf.mxu0
    %v1047 = vadd.f32 %v841, %v1046
    %v1048 = vpop.f32.mrf.mxu0
    %v1049 = vadd.f32 %v845, %v1048
    %1050 = vmatprep.mubr.bf16.mxu0 %v775
    %1051 = vmatmul.mubr.bf16.gmra.mxu0 %v774
    %v1052 = vpop.f32.mrf.mxu0
    %v1053 = vadd.f32 %v841, %v1052
    %v1054 = vpop.f32.mrf.mxu0
    %v1055 = vadd.f32 %v845, %v1054
    %v1056 = vpop.f32.mrf.mxu0
    %v1057 = vadd.f32 %v841, %v1056
    %v1058 = vpop.f32.mrf.mxu0
    %v1059 = vadd.f32 %v845, %v1058
    %1060 = vmatprep.mubr.bf16.mxu0 %v777
    %1061 = vmatmul.mubr.bf16.gmra.mxu0 %v776
    %v1062 = vpop.f32.mrf.mxu0
    %v1063 = vadd.f32 %v841, %v1062
    %v1064 = vpop.f32.mrf.mxu0
    %v1065 = vadd.f32 %v845, %v1064
    %v1066 = vpop.f32.mrf.mxu0
    %v1067 = vadd.f32 %v841, %v1066
    %v1068 = vpop.f32.mrf.mxu0
    %v1069 = vadd.f32 %v845, %v1068
    %1070 = vmatprep.mubr.bf16.mxu0 %v779
    %1071 = vmatmul.mubr.bf16.gmra.mxu0 %v778
    %v1072 = vpop.f32.mrf.mxu0
    %v1073 = vadd.f32 %v841, %v1072
    %v1074 = vpop.f32.mrf.mxu0
    %v1075 = vadd.f32 %v845, %v1074
    %v1076 = vpop.f32.mrf.mxu0
    %v1077 = vadd.f32 %v841, %v1076
    %v1078 = vpop.f32.mrf.mxu0
    %v1079 = vadd.f32 %v845, %v1078
    %1080 = vmatprep.mubr.bf16.mxu0 %v781
    %1081 = vmatmul.mubr.bf16.gmra.mxu0 %v780
    %v1082 = vpop.f32.mrf.mxu0
    %v1083 = vadd.f32 %v841, %v1082
    %v1084 = vpop.f32.mrf.mxu0
    %v1085 = vadd.f32 %v845, %v1084
    %v1086 = vpop.f32.mrf.mxu0
    %v1087 = vadd.f32 %v841, %v1086
    %v1088 = vpop.f32.mrf.mxu0
    %v1089 = vadd.f32 %v845, %v1088
    %1090 = vmatprep.mubr.bf16.mxu0 %v783
    %1091 = vmatmul.mubr.bf16.gmra.mxu0 %v782
    %v1092 = vpop.f32.mrf.mxu0
    %v1093 = vadd.f32 %v841, %v1092
    %v1094 = vpop.f32.mrf.mxu0
    %v1095 = vadd.f32 %v845, %v1094
    %v1096 = vpop.f32.mrf.mxu0
    %v1097 = vadd.f32 %v841, %v1096
    %v1098 = vpop.f32.mrf.mxu0
    %v1099 = vadd.f32 %v845, %v1098
    %1100 = vmatprep.mubr.bf16.mxu0 %v785
    %1101 = vmatmul.mubr.bf16.gmra.mxu0 %v784
    %v1102 = vpop.f32.mrf.mxu0
    %v1103 = vadd.f32 %v841, %v1102
    %v1104 = vpop.f32.mrf.mxu0
    %v1105 = vadd.f32 %v845, %v1104
    %v1106 = vpop.f32.mrf.mxu0
    %v1107 = vadd.f32 %v841, %v1106
    %v1108 = vpop.f32.mrf.mxu0
    %v1109 = vadd.f32 %v845, %v1108
    %1110 = vmatprep.mubr.bf16.mxu0 %v787
    %1111 = vmatmul.mubr.bf16.gmra.mxu0 %v786
    %v1112 = vpop.f32.mrf.mxu0
    %v1113 = vadd.f32 %v841, %v1112
    %v1114 = vpop.f32.mrf.mxu0
    %v1115 = vadd.f32 %v845, %v1114
    %v1116 = vpop.f32.mrf.mxu0
    %v1117 = vadd.f32 %v841, %v1116
    %v1118 = vpop.f32.mrf.mxu0
    %v1119 = vadd.f32 %v845, %v1118
    %1120 = vmatprep.mubr.bf16.mxu0 %v789
    %1121 = vmatmul.mubr.bf16.gmra.mxu0 %v788
    %v1122 = vpop.f32.mrf.mxu0
    %v1123 = vadd.f32 %v841, %v1122
    %v1124 = vpop.f32.mrf.mxu0
    %v1125 = vadd.f32 %v845, %v1124
    %v1126 = vpop.f32.mrf.mxu0
    %v1127 = vadd.f32 %v841, %v1126
    %v1128 = vpop.f32.mrf.mxu0
    %v1129 = vadd.f32 %v845, %v1128
    %1130 = vmatprep.mubr.bf16.mxu0 %v791
    %1131 = vmatmul.mubr.bf16.gmra.mxu0 %v790
    %v1132 = vpop.f32.mrf.mxu0
    %v1133 = vadd.f32 %v841, %v1132
    %v1134 = vpop.f32.mrf.mxu0
    %v1135 = vadd.f32 %v845, %v1134
    %v1136 = vpop.f32.mrf.mxu0
    %v1137 = vadd.f32 %v841, %v1136
    %v1138 = vpop.f32.mrf.mxu0
    %v1139 = vadd.f32 %v845, %v1138
    %1140 = vmatprep.mubr.bf16.mxu0 %v793
    %1141 = vmatmul.mubr.bf16.gmra.mxu0 %v792
    %v1142 = vpop.f32.mrf.mxu0
    %v1143 = vadd.f32 %v841, %v1142
    %v1144 = vpop.f32.mrf.mxu0
    %v1145 = vadd.f32 %v845, %v1144
    %v1146 = vpop.f32.mrf.mxu0
    %v1147 = vadd.f32 %v841, %v1146
    %v1148 = vpop.f32.mrf.mxu0
    %v1149 = vadd.f32 %v845, %v1148
    %1150 = vmatprep.mubr.bf16.mxu0 %v795
    %1151 = vmatmul.mubr.bf16.gmra.mxu0 %v794
    %v1152 = vpop.f32.mrf.mxu0
    %v1153 = vadd.f32 %v841, %v1152
    %v1154 = vpop.f32.mrf.mxu0
    %v1155 = vadd.f32 %v845, %v1154
    %v1156 = vpop.f32.mrf.mxu0
    %v1157 = vadd.f32 %v841, %v1156
    %v1158 = vpop.f32.mrf.mxu0
    %v1159 = vadd.f32 %v845, %v1158
    %1160 = vmatprep.mubr.bf16.mxu0 %v797
    %1161 = vmatmul.mubr.bf16.gmra.mxu0 %v796
    %v1162 = vpop.f32.mrf.mxu0
    %v1163 = vadd.f32 %v841, %v1162
    %v1164 = vpop.f32.mrf.mxu0
    %v1165 = vadd.f32 %v845, %v1164
    %v1166 = vpop.f32.mrf.mxu0
    %v1167 = vadd.f32 %v841, %v1166
    %v1168 = vpop.f32.mrf.mxu0
    %v1169 = vadd.f32 %v845, %v1168
    %1170 = vmatprep.mubr.bf16.mxu0 %v799
    %1171 = vmatmul.mubr.bf16.gmra.mxu0 %v798
    %v1172 = vpop.f32.mrf.mxu0
    %v1173 = vadd.f32 %v841, %v1172
    %v1174 = vpop.f32.mrf.mxu0
    %v1175 = vadd.f32 %v845, %v1174
    %v1176 = vpop.f32.mrf.mxu0
    %v1177 = vadd.f32 %v841, %v1176
    %v1178 = vpop.f32.mrf.mxu0
    %v1179 = vadd.f32 %v845, %v1178
    %1180 = vmatprep.mubr.bf16.mxu0 %v801
    %1181 = vmatmul.mubr.bf16.gmra.mxu0 %v800
    %v1182 = vpop.f32.mrf.mxu0
    %v1183 = vadd.f32 %v841, %v1182
    %v1184 = vpop.f32.mrf.mxu0
    %v1185 = vadd.f32 %v845, %v1184
    %v1186 = vpop.f32.mrf.mxu0
    %v1187 = vadd.f32 %v841, %v1186
    %v1188 = vpop.f32.mrf.mxu0
    %v1189 = vadd.f32 %v845, %v1188
    %1190 = vmatprep.mubr.bf16.mxu0 %v803
    %1191 = vmatmul.mubr.bf16.gmra.mxu0 %v802
    %v1192 = vpop.f32.mrf.mxu0
    %v1193 = vadd.f32 %v841, %v1192
    %v1194 = vpop.f32.mrf.mxu0
    %v1195 = vadd.f32 %v845, %v1194
    %v1196 = vpop.f32.mrf.mxu0
    %v1197 = vadd.f32 %v841, %v1196
    %v1198 = vpop.f32.mrf.mxu0
    %v1199 = vadd.f32 %v845, %v1198
    %1200 = vdwg.mxu0
    %v1201 = vmul.f32 %v1043, 0.5
    %v1202 = vmul.f32 %v1045, 0.5
    %v1203 = vmul.f32 %v1047, 0.5
    %v1204 = vmul.f32 %v1049, 0.5
    %v1205 = vmul.f32 %v1053, 0.5
    %v1206 = vmul.f32 %v1055, 0.5
    %v1207 = vmul.f32 %v1057, 0.5
    %v1208 = vmul.f32 %v1059, 0.5
    %v1209 = vmul.f32 %v1063, 0.5
    %v1210 = vmul.f32 %v1065, 0.5
    %v1211 = vmul.f32 %v1067, 0.5
    %v1212 = vmul.f32 %v1069, 0.5
    %v1213 = vmul.f32 %v1073, 0.5
    %v1214 = vmul.f32 %v1075, 0.5
    %v1215 = vmul.f32 %v1077, 0.5
    %v1216 = vmul.f32 %v1079, 0.5
    %v1217 = vmul.f32 %v1083, 0.5
    %v1218 = vmul.f32 %v1085, 0.5
    %v1219 = vmul.f32 %v1087, 0.5
    %v1220 = vmul.f32 %v1089, 0.5
    %v1221 = vmul.f32 %v1093, 0.5
    %v1222 = vmul.f32 %v1095, 0.5
    %v1223 = vmul.f32 %v1097, 0.5
    %v1224 = vmul.f32 %v1099, 0.5
    %v1225 = vmul.f32 %v1103, 0.5
    %v1226 = vmul.f32 %v1105, 0.5
    %v1227 = vmul.f32 %v1107, 0.5
    %v1228 = vmul.f32 %v1109, 0.5
    %v1229 = vmul.f32 %v1113, 0.5
    %v1230 = vmul.f32 %v1115, 0.5
    %v1231 = vmul.f32 %v1117, 0.5
    %v1232 = vmul.f32 %v1119, 0.5
    %v1233 = vmul.f32 %v1123, 0.5
    %v1234 = vmul.f32 %v1125, 0.5
    %v1235 = vmul.f32 %v1127, 0.5
    %v1236 = vmul.f32 %v1129, 0.5
    %v1237 = vmul.f32 %v1133, 0.5
    %v1238 = vmul.f32 %v1135, 0.5
    %v1239 = vmul.f32 %v1137, 0.5
    %v1240 = vmul.f32 %v1139, 0.5
    %v1241 = vmul.f32 %v1143, 0.5
    %v1242 = vmul.f32 %v1145, 0.5
    %v1243 = vmul.f32 %v1147, 0.5
    %v1244 = vmul.f32 %v1149, 0.5
    %v1245 = vmul.f32 %v1153, 0.5
    %v1246 = vmul.f32 %v1155, 0.5
    %v1247 = vmul.f32 %v1157, 0.5
    %v1248 = vmul.f32 %v1159, 0.5
    %v1249 = vmul.f32 %v1163, 0.5
    %v1250 = vmul.f32 %v1165, 0.5
    %v1251 = vmul.f32 %v1167, 0.5
    %v1252 = vmul.f32 %v1169, 0.5
    %v1253 = vmul.f32 %v1173, 0.5
    %v1254 = vmul.f32 %v1175, 0.5
    %v1255 = vmul.f32 %v1177, 0.5
    %v1256 = vmul.f32 %v1179, 0.5
    %v1257 = vmul.f32 %v1183, 0.5
    %v1258 = vmul.f32 %v1185, 0.5
    %v1259 = vmul.f32 %v1187, 0.5
    %v1260 = vmul.f32 %v1189, 0.5
    %v1261 = vmul.f32 %v1193, 0.5
    %v1262 = vmul.f32 %v1195, 0.5
    %v1263 = vmul.f32 %v1197, 0.5
    %v1264 = vmul.f32 %v1199, 0.5
    %v1265 = vmul.f32 %v1043, 0.70710677
    %v1266 = vmul.f32 %v1045, 0.70710677
    %v1267 = vmul.f32 %v1047, 0.70710677
    %v1268 = vmul.f32 %v1049, 0.70710677
    %v1269 = vmul.f32 %v1053, 0.70710677
    %v1270 = vmul.f32 %v1055, 0.70710677
    %v1271 = vmul.f32 %v1057, 0.70710677
    %v1272 = vmul.f32 %v1059, 0.70710677
    %v1273 = vmul.f32 %v1063, 0.70710677
    %v1274 = vmul.f32 %v1065, 0.70710677
    %v1275 = vmul.f32 %v1067, 0.70710677
    %v1276 = vmul.f32 %v1069, 0.70710677
    %v1277 = vmul.f32 %v1073, 0.70710677
    %v1278 = vmul.f32 %v1075, 0.70710677
    %v1279 = vmul.f32 %v1077, 0.70710677
    %v1280 = vmul.f32 %v1079, 0.70710677
    %v1281 = vmul.f32 %v1083, 0.70710677
    %v1282 = vmul.f32 %v1085, 0.70710677
    %v1283 = vmul.f32 %v1087, 0.70710677
    %v1284 = vmul.f32 %v1089, 0.70710677
    %v1285 = vmul.f32 %v1093, 0.70710677
    %v1286 = vmul.f32 %v1095, 0.70710677
    %v1287 = vmul.f32 %v1097, 0.70710677
    %v1288 = vmul.f32 %v1099, 0.70710677
    %v1289 = vmul.f32 %v1103, 0.70710677
    %v1290 = vmul.f32 %v1105, 0.70710677
    %v1291 = vmul.f32 %v1107, 0.70710677
    %v1292 = vmul.f32 %v1109, 0.70710677
    %v1293 = vmul.f32 %v1113, 0.70710677
    %v1294 = vmul.f32 %v1115, 0.70710677
    %v1295 = vmul.f32 %v1117, 0.70710677
    %v1296 = vmul.f32 %v1119, 0.70710677
    %v1297 = vmul.f32 %v1123, 0.70710677
    %v1298 = vmul.f32 %v1125, 0.70710677
    %v1299 = vmul.f32 %v1127, 0.70710677
    %v1300 = vmul.f32 %v1129, 0.70710677
    %v1301 = vmul.f32 %v1133, 0.70710677
    %v1302 = vmul.f32 %v1135, 0.70710677
    %v1303 = vmul.f32 %v1137, 0.70710677
    %v1304 = vmul.f32 %v1139, 0.70710677
    %v1305 = vmul.f32 %v1143, 0.70710677
    %v1306 = vmul.f32 %v1145, 0.70710677
    %v1307 = vmul.f32 %v1147, 0.70710677
    %v1308 = vmul.f32 %v1149, 0.70710677
    %v1309 = vmul.f32 %v1153, 0.70710677
    %v1310 = vmul.f32 %v1155, 0.70710677
    %v1311 = vmul.f32 %v1157, 0.70710677
    %v1312 = vmul.f32 %v1159, 0.70710677
    %v1313 = vmul.f32 %v1163, 0.70710677
    %v1314 = vmul.f32 %v1165, 0.70710677
    %v1315 = vmul.f32 %v1167, 0.70710677
    %v1316 = vmul.f32 %v1169, 0.70710677
    %v1317 = vmul.f32 %v1173, 0.70710677
    %v1318 = vmul.f32 %v1175, 0.70710677
    %v1319 = vmul.f32 %v1177, 0.70710677
    %v1320 = vmul.f32 %v1179, 0.70710677
    %v1321 = vmul.f32 %v1183, 0.70710677
    %v1322 = vmul.f32 %v1185, 0.70710677
    %v1323 = vmul.f32 %v1187, 0.70710677
    %v1324 = vmul.f32 %v1189, 0.70710677
    %v1325 = vmul.f32 %v1193, 0.70710677
    %v1326 = vmul.f32 %v1195, 0.70710677
    %v1327 = vmul.f32 %v1197, 0.70710677
    %v1328 = vmul.f32 %v1199, 0.70710677
    %v1329 = verf.f32.pop %v1265
    %v1330 = verf.f32.pop %v1266
    %v1331 = verf.f32.pop %v1267
    %v1332 = verf.f32.pop %v1268
    %v1333 = verf.f32.pop %v1269
    %v1334 = verf.f32.pop %v1270
    %v1335 = verf.f32.pop %v1271
    %v1336 = verf.f32.pop %v1272
    %v1337 = verf.f32.pop %v1273
    %v1338 = verf.f32.pop %v1274
    %v1339 = verf.f32.pop %v1275
    %v1340 = verf.f32.pop %v1276
    %v1341 = verf.f32.pop %v1277
    %v1342 = verf.f32.pop %v1278
    %v1343 = verf.f32.pop %v1279
    %v1344 = verf.f32.pop %v1280
    %v1345 = verf.f32.pop %v1281
    %v1346 = verf.f32.pop %v1282
    %v1347 = verf.f32.pop %v1283
    %v1348 = verf.f32.pop %v1284
    %v1349 = verf.f32.pop %v1285
    %v1350 = verf.f32.pop %v1286
    %v1351 = verf.f32.pop %v1287
    %v1352 = verf.f32.pop %v1288
    %v1353 = verf.f32.pop %v1289
    %v1354 = verf.f32.pop %v1290
    %v1355 = verf.f32.pop %v1291
    %v1356 = verf.f32.pop %v1292
    %v1357 = verf.f32.pop %v1293
    %v1358 = verf.f32.pop %v1294
    %v1359 = verf.f32.pop %v1295
    %v1360 = verf.f32.pop %v1296
    %v1361 = verf.f32.pop %v1297
    %v1362 = verf.f32.pop %v1298
    %v1363 = verf.f32.pop %v1299
    %v1364 = verf.f32.pop %v1300
    %v1365 = verf.f32.pop %v1301
    %v1366 = verf.f32.pop %v1302
    %v1367 = verf.f32.pop %v1303
    %v1368 = verf.f32.pop %v1304
    %v1369 = verf.f32.pop %v1305
    %v1370 = verf.f32.pop %v1306
    %v1371 = verf.f32.pop %v1307
    %v1372 = verf.f32.pop %v1308
    %v1373 = verf.f32.pop %v1309
    %v1374 = verf.f32.pop %v1310
    %v1375 = verf.f32.pop %v1311
    %v1376 = verf.f32.pop %v1312
    %v1377 = verf.f32.pop %v1313
    %v1378 = verf.f32.pop %v1314
    %v1379 = verf.f32.pop %v1315
    %v1380 = verf.f32.pop %v1316
    %v1381 = verf.f32.pop %v1317
    %v1382 = verf.f32.pop %v1318
    %v1383 = verf.f32.pop %v1319
    %v1384 = verf.f32.pop %v1320
    %v1385 = verf.f32.pop %v1321
    %v1386 = verf.f32.pop %v1322
    %v1387 = verf.f32.pop %v1323
    %v1388 = verf.f32.pop %v1324
    %v1389 = verf.f32.pop %v1325
    %v1390 = verf.f32.pop %v1326
    %v1391 = verf.f32.pop %v1327
    %v1392 = verf.f32.pop %v1328
    %v1393 = vadd.f32 %v1329, 1.0
    %v1394 = vadd.f32 %v1330, 1.0
    %v1395 = vadd.f32 %v1331, 1.0
    %v1396 = vadd.f32 %v1332, 1.0
    %v1397 = vadd.f32 %v1333, 1.0
    %v1398 = vadd.f32 %v1334, 1.0
    %v1399 = vadd.f32 %v1335, 1.0
    %v1400 = vadd.f32 %v1336, 1.0
    %v1401 = vadd.f32 %v1337, 1.0
    %v1402 = vadd.f32 %v1338, 1.0
    %v1403 = vadd.f32 %v1339, 1.0
    %v1404 = vadd.f32 %v1340, 1.0
    %v1405 = vadd.f32 %v1341, 1.0
    %v1406 = vadd.f32 %v1342, 1.0
    %v1407 = vadd.f32 %v1343, 1.0
    %v1408 = vadd.f32 %v1344, 1.0
    %v1409 = vadd.f32 %v1345, 1.0
    %v1410 = vadd.f32 %v1346, 1.0
    %v1411 = vadd.f32 %v1347, 1.0
    %v1412 = vadd.f32 %v1348, 1.0
    %v1413 = vadd.f32 %v1349, 1.0
    %v1414 = vadd.f32 %v1350, 1.0
    %v1415 = vadd.f32 %v1351, 1.0
    %v1416 = vadd.f32 %v1352, 1.0
    %v1417 = vadd.f32 %v1353, 1.0
    %v1418 = vadd.f32 %v1354, 1.0
    %v1419 = vadd.f32 %v1355, 1.0
    %v1420 = vadd.f32 %v1356, 1.0
    %v1421 = vadd.f32 %v1357, 1.0
    %v1422 = vadd.f32 %v1358, 1.0
    %v1423 = vadd.f32 %v1359, 1.0
    %v1424 = vadd.f32 %v1360, 1.0
    %v1425 = vadd.f32 %v1361, 1.0
    %v1426 = vadd.f32 %v1362, 1.0
    %v1427 = vadd.f32 %v1363, 1.0
    %v1428 = vadd.f32 %v1364, 1.0
    %v1429 = vadd.f32 %v1365, 1.0
    %v1430 = vadd.f32 %v1366, 1.0
    %v1431 = vadd.f32 %v1367, 1.0
    %v1432 = vadd.f32 %v1368, 1.0
    %v1433 = vadd.f32 %v1369, 1.0
    %v1434 = vadd.f32 %v1370, 1.0
    %v1435 = vadd.f32 %v1371, 1.0
    %v1436 = vadd.f32 %v1372, 1.0
    %v1437 = vadd.f32 %v1373, 1.0
    %v1438 = vadd.f32 %v1374, 1.0
    %v1439 = vadd.f32 %v1375, 1.0
    %v1440 = vadd.f32 %v1376, 1.0
    %v1441 = vadd.f32 %v1377, 1.0
    %v1442 = vadd.f32 %v1378, 1.0
    %v1443 = vadd.f32 %v1379, 1.0
    %v1444 = vadd.f32 %v1380, 1.0
    %v1445 = vadd.f32 %v1381, 1.0
    %v1446 = vadd.f32 %v1382, 1.0
    %v1447 = vadd.f32 %v1383, 1.0
    %v1448 = vadd.f32 %v1384, 1.0
    %v1449 = vadd.f32 %v1385, 1.0
    %v1450 = vadd.f32 %v1386, 1.0
    %v1451 = vadd.f32 %v1387, 1.0
    %v1452 = vadd.f32 %v1388, 1.0
    %v1453 = vadd.f32 %v1389, 1.0
    %v1454 = vadd.f32 %v1390, 1.0
    %v1455 = vadd.f32 %v1391, 1.0
    %v1456 = vadd.f32 %v1392, 1.0
    %v1457 = vmul.f32 %v1201, %v1393
    %v1458 = vmul.f32 %v1202, %v1394
    %v1459 = vmul.f32 %v1203, %v1395
    %v1460 = vmul.f32 %v1204, %v1396
    %v1461 = vmul.f32 %v1205, %v1397
    %v1462 = vmul.f32 %v1206, %v1398
    %v1463 = vmul.f32 %v1207, %v1399
    %v1464 = vmul.f32 %v1208, %v1400
    %v1465 = vmul.f32 %v1209, %v1401
    %v1466 = vmul.f32 %v1210, %v1402
    %v1467 = vmul.f32 %v1211, %v1403
    %v1468 = vmul.f32 %v1212, %v1404
    %v1469 = vmul.f32 %v1213, %v1405
    %v1470 = vmul.f32 %v1214, %v1406
    %v1471 = vmul.f32 %v1215, %v1407
    %v1472 = vmul.f32 %v1216, %v1408
    %v1473 = vmul.f32 %v1217, %v1409
    %v1474 = vmul.f32 %v1218, %v1410
    %v1475 = vmul.f32 %v1219, %v1411
    %v1476 = vmul.f32 %v1220, %v1412
    %v1477 = vmul.f32 %v1221, %v1413
    %v1478 = vmul.f32 %v1222, %v1414
    %v1479 = vmul.f32 %v1223, %v1415
    %v1480 = vmul.f32 %v1224, %v1416
    %v1481 = vmul.f32 %v1225, %v1417
    %v1482 = vmul.f32 %v1226, %v1418
    %v1483 = vmul.f32 %v1227, %v1419
    %v1484 = vmul.f32 %v1228, %v1420
    %v1485 = vmul.f32 %v1229, %v1421
    %v1486 = vmul.f32 %v1230, %v1422
    %v1487 = vmul.f32 %v1231, %v1423
    %v1488 = vmul.f32 %v1232, %v1424
    %v1489 = vmul.f32 %v1233, %v1425
    %v1490 = vmul.f32 %v1234, %v1426
    %v1491 = vmul.f32 %v1235, %v1427
    %v1492 = vmul.f32 %v1236, %v1428
    %v1493 = vmul.f32 %v1237, %v1429
    %v1494 = vmul.f32 %v1238, %v1430
    %v1495 = vmul.f32 %v1239, %v1431
    %v1496 = vmul.f32 %v1240, %v1432
    %v1497 = vmul.f32 %v1241, %v1433
    %v1498 = vmul.f32 %v1242, %v1434
    %v1499 = vmul.f32 %v1243, %v1435
    %v1500 = vmul.f32 %v1244, %v1436
    %v1501 = vmul.f32 %v1245, %v1437
    %v1502 = vmul.f32 %v1246, %v1438
    %v1503 = vmul.f32 %v1247, %v1439
    %v1504 = vmul.f32 %v1248, %v1440
    %v1505 = vmul.f32 %v1249, %v1441
    %v1506 = vmul.f32 %v1250, %v1442
    %v1507 = vmul.f32 %v1251, %v1443
    %v1508 = vmul.f32 %v1252, %v1444
    %v1509 = vmul.f32 %v1253, %v1445
    %v1510 = vmul.f32 %v1254, %v1446
    %v1511 = vmul.f32 %v1255, %v1447
    %v1512 = vmul.f32 %v1256, %v1448
    %v1513 = vmul.f32 %v1257, %v1449
    %v1514 = vmul.f32 %v1258, %v1450
    %v1515 = vmul.f32 %v1259, %v1451
    %v1516 = vmul.f32 %v1260, %v1452
    %v1517 = vmul.f32 %v1261, %v1453
    %v1518 = vmul.f32 %v1262, %v1454
    %v1519 = vmul.f32 %v1263, %v1455
    %v1520 = vmul.f32 %v1264, %v1456
    %v1521 = vpack.c.bf16 %v1459, %v1457
    %v1522 = vpack.c.bf16 %v1460, %v1458
    %v1523 = vpack.c.bf16 %v1463, %v1461
    %v1524 = vpack.c.bf16 %v1464, %v1462
    %v1525 = vpack.c.bf16 %v1467, %v1465
    %v1526 = vpack.c.bf16 %v1468, %v1466
    %v1527 = vpack.c.bf16 %v1471, %v1469
    %v1528 = vpack.c.bf16 %v1472, %v1470
    %v1529 = vpack.c.bf16 %v1475, %v1473
    %v1530 = vpack.c.bf16 %v1476, %v1474
    %v1531 = vpack.c.bf16 %v1479, %v1477
    %v1532 = vpack.c.bf16 %v1480, %v1478
    %v1533 = vpack.c.bf16 %v1483, %v1481
    %v1534 = vpack.c.bf16 %v1484, %v1482
    %v1535 = vpack.c.bf16 %v1487, %v1485
    %v1536 = vpack.c.bf16 %v1488, %v1486
    %v1537 = vpack.c.bf16 %v1491, %v1489
    %v1538 = vpack.c.bf16 %v1492, %v1490
    %v1539 = vpack.c.bf16 %v1495, %v1493
    %v1540 = vpack.c.bf16 %v1496, %v1494
    %v1541 = vpack.c.bf16 %v1499, %v1497
    %v1542 = vpack.c.bf16 %v1500, %v1498
    %v1543 = vpack.c.bf16 %v1503, %v1501
    %v1544 = vpack.c.bf16 %v1504, %v1502
    %v1545 = vpack.c.bf16 %v1507, %v1505
    %v1546 = vpack.c.bf16 %v1508, %v1506
    %v1547 = vpack.c.bf16 %v1511, %v1509
    %v1548 = vpack.c.bf16 %v1512, %v1510
    %v1549 = vpack.c.bf16 %v1515, %v1513
    %v1550 = vpack.c.bf16 %v1516, %v1514
    %v1551 = vpack.c.bf16 %v1519, %v1517
    %v1552 = vpack.c.bf16 %v1520, %v1518
    %v1553 = vld [vmem:[#allocation8] sm:$0xf]
    %v1554 = vld [vmem:[#allocation8 + $0x4] sm:$0xf]
    %v1555 = vld [vmem:[#allocation8 + $0x8] sm:$0xf]
    %v1556 = vld [vmem:[#allocation8 + $0xc] sm:$0xf]
    %v1557 = vld [vmem:[#allocation8 + $0x10] sm:$0xf]
    %v1558 = vld [vmem:[#allocation8 + $0x14] sm:$0xf]
    %v1559 = vld [vmem:[#allocation8 + $0x18] sm:$0xf]
    %v1560 = vld [vmem:[#allocation8 + $0x1c] sm:$0xf]
    %v1561 = vld [vmem:[#allocation8 + $0x20] sm:$0xf]
    %v1562 = vld [vmem:[#allocation8 + $0x24] sm:$0xf]
    %v1563 = vld [vmem:[#allocation8 + $0x28] sm:$0xf]
    %v1564 = vld [vmem:[#allocation8 + $0x2c] sm:$0xf]
    %v1565 = vld [vmem:[#allocation8 + $0x30] sm:$0xf]
    %v1566 = vld [vmem:[#allocation8 + $0x34] sm:$0xf]
    %v1567 = vld [vmem:[#allocation8 + $0x38] sm:$0xf]
    %v1568 = vld [vmem:[#allocation8 + $0x3c] sm:$0xf]
    %v1569 = vld [vmem:[#allocation8 + $0x40] sm:$0xf]
    %v1570 = vld [vmem:[#allocation8 + $0x44] sm:$0xf]
    %v1571 = vld [vmem:[#allocation8 + $0x48] sm:$0xf]
    %v1572 = vld [vmem:[#allocation8 + $0x4c] sm:$0xf]
    %v1573 = vld [vmem:[#allocation8 + $0x50] sm:$0xf]
    %v1574 = vld [vmem:[#allocation8 + $0x54] sm:$0xf]
    %v1575 = vld [vmem:[#allocation8 + $0x58] sm:$0xf]
    %v1576 = vld [vmem:[#allocation8 + $0x5c] sm:$0xf]
    %v1577 = vld [vmem:[#allocation8 + $0x60] sm:$0xf]
    %v1578 = vld [vmem:[#allocation8 + $0x64] sm:$0xf]
    %v1579 = vld [vmem:[#allocation8 + $0x68] sm:$0xf]
    %v1580 = vld [vmem:[#allocation8 + $0x6c] sm:$0xf]
    %v1581 = vld [vmem:[#allocation8 + $0x70] sm:$0xf]
    %v1582 = vld [vmem:[#allocation8 + $0x74] sm:$0xf]
    %v1583 = vld [vmem:[#allocation8 + $0x78] sm:$0xf]
    %v1584 = vld [vmem:[#allocation8 + $0x7c] sm:$0xf]
    %v1585 = vld [vmem:[%s6] sm:$0x1]
    %v1587 = vlaneseq
    %v1588 = vshrl.u32 %v1587, 7
    %v1589 = vsub.s32 0, %v1588
    %v1590 = vrot.slane %v1585, %v1589
    %v1624 = vunpack.c.l.b16 %v1553
    %v1625 = vunpack.c.l.b16 %v1554
    %v1626 = vunpack.c.l.b16 %v1555
    %v1627 = vunpack.c.l.b16 %v1556
    %v1628 = vunpack.c.l.b16 %v1557
    %v1629 = vunpack.c.l.b16 %v1558
    %v1630 = vunpack.c.l.b16 %v1559
    %v1631 = vunpack.c.l.b16 %v1560
    %v1632 = vunpack.c.l.b16 %v1561
    %v1633 = vunpack.c.l.b16 %v1562
    %v1634 = vunpack.c.l.b16 %v1563
    %v1635 = vunpack.c.l.b16 %v1564
    %v1636 = vunpack.c.l.b16 %v1565
    %v1637 = vunpack.c.l.b16 %v1566
    %v1638 = vunpack.c.l.b16 %v1567
    %v1639 = vunpack.c.l.b16 %v1568
    %v1640 = vunpack.c.l.b16 %v1569
    %v1641 = vunpack.c.l.b16 %v1570
    %v1642 = vunpack.c.l.b16 %v1571
    %v1643 = vunpack.c.l.b16 %v1572
    %v1644 = vunpack.c.l.b16 %v1573
    %v1645 = vunpack.c.l.b16 %v1574
    %v1646 = vunpack.c.l.b16 %v1575
    %v1647 = vunpack.c.l.b16 %v1576
    %v1648 = vunpack.c.l.b16 %v1577
    %v1649 = vunpack.c.l.b16 %v1578
    %v1650 = vunpack.c.l.b16 %v1579
    %v1651 = vunpack.c.l.b16 %v1580
    %v1652 = vunpack.c.l.b16 %v1581
    %v1653 = vunpack.c.l.b16 %v1582
    %v1654 = vunpack.c.l.b16 %v1583
    %v1655 = vunpack.c.l.b16 %v1584
    %v1656 = vpack.c.b16 %v1625, %v1624
    %v1657 = vpack.c.b16 %v1627, %v1626
    %v1658 = vpack.c.b16 %v1629, %v1628
    %v1659 = vpack.c.b16 %v1631, %v1630
    %v1660 = vpack.c.b16 %v1633, %v1632
    %v1661 = vpack.c.b16 %v1635, %v1634
    %v1662 = vpack.c.b16 %v1637, %v1636
    %v1663 = vpack.c.b16 %v1639, %v1638
    %v1664 = vpack.c.b16 %v1641, %v1640
    %v1665 = vpack.c.b16 %v1643, %v1642
    %v1666 = vpack.c.b16 %v1645, %v1644
    %v1667 = vpack.c.b16 %v1647, %v1646
    %v1668 = vpack.c.b16 %v1649, %v1648
    %v1669 = vpack.c.b16 %v1651, %v1650
    %v1670 = vpack.c.b16 %v1653, %v1652
    %v1671 = vpack.c.b16 %v1655, %v1654
    %1688 = vmatprep.subr.bf16.mxu0 0
    %1689 = vmatpush1.bf16.msra.mxu0 %v1663
    %1690 = vmatprep.subr.bf16.mxu0 0
    %1691 = vmatpush1.bf16.msra.mxu0 %v1662
    %1692 = vmatprep.subr.bf16.mxu0 0
    %1693 = vmatpush1.bf16.msra.mxu0 %v1661
    %1694 = vmatprep.subr.bf16.mxu0 0
    %1695 = vmatpush1.bf16.msra.mxu0 %v1660
    %1696 = vmatprep.subr.bf16.mxu0 0
    %1697 = vmatpush1.bf16.msra.mxu0 %v1659
    %1698 = vmatprep.subr.bf16.mxu0 0
    %1699 = vmatpush1.bf16.msra.mxu0 %v1658
    %1700 = vmatprep.subr.bf16.mxu0 0
    %1701 = vmatpush1.bf16.msra.mxu0 %v1657
    %1702 = vmatprep.subr.bf16.mxu0 0
    %1703 = vmatpush1.bf16.msra.mxu0 %v1656
    %1704 = vmatprep.subr.bf16.mxu0 0
    %1705 = vmatpush2.bf16.msra.mxu0 %v1671
    %1706 = vmatprep.subr.bf16.mxu0 0
    %1707 = vmatpush2.bf16.msra.mxu0 %v1670
    %1708 = vmatprep.subr.bf16.mxu0 0
    %1709 = vmatpush2.bf16.msra.mxu0 %v1669
    %1710 = vmatprep.subr.bf16.mxu0 0
    %1711 = vmatpush2.bf16.msra.mxu0 %v1668
    %1712 = vmatprep.subr.bf16.mxu0 0
    %1713 = vmatpush2.bf16.msra.mxu0 %v1667
    %1714 = vmatprep.subr.bf16.mxu0 0
    %1715 = vmatpush2.bf16.msra.mxu0 %v1666
    %1716 = vmatprep.subr.bf16.mxu0 0
    %1717 = vmatpush2.bf16.msra.mxu0 %v1665
    %1718 = vmatprep.subr.bf16.mxu0 0
    %1719 = vmatpush2.bf16.msra.mxu0 %v1664
    %1720 = vmatprep.mubr.bf16.mxu0 %v1522
    %1721 = vmatmul.mubr.bf16.gmra.mxu0 %v1521
    %v1722 = vpop.f32.mrf.mxu0
    %v1723 = vadd.f32 %v1590, %v1722
    %v1724 = vpop.f32.mrf.mxu0
    %v1725 = vpop.f32.mrf.mxu0
    %v1726 = vadd.f32 %v1590, %v1725
    %v1727 = vpop.f32.mrf.mxu0
    %1728 = vmatprep.mubr.bf16.mxu0 %v1524
    %1729 = vmatmul.mubr.bf16.gmra.mxu0 %v1523
    %v1730 = vpop.f32.mrf.mxu0
    %v1731 = vadd.f32 %v1590, %v1730
    %v1732 = vpop.f32.mrf.mxu0
    %v1733 = vpop.f32.mrf.mxu0
    %v1734 = vadd.f32 %v1590, %v1733
    %v1735 = vpop.f32.mrf.mxu0
    %1736 = vmatprep.mubr.bf16.mxu0 %v1526
    %1737 = vmatmul.mubr.bf16.gmra.mxu0 %v1525
    %v1738 = vpop.f32.mrf.mxu0
    %v1739 = vadd.f32 %v1590, %v1738
    %v1740 = vpop.f32.mrf.mxu0
    %v1741 = vpop.f32.mrf.mxu0
    %v1742 = vadd.f32 %v1590, %v1741
    %v1743 = vpop.f32.mrf.mxu0
    %1744 = vmatprep.mubr.bf16.mxu0 %v1528
    %1745 = vmatmul.mubr.bf16.gmra.mxu0 %v1527
    %v1746 = vpop.f32.mrf.mxu0
    %v1747 = vadd.f32 %v1590, %v1746
    %v1748 = vpop.f32.mrf.mxu0
    %v1749 = vpop.f32.mrf.mxu0
    %v1750 = vadd.f32 %v1590, %v1749
    %v1751 = vpop.f32.mrf.mxu0
    %1752 = vmatprep.mubr.bf16.mxu0 %v1530
    %1753 = vmatmul.mubr.bf16.gmra.mxu0 %v1529
    %v1754 = vpop.f32.mrf.mxu0
    %v1755 = vadd.f32 %v1590, %v1754
    %v1756 = vpop.f32.mrf.mxu0
    %v1757 = vpop.f32.mrf.mxu0
    %v1758 = vadd.f32 %v1590, %v1757
    %v1759 = vpop.f32.mrf.mxu0
    %1760 = vmatprep.mubr.bf16.mxu0 %v1532
    %1761 = vmatmul.mubr.bf16.gmra.mxu0 %v1531
    %v1762 = vpop.f32.mrf.mxu0
    %v1763 = vadd.f32 %v1590, %v1762
    %v1764 = vpop.f32.mrf.mxu0
    %v1765 = vpop.f32.mrf.mxu0
    %v1766 = vadd.f32 %v1590, %v1765
    %v1767 = vpop.f32.mrf.mxu0
    %1768 = vmatprep.mubr.bf16.mxu0 %v1534
    %1769 = vmatmul.mubr.bf16.gmra.mxu0 %v1533
    %v1770 = vpop.f32.mrf.mxu0
    %v1771 = vadd.f32 %v1590, %v1770
    %v1772 = vpop.f32.mrf.mxu0
    %v1773 = vpop.f32.mrf.mxu0
    %v1774 = vadd.f32 %v1590, %v1773
    %v1775 = vpop.f32.mrf.mxu0
    %1776 = vmatprep.mubr.bf16.mxu0 %v1536
    %1777 = vmatmul.mubr.bf16.gmra.mxu0 %v1535
    %v1778 = vpop.f32.mrf.mxu0
    %v1779 = vadd.f32 %v1590, %v1778
    %v1780 = vpop.f32.mrf.mxu0
    %v1781 = vpop.f32.mrf.mxu0
    %v1782 = vadd.f32 %v1590, %v1781
    %v1783 = vpop.f32.mrf.mxu0
    %1784 = vmatprep.mubr.bf16.mxu0 %v1538
    %1785 = vmatmul.mubr.bf16.gmra.mxu0 %v1537
    %v1786 = vpop.f32.mrf.mxu0
    %v1787 = vadd.f32 %v1590, %v1786
    %v1788 = vpop.f32.mrf.mxu0
    %v1789 = vpop.f32.mrf.mxu0
    %v1790 = vadd.f32 %v1590, %v1789
    %v1791 = vpop.f32.mrf.mxu0
    %1792 = vmatprep.mubr.bf16.mxu0 %v1540
    %1793 = vmatmul.mubr.bf16.gmra.mxu0 %v1539
    %v1794 = vpop.f32.mrf.mxu0
    %v1795 = vadd.f32 %v1590, %v1794
    %v1796 = vpop.f32.mrf.mxu0
    %v1797 = vpop.f32.mrf.mxu0
    %v1798 = vadd.f32 %v1590, %v1797
    %v1799 = vpop.f32.mrf.mxu0
    %1800 = vmatprep.mubr.bf16.mxu0 %v1542
    %1801 = vmatmul.mubr.bf16.gmra.mxu0 %v1541
    %v1802 = vpop.f32.mrf.mxu0
    %v1803 = vadd.f32 %v1590, %v1802
    %v1804 = vpop.f32.mrf.mxu0
    %v1805 = vpop.f32.mrf.mxu0
    %v1806 = vadd.f32 %v1590, %v1805
    %v1807 = vpop.f32.mrf.mxu0
    %1808 = vmatprep.mubr.bf16.mxu0 %v1544
    %1809 = vmatmul.mubr.bf16.gmra.mxu0 %v1543
    %v1810 = vpop.f32.mrf.mxu0
    %v1811 = vadd.f32 %v1590, %v1810
    %v1812 = vpop.f32.mrf.mxu0
    %v1813 = vpop.f32.mrf.mxu0
    %v1814 = vadd.f32 %v1590, %v1813
    %v1815 = vpop.f32.mrf.mxu0
    %1816 = vmatprep.mubr.bf16.mxu0 %v1546
    %1817 = vmatmul.mubr.bf16.gmra.mxu0 %v1545
    %v1818 = vpop.f32.mrf.mxu0
    %v1819 = vadd.f32 %v1590, %v1818
    %v1820 = vpop.f32.mrf.mxu0
    %v1821 = vpop.f32.mrf.mxu0
    %v1822 = vadd.f32 %v1590, %v1821
    %v1823 = vpop.f32.mrf.mxu0
    %1824 = vmatprep.mubr.bf16.mxu0 %v1548
    %1825 = vmatmul.mubr.bf16.gmra.mxu0 %v1547
    %v1826 = vpop.f32.mrf.mxu0
    %v1827 = vadd.f32 %v1590, %v1826
    %v1828 = vpop.f32.mrf.mxu0
    %v1829 = vpop.f32.mrf.mxu0
    %v1830 = vadd.f32 %v1590, %v1829
    %v1831 = vpop.f32.mrf.mxu0
    %1832 = vmatprep.mubr.bf16.mxu0 %v1550
    %1833 = vmatmul.mubr.bf16.gmra.mxu0 %v1549
    %v1834 = vpop.f32.mrf.mxu0
    %v1835 = vadd.f32 %v1590, %v1834
    %v1836 = vpop.f32.mrf.mxu0
    %v1837 = vpop.f32.mrf.mxu0
    %v1838 = vadd.f32 %v1590, %v1837
    %v1839 = vpop.f32.mrf.mxu0
    %1840 = vmatprep.mubr.bf16.mxu0 %v1552
    %1841 = vmatmul.mubr.bf16.gmra.mxu0 %v1551
    %v1842 = vpop.f32.mrf.mxu0
    %v1843 = vadd.f32 %v1590, %v1842
    %v1844 = vpop.f32.mrf.mxu0
    %v1845 = vpop.f32.mrf.mxu0
    %v1846 = vadd.f32 %v1590, %v1845
    %v1847 = vpop.f32.mrf.mxu0
    %1848 = vdwg.mxu0
    %1849 = vst [vmem:[#allocation11] sm:$0xff] %v1723
    %1850 = vst [vmem:[#allocation11 + $0x8] sm:$0xff] %v1726
    %1851 = vst [vmem:[#allocation11 + $0x10] sm:$0xff] %v1731
    %1852 = vst [vmem:[#allocation11 + $0x18] sm:$0xff] %v1734
    %1853 = vst [vmem:[#allocation11 + $0x20] sm:$0xff] %v1739
    %1854 = vst [vmem:[#allocation11 + $0x28] sm:$0xff] %v1742
    %1855 = vst [vmem:[#allocation11 + $0x30] sm:$0xff] %v1747
    %1856 = vst [vmem:[#allocation11 + $0x38] sm:$0xff] %v1750
    %1857 = vst [vmem:[#allocation11 + $0x40] sm:$0xff] %v1755
    %1858 = vst [vmem:[#allocation11 + $0x48] sm:$0xff] %v1758
    %1859 = vst [vmem:[#allocation11 + $0x50] sm:$0xff] %v1763
    %1860 = vst [vmem:[#allocation11 + $0x58] sm:$0xff] %v1766
    %1861 = vst [vmem:[#allocation11 + $0x60] sm:$0xff] %v1771
    %1862 = vst [vmem:[#allocation11 + $0x68] sm:$0xff] %v1774
    %1863 = vst [vmem:[#allocation11 + $0x70] sm:$0xff] %v1779
    %1864 = vst [vmem:[#allocation11 + $0x78] sm:$0xff] %v1782
    %1865 = vst [vmem:[#allocation11 + $0x80] sm:$0xff] %v1787
    %1866 = vst [vmem:[#allocation11 + $0x88] sm:$0xff] %v1790
    %1867 = vst [vmem:[#allocation11 + $0x90] sm:$0xff] %v1795
    %1868 = vst [vmem:[#allocation11 + $0x98] sm:$0xff] %v1798
    %1869 = vst [vmem:[#allocation11 + $0xa0] sm:$0xff] %v1803
    %1870 = vst [vmem:[#allocation11 + $0xa8] sm:$0xff] %v1806
    %1871 = vst [vmem:[#allocation11 + $0xb0] sm:$0xff] %v1811
    %1872 = vst [vmem:[#allocation11 + $0xb8] sm:$0xff] %v1814
    %1873 = vst [vmem:[#allocation11 + $0xc0] sm:$0xff] %v1819
    %1874 = vst [vmem:[#allocation11 + $0xc8] sm:$0xff] %v1822
    %1875 = vst [vmem:[#allocation11 + $0xd0] sm:$0xff] %v1827
    %1876 = vst [vmem:[#allocation11 + $0xd8] sm:$0xff] %v1830
    %1877 = vst [vmem:[#allocation11 + $0xe0] sm:$0xff] %v1835
    %1878 = vst [vmem:[#allocation11 + $0xe8] sm:$0xff] %v1838
    %1879 = vst [vmem:[#allocation11 + $0xf0] sm:$0xff] %v1843
    %1880 = vst [vmem:[#allocation11 + $0xf8] sm:$0xff] %v1846
    %v1881 = vmul.f32 %v103, %v103
    %v1882 = vmul.f32 %v104, %v104
    %v1883 = vmul.f32 %v105, %v105
    %v1884 = vmul.f32 %v106, %v106
    %v1885 = vmul.f32 %v107, %v107
    %v1886 = vmul.f32 %v108, %v108
    %v1887 = vmul.f32 %v109, %v109
    %v1888 = vmul.f32 %v110, %v110
    %v1889 = vmul.f32 %v111, %v111
    %v1890 = vmul.f32 %v112, %v112
    %v1891 = vmul.f32 %v113, %v113
    %v1892 = vmul.f32 %v114, %v114
    %v1893 = vmul.f32 %v115, %v115
    %v1894 = vmul.f32 %v116, %v116
    %v1895 = vmul.f32 %v117, %v117
    %v1896 = vmul.f32 %v118, %v118
    %v1897 = vmul.f32 %v119, %v119
    %v1898 = vmul.f32 %v120, %v120
    %v1899 = vmul.f32 %v121, %v121
    %v1900 = vmul.f32 %v122, %v122
    %v1901 = vmul.f32 %v123, %v123
    %v1902 = vmul.f32 %v124, %v124
    %v1903 = vmul.f32 %v125, %v125
    %v1904 = vmul.f32 %v126, %v126
    %v1905 = vmul.f32 %v127, %v127
    %v1906 = vmul.f32 %v128, %v128
    %v1907 = vmul.f32 %v129, %v129
    %v1908 = vmul.f32 %v130, %v130
    %v1909 = vmul.f32 %v131, %v131
    %v1910 = vmul.f32 %v132, %v132
    %v1911 = vmul.f32 %v133, %v133
    %v1912 = vmul.f32 %v134, %v134
    %1913 = vadd.xlane.f32.xlu0 %v1881
    %v1914 = vpop.xlane.xlu0 %1913
    %1915 = vadd.xlane.f32.xlu0 %v1882
    %v1916 = vpop.xlane.xlu0 %1915
    %1917 = vadd.xlane.f32.xlu0 %v1883
    %v1918 = vpop.xlane.xlu0 %1917
    %1919 = vadd.xlane.f32.xlu0 %v1884
    %v1920 = vpop.xlane.xlu0 %1919
    %1921 = vadd.xlane.f32.xlu0 %v1885
    %v1922 = vpop.xlane.xlu0 %1921
    %1923 = vadd.xlane.f32.xlu0 %v1886
    %v1924 = vpop.xlane.xlu0 %1923
    %1925 = vadd.xlane.f32.xlu0 %v1887
    %v1926 = vpop.xlane.xlu0 %1925
    %1927 = vadd.xlane.f32.xlu0 %v1888
    %v1928 = vpop.xlane.xlu0 %1927
    %1929 = vadd.xlane.f32.xlu0 %v1889
    %v1930 = vpop.xlane.xlu0 %1929
    %1931 = vadd.xlane.f32.xlu0 %v1890
    %v1932 = vpop.xlane.xlu0 %1931
    %1933 = vadd.xlane.f32.xlu0 %v1891
    %v1934 = vpop.xlane.xlu0 %1933
    %1935 = vadd.xlane.f32.xlu0 %v1892
    %v1936 = vpop.xlane.xlu0 %1935
    %1937 = vadd.xlane.f32.xlu0 %v1893
    %v1938 = vpop.xlane.xlu0 %1937
    %1939 = vadd.xlane.f32.xlu0 %v1894
    %v1940 = vpop.xlane.xlu0 %1939
    %1941 = vadd.xlane.f32.xlu0 %v1895
    %v1942 = vpop.xlane.xlu0 %1941
    %1943 = vadd.xlane.f32.xlu0 %v1896
    %v1944 = vpop.xlane.xlu0 %1943
    %1945 = vadd.xlane.f32.xlu0 %v1897
    %v1946 = vpop.xlane.xlu0 %1945
    %1947 = vadd.xlane.f32.xlu0 %v1898
    %v1948 = vpop.xlane.xlu0 %1947
    %1949 = vadd.xlane.f32.xlu0 %v1899
    %v1950 = vpop.xlane.xlu0 %1949
    %1951 = vadd.xlane.f32.xlu0 %v1900
    %v1952 = vpop.xlane.xlu0 %1951
    %1953 = vadd.xlane.f32.xlu0 %v1901
    %v1954 = vpop.xlane.xlu0 %1953
    %1955 = vadd.xlane.f32.xlu0 %v1902
    %v1956 = vpop.xlane.xlu0 %1955
    %1957 = vadd.xlane.f32.xlu0 %v1903
    %v1958 = vpop.xlane.xlu0 %1957
    %1959 = vadd.xlane.f32.xlu0 %v1904
    %v1960 = vpop.xlane.xlu0 %1959
    %1961 = vadd.xlane.f32.xlu0 %v1905
    %v1962 = vpop.xlane.xlu0 %1961
    %1963 = vadd.xlane.f32.xlu0 %v1906
    %v1964 = vpop.xlane.xlu0 %1963
    %1965 = vadd.xlane.f32.xlu0 %v1907
    %v1966 = vpop.xlane.xlu0 %1965
    %1967 = vadd.xlane.f32.xlu0 %v1908
    %v1968 = vpop.xlane.xlu0 %1967
    %1969 = vadd.xlane.f32.xlu0 %v1909
    %v1970 = vpop.xlane.xlu0 %1969
    %1971 = vadd.xlane.f32.xlu0 %v1910
    %v1972 = vpop.xlane.xlu0 %1971
    %1973 = vadd.xlane.f32.xlu0 %v1911
    %v1974 = vpop.xlane.xlu0 %1973
    %1975 = vadd.xlane.f32.xlu0 %v1912
    %v1976 = vpop.xlane.xlu0 %1975
    %v1977 = vmax.f32 %v1914, 1e-24
    %v1978 = vmax.f32 %v1916, 1e-24
    %v1979 = vmax.f32 %v1918, 1e-24
    %v1980 = vmax.f32 %v1920, 1e-24
    %v1981 = vmax.f32 %v1922, 1e-24
    %v1982 = vmax.f32 %v1924, 1e-24
    %v1983 = vmax.f32 %v1926, 1e-24
    %v1984 = vmax.f32 %v1928, 1e-24
    %v1985 = vmax.f32 %v1930, 1e-24
    %v1986 = vmax.f32 %v1932, 1e-24
    %v1987 = vmax.f32 %v1934, 1e-24
    %v1988 = vmax.f32 %v1936, 1e-24
    %v1989 = vmax.f32 %v1938, 1e-24
    %v1990 = vmax.f32 %v1940, 1e-24
    %v1991 = vmax.f32 %v1942, 1e-24
    %v1992 = vmax.f32 %v1944, 1e-24
    %v1993 = vmax.f32 %v1946, 1e-24
    %v1994 = vmax.f32 %v1948, 1e-24
    %v1995 = vmax.f32 %v1950, 1e-24
    %v1996 = vmax.f32 %v1952, 1e-24
    %v1997 = vmax.f32 %v1954, 1e-24
    %v1998 = vmax.f32 %v1956, 1e-24
    %v1999 = vmax.f32 %v1958, 1e-24
    %v2000 = vmax.f32 %v1960, 1e-24
    %v2001 = vmax.f32 %v1962, 1e-24
    %v2002 = vmax.f32 %v1964, 1e-24
    %v2003 = vmax.f32 %v1966, 1e-24
    %v2004 = vmax.f32 %v1968, 1e-24
    %v2005 = vmax.f32 %v1970, 1e-24
    %v2006 = vmax.f32 %v1972, 1e-24
    %v2007 = vmax.f32 %v1974, 1e-24
    %v2008 = vmax.f32 %v1976, 1e-24
    %v2009 = vrsqrt.pop %v1977
    %v2010 = vrsqrt.pop %v1978
    %v2011 = vrsqrt.pop %v1979
    %v2012 = vrsqrt.pop %v1980
    %v2013 = vrsqrt.pop %v1981
    %v2014 = vrsqrt.pop %v1982
    %v2015 = vrsqrt.pop %v1983
    %v2016 = vrsqrt.pop %v1984
    %v2017 = vrsqrt.pop %v1985
    %v2018 = vrsqrt.pop %v1986
    %v2019 = vrsqrt.pop %v1987
    %v2020 = vrsqrt.pop %v1988
    %v2021 = vrsqrt.pop %v1989
    %v2022 = vrsqrt.pop %v1990
    %v2023 = vrsqrt.pop %v1991
    %v2024 = vrsqrt.pop %v1992
    %v2025 = vrsqrt.pop %v1993
    %v2026 = vrsqrt.pop %v1994
    %v2027 = vrsqrt.pop %v1995
    %v2028 = vrsqrt.pop %v1996
    %v2029 = vrsqrt.pop %v1997
    %v2030 = vrsqrt.pop %v1998
    %v2031 = vrsqrt.pop %v1999
    %v2032 = vrsqrt.pop %v2000
    %v2033 = vrsqrt.pop %v2001
    %v2034 = vrsqrt.pop %v2002
    %v2035 = vrsqrt.pop %v2003
    %v2036 = vrsqrt.pop %v2004
    %v2037 = vrsqrt.pop %v2005
    %v2038 = vrsqrt.pop %v2006
    %v2039 = vrsqrt.pop %v2007
    %v2040 = vrsqrt.pop %v2008
    %v2041 = vmul.f32 %v103, %v2009
    %v2042 = vmul.f32 %v104, %v2010
    %v2043 = vmul.f32 %v105, %v2011
    %v2044 = vmul.f32 %v106, %v2012
    %v2045 = vmul.f32 %v107, %v2013
    %v2046 = vmul.f32 %v108, %v2014
    %v2047 = vmul.f32 %v109, %v2015
    %v2048 = vmul.f32 %v110, %v2016
    %v2049 = vmul.f32 %v111, %v2017
    %v2050 = vmul.f32 %v112, %v2018
    %v2051 = vmul.f32 %v113, %v2019
    %v2052 = vmul.f32 %v114, %v2020
    %v2053 = vmul.f32 %v115, %v2021
    %v2054 = vmul.f32 %v116, %v2022
    %v2055 = vmul.f32 %v117, %v2023
    %v2056 = vmul.f32 %v118, %v2024
    %v2057 = vmul.f32 %v119, %v2025
    %v2058 = vmul.f32 %v120, %v2026
    %v2059 = vmul.f32 %v121, %v2027
    %v2060 = vmul.f32 %v122, %v2028
    %v2061 = vmul.f32 %v123, %v2029
    %v2062 = vmul.f32 %v124, %v2030
    %v2063 = vmul.f32 %v125, %v2031
    %v2064 = vmul.f32 %v126, %v2032
    %v2065 = vmul.f32 %v127, %v2033
    %v2066 = vmul.f32 %v128, %v2034
    %v2067 = vmul.f32 %v129, %v2035
    %v2068 = vmul.f32 %v130, %v2036
    %v2069 = vmul.f32 %v131, %v2037
    %v2070 = vmul.f32 %v132, %v2038
    %v2071 = vmul.f32 %v133, %v2039
    %v2072 = vmul.f32 %v134, %v2040
    %2073 = vst [vmem:[#allocation14] sm:$0xff] %v2041
    %2074 = vst [vmem:[#allocation14 + $0x8] sm:$0xff] %v2042
    %2075 = vst [vmem:[#allocation14 + $0x10] sm:$0xff] %v2043
    %2076 = vst [vmem:[#allocation14 + $0x18] sm:$0xff] %v2044
    %2077 = vst [vmem:[#allocation14 + $0x20] sm:$0xff] %v2045
    %2078 = vst [vmem:[#allocation14 + $0x28] sm:$0xff] %v2046
    %2079 = vst [vmem:[#allocation14 + $0x30] sm:$0xff] %v2047
    %2080 = vst [vmem:[#allocation14 + $0x38] sm:$0xff] %v2048
    %2081 = vst [vmem:[#allocation14 + $0x40] sm:$0xff] %v2049
    %2082 = vst [vmem:[#allocation14 + $0x48] sm:$0xff] %v2050
    %2083 = vst [vmem:[#allocation14 + $0x50] sm:$0xff] %v2051
    %2084 = vst [vmem:[#allocation14 + $0x58] sm:$0xff] %v2052
    %2085 = vst [vmem:[#allocation14 + $0x60] sm:$0xff] %v2053
    %2086 = vst [vmem:[#allocation14 + $0x68] sm:$0xff] %v2054
    %2087 = vst [vmem:[#allocation14 + $0x70] sm:$0xff] %v2055
    %2088 = vst [vmem:[#allocation14 + $0x78] sm:$0xff] %v2056
    %2089 = vst [vmem:[#allocation14 + $0x80] sm:$0xff] %v2057
    %2090 = vst [vmem:[#allocation14 + $0x88] sm:$0xff] %v2058
    %2091 = vst [vmem:[#allocation14 + $0x90] sm:$0xff] %v2059
    %2092 = vst [vmem:[#allocation14 + $0x98] sm:$0xff] %v2060
    %2093 = vst [vmem:[#allocation14 + $0xa0] sm:$0xff] %v2061
    %2094 = vst [vmem:[#allocation14 + $0xa8] sm:$0xff] %v2062
    %2095 = vst [vmem:[#allocation14 + $0xb0] sm:$0xff] %v2063
    %2096 = vst [vmem:[#allocation14 + $0xb8] sm:$0xff] %v2064
    %2097 = vst [vmem:[#allocation14 + $0xc0] sm:$0xff] %v2065
    %2098 = vst [vmem:[#allocation14 + $0xc8] sm:$0xff] %v2066
    %2099 = vst [vmem:[#allocation14 + $0xd0] sm:$0xff] %v2067
    %2100 = vst [vmem:[#allocation14 + $0xd8] sm:$0xff] %v2068
    %2101 = vst [vmem:[#allocation14 + $0xe0] sm:$0xff] %v2069
    %2102 = vst [vmem:[#allocation14 + $0xe8] sm:$0xff] %v2070
    %2103 = vst [vmem:[#allocation14 + $0xf0] sm:$0xff] %v2071
    %2104 = vst [vmem:[#allocation14 + $0xf8] sm:$0xff] %v2072
    %v2105 = vpack.c.bf16 %v2042, %v2041
    %v2106 = vpack.c.bf16 %v2044, %v2043
    %v2107 = vpack.c.bf16 %v2046, %v2045
    %v2108 = vpack.c.bf16 %v2048, %v2047
    %v2109 = vpack.c.bf16 %v2050, %v2049
    %v2110 = vpack.c.bf16 %v2052, %v2051
    %v2111 = vpack.c.bf16 %v2054, %v2053
    %v2112 = vpack.c.bf16 %v2056, %v2055
    %v2113 = vpack.c.bf16 %v2058, %v2057
    %v2114 = vpack.c.bf16 %v2060, %v2059
    %v2115 = vpack.c.bf16 %v2062, %v2061
    %v2116 = vpack.c.bf16 %v2064, %v2063
    %v2117 = vpack.c.bf16 %v2066, %v2065
    %v2118 = vpack.c.bf16 %v2068, %v2067
    %v2119 = vpack.c.bf16 %v2070, %v2069
    %v2120 = vpack.c.bf16 %v2072, %v2071
    %v2121 = vld [vmem:[#allocation10] sm:$0xff]
    %v2122 = vld [vmem:[#allocation10 + $0x8] sm:$0xff]
    %v2123 = vld [vmem:[#allocation10 + $0x10] sm:$0xff]
    %v2124 = vld [vmem:[#allocation10 + $0x18] sm:$0xff]
    %v2125 = vld [vmem:[#allocation10 + $0x20] sm:$0xff]
    %v2126 = vld [vmem:[#allocation10 + $0x28] sm:$0xff]
    %v2127 = vld [vmem:[#allocation10 + $0x30] sm:$0xff]
    %v2128 = vld [vmem:[#allocation10 + $0x38] sm:$0xff]
    %v2129 = vld [vmem:[#allocation10 + $0x40] sm:$0xff]
    %v2130 = vld [vmem:[#allocation10 + $0x48] sm:$0xff]
    %v2131 = vld [vmem:[#allocation10 + $0x50] sm:$0xff]
    %v2132 = vld [vmem:[#allocation10 + $0x58] sm:$0xff]
    %v2133 = vld [vmem:[#allocation10 + $0x60] sm:$0xff]
    %v2134 = vld [vmem:[#allocation10 + $0x68] sm:$0xff]
    %v2135 = vld [vmem:[#allocation10 + $0x70] sm:$0xff]
    %v2136 = vld [vmem:[#allocation10 + $0x78] sm:$0xff]
    %v2137 = vld [vmem:[#allocation10 + $0x80] sm:$0xff]
    %v2138 = vld [vmem:[#allocation10 + $0x88] sm:$0xff]
    %v2139 = vld [vmem:[#allocation10 + $0x90] sm:$0xff]
    %v2140 = vld [vmem:[#allocation10 + $0x98] sm:$0xff]
    %v2141 = vld [vmem:[#allocation10 + $0xa0] sm:$0xff]
    %v2142 = vld [vmem:[#allocation10 + $0xa8] sm:$0xff]
    %v2143 = vld [vmem:[#allocation10 + $0xb0] sm:$0xff]
    %v2144 = vld [vmem:[#allocation10 + $0xb8] sm:$0xff]
    %v2145 = vld [vmem:[#allocation10 + $0xc0] sm:$0xff]
    %v2146 = vld [vmem:[#allocation10 + $0xc8] sm:$0xff]
    %v2147 = vld [vmem:[#allocation10 + $0xd0] sm:$0xff]
    %v2148 = vld [vmem:[#allocation10 + $0xd8] sm:$0xff]
    %v2149 = vld [vmem:[#allocation10 + $0xe0] sm:$0xff]
    %v2150 = vld [vmem:[#allocation10 + $0xe8] sm:$0xff]
    %v2151 = vld [vmem:[#allocation10 + $0xf0] sm:$0xff]
    %v2152 = vld [vmem:[#allocation10 + $0xf8] sm:$0xff]
    %v2185 = vunpack.c.l.b16 %v2121
    %v2186 = vunpack.c.h.b16 %v2121
    %v2187 = vunpack.c.l.b16 %v2122
    %v2188 = vunpack.c.h.b16 %v2122
    %v2189 = vunpack.c.l.b16 %v2123
    %v2190 = vunpack.c.h.b16 %v2123
    %v2191 = vunpack.c.l.b16 %v2124
    %v2192 = vunpack.c.h.b16 %v2124
    %v2193 = vunpack.c.l.b16 %v2125
    %v2194 = vunpack.c.h.b16 %v2125
    %v2195 = vunpack.c.l.b16 %v2126
    %v2196 = vunpack.c.h.b16 %v2126
    %v2197 = vunpack.c.l.b16 %v2127
    %v2198 = vunpack.c.h.b16 %v2127
    %v2199 = vunpack.c.l.b16 %v2128
    %v2200 = vunpack.c.h.b16 %v2128
    %v2201 = vunpack.c.l.b16 %v2129
    %v2202 = vunpack.c.h.b16 %v2129
    %v2203 = vunpack.c.l.b16 %v2130
    %v2204 = vunpack.c.h.b16 %v2130
    %v2205 = vunpack.c.l.b16 %v2131
    %v2206 = vunpack.c.h.b16 %v2131
    %v2207 = vunpack.c.l.b16 %v2132
    %v2208 = vunpack.c.h.b16 %v2132
    %v2209 = vunpack.c.l.b16 %v2133
    %v2210 = vunpack.c.h.b16 %v2133
    %v2211 = vunpack.c.l.b16 %v2134
    %v2212 = vunpack.c.h.b16 %v2134
    %v2213 = vunpack.c.l.b16 %v2135
    %v2214 = vunpack.c.h.b16 %v2135
    %v2215 = vunpack.c.l.b16 %v2136
    %v2216 = vunpack.c.h.b16 %v2136
    %v2217 = vunpack.c.l.b16 %v2137
    %v2218 = vunpack.c.h.b16 %v2137
    %v2219 = vunpack.c.l.b16 %v2138
    %v2220 = vunpack.c.h.b16 %v2138
    %v2221 = vunpack.c.l.b16 %v2139
    %v2222 = vunpack.c.h.b16 %v2139
    %v2223 = vunpack.c.l.b16 %v2140
    %v2224 = vunpack.c.h.b16 %v2140
    %v2225 = vunpack.c.l.b16 %v2141
    %v2226 = vunpack.c.h.b16 %v2141
    %v2227 = vunpack.c.l.b16 %v2142
    %v2228 = vunpack.c.h.b16 %v2142
    %v2229 = vunpack.c.l.b16 %v2143
    %v2230 = vunpack.c.h.b16 %v2143
    %v2231 = vunpack.c.l.b16 %v2144
    %v2232 = vunpack.c.h.b16 %v2144
    %v2233 = vunpack.c.l.b16 %v2145
    %v2234 = vunpack.c.h.b16 %v2145
    %v2235 = vunpack.c.l.b16 %v2146
    %v2236 = vunpack.c.h.b16 %v2146
    %v2237 = vunpack.c.l.b16 %v2147
    %v2238 = vunpack.c.h.b16 %v2147
    %v2239 = vunpack.c.l.b16 %v2148
    %v2240 = vunpack.c.h.b16 %v2148
    %v2241 = vunpack.c.l.b16 %v2149
    %v2242 = vunpack.c.h.b16 %v2149
    %v2243 = vunpack.c.l.b16 %v2150
    %v2244 = vunpack.c.h.b16 %v2150
    %v2245 = vunpack.c.l.b16 %v2151
    %v2246 = vunpack.c.h.b16 %v2151
    %v2247 = vunpack.c.l.b16 %v2152
    %v2248 = vunpack.c.h.b16 %v2152
    %v2249 = vpack.c.b16 %v2189, %v2185
    %v2250 = vpack.c.b16 %v2190, %v2186
    %v2251 = vpack.c.b16 %v2191, %v2187
    %v2252 = vpack.c.b16 %v2192, %v2188
    %v2253 = vpack.c.b16 %v2197, %v2193
    %v2254 = vpack.c.b16 %v2198, %v2194
    %v2255 = vpack.c.b16 %v2199, %v2195
    %v2256 = vpack.c.b16 %v2200, %v2196
    %v2257 = vpack.c.b16 %v2205, %v2201
    %v2258 = vpack.c.b16 %v2206, %v2202
    %v2259 = vpack.c.b16 %v2207, %v2203
    %v2260 = vpack.c.b16 %v2208, %v2204
    %v2261 = vpack.c.b16 %v2213, %v2209
    %v2262 = vpack.c.b16 %v2214, %v2210
    %v2263 = vpack.c.b16 %v2215, %v2211
    %v2264 = vpack.c.b16 %v2216, %v2212
    %v2265 = vpack.c.b16 %v2221, %v2217
    %v2266 = vpack.c.b16 %v2222, %v2218
    %v2267 = vpack.c.b16 %v2223, %v2219
    %v2268 = vpack.c.b16 %v2224, %v2220
    %v2269 = vpack.c.b16 %v2229, %v2225
    %v2270 = vpack.c.b16 %v2230, %v2226
    %v2271 = vpack.c.b16 %v2231, %v2227
    %v2272 = vpack.c.b16 %v2232, %v2228
    %v2273 = vpack.c.b16 %v2237, %v2233
    %v2274 = vpack.c.b16 %v2238, %v2234
    %v2275 = vpack.c.b16 %v2239, %v2235
    %v2276 = vpack.c.b16 %v2240, %v2236
    %v2277 = vpack.c.b16 %v2245, %v2241
    %v2278 = vpack.c.b16 %v2246, %v2242
    %v2279 = vpack.c.b16 %v2247, %v2243
    %v2280 = vpack.c.b16 %v2248, %v2244
    %2313 = vmatprep.subr.bf16.mxu0 %v2278
    %2314 = vmatpush1.bf16.msra.mxu0 %v2277
    %2315 = vmatprep.subr.bf16.mxu0 %v2274
    %2316 = vmatpush1.bf16.msra.mxu0 %v2273
    %2317 = vmatprep.subr.bf16.mxu0 %v2270
    %2318 = vmatpush1.bf16.msra.mxu0 %v2269
    %2319 = vmatprep.subr.bf16.mxu0 %v2266
    %2320 = vmatpush1.bf16.msra.mxu0 %v2265
    %2321 = vmatprep.subr.bf16.mxu0 %v2262
    %2322 = vmatpush1.bf16.msra.mxu0 %v2261
    %2323 = vmatprep.subr.bf16.mxu0 %v2258
    %2324 = vmatpush1.bf16.msra.mxu0 %v2257
    %2325 = vmatprep.subr.bf16.mxu0 %v2254
    %2326 = vmatpush1.bf16.msra.mxu0 %v2253
    %2327 = vmatprep.subr.bf16.mxu0 %v2250
    %2328 = vmatpush1.bf16.msra.mxu0 %v2249
    %2329 = vmatprep.subr.bf16.mxu0 0
    %2330 = vmatpush2.bf16.msra.mxu0 0
    %2331 = vmatprep.subr.bf16.mxu0 0
    %2332 = vmatpush2.bf16.msra.mxu0 0
    %2333 = vmatprep.subr.bf16.mxu0 0
    %2334 = vmatpush2.bf16.msra.mxu0 0
    %2335 = vmatprep.subr.bf16.mxu0 0
    %2336 = vmatpush2.bf16.msra.mxu0 0
    %2337 = vmatprep.subr.bf16.mxu0 0
    %2338 = vmatpush2.bf16.msra.mxu0 0
    %2339 = vmatprep.subr.bf16.mxu0 0
    %2340 = vmatpush2.bf16.msra.mxu0 0
    %2341 = vmatprep.subr.bf16.mxu0 0
    %2342 = vmatpush2.bf16.msra.mxu0 0
    %2343 = vmatprep.subr.bf16.mxu0 0
    %2344 = vmatpush2.bf16.msra.mxu0 0
    %2345 = vmatprep.mubr.bf16.mxu0 0
    %2346 = vmatmul.mubr.bf16.gmra.mxu0 %v2105
    %v2347 = vpop.f32.mrf.mxu0
    %v2348 = vadd.f32 0.0, %v2347
    %v2349 = vpop.f32.mrf.mxu0
    %v2350 = vadd.f32 0.0, %v2349
    %v2351 = vpop.f32.mrf.mxu0
    %v2352 = vadd.f32 0.0, %v2351
    %v2353 = vpop.f32.mrf.mxu0
    %v2354 = vadd.f32 0.0, %v2353
    %2355 = vmatprep.mubr.bf16.mxu0 0
    %2356 = vmatmul.mubr.bf16.gmra.mxu0 %v2106
    %v2357 = vpop.f32.mrf.mxu0
    %v2358 = vadd.f32 0.0, %v2357
    %v2359 = vpop.f32.mrf.mxu0
    %v2360 = vadd.f32 0.0, %v2359
    %v2361 = vpop.f32.mrf.mxu0
    %v2362 = vadd.f32 0.0, %v2361
    %v2363 = vpop.f32.mrf.mxu0
    %v2364 = vadd.f32 0.0, %v2363
    %2365 = vmatprep.mubr.bf16.mxu0 0
    %2366 = vmatmul.mubr.bf16.gmra.mxu0 %v2107
    %v2367 = vpop.f32.mrf.mxu0
    %v2368 = vadd.f32 0.0, %v2367
    %v2369 = vpop.f32.mrf.mxu0
    %v2370 = vadd.f32 0.0, %v2369
    %v2371 = vpop.f32.mrf.mxu0
    %v2372 = vadd.f32 0.0, %v2371
    %v2373 = vpop.f32.mrf.mxu0
    %v2374 = vadd.f32 0.0, %v2373
    %2375 = vmatprep.mubr.bf16.mxu0 0
    %2376 = vmatmul.mubr.bf16.gmra.mxu0 %v2108
    %v2377 = vpop.f32.mrf.mxu0
    %v2378 = vadd.f32 0.0, %v2377
    %v2379 = vpop.f32.mrf.mxu0
    %v2380 = vadd.f32 0.0, %v2379
    %v2381 = vpop.f32.mrf.mxu0
    %v2382 = vadd.f32 0.0, %v2381
    %v2383 = vpop.f32.mrf.mxu0
    %v2384 = vadd.f32 0.0, %v2383
    %2385 = vmatprep.mubr.bf16.mxu0 0
    %2386 = vmatmul.mubr.bf16.gmra.mxu0 %v2109
    %v2387 = vpop.f32.mrf.mxu0
    %v2388 = vadd.f32 0.0, %v2387
    %v2389 = vpop.f32.mrf.mxu0
    %v2390 = vadd.f32 0.0, %v2389
    %v2391 = vpop.f32.mrf.mxu0
    %v2392 = vadd.f32 0.0, %v2391
    %v2393 = vpop.f32.mrf.mxu0
    %v2394 = vadd.f32 0.0, %v2393
    %2395 = vmatprep.mubr.bf16.mxu0 0
    %2396 = vmatmul.mubr.bf16.gmra.mxu0 %v2110
    %v2397 = vpop.f32.mrf.mxu0
    %v2398 = vadd.f32 0.0, %v2397
    %v2399 = vpop.f32.mrf.mxu0
    %v2400 = vadd.f32 0.0, %v2399
    %v2401 = vpop.f32.mrf.mxu0
    %v2402 = vadd.f32 0.0, %v2401
    %v2403 = vpop.f32.mrf.mxu0
    %v2404 = vadd.f32 0.0, %v2403
    %2405 = vmatprep.mubr.bf16.mxu0 0
    %2406 = vmatmul.mubr.bf16.gmra.mxu0 %v2111
    %v2407 = vpop.f32.mrf.mxu0
    %v2408 = vadd.f32 0.0, %v2407
    %v2409 = vpop.f32.mrf.mxu0
    %v2410 = vadd.f32 0.0, %v2409
    %v2411 = vpop.f32.mrf.mxu0
    %v2412 = vadd.f32 0.0, %v2411
    %v2413 = vpop.f32.mrf.mxu0
    %v2414 = vadd.f32 0.0, %v2413
    %2415 = vmatprep.mubr.bf16.mxu0 0
    %2416 = vmatmul.mubr.bf16.gmra.mxu0 %v2112
    %v2417 = vpop.f32.mrf.mxu0
    %v2418 = vadd.f32 0.0, %v2417
    %v2419 = vpop.f32.mrf.mxu0
    %v2420 = vadd.f32 0.0, %v2419
    %v2421 = vpop.f32.mrf.mxu0
    %v2422 = vadd.f32 0.0, %v2421
    %v2423 = vpop.f32.mrf.mxu0
    %v2424 = vadd.f32 0.0, %v2423
    %2425 = vmatprep.mubr.bf16.mxu0 0
    %2426 = vmatmul.mubr.bf16.gmra.mxu0 %v2113
    %v2427 = vpop.f32.mrf.mxu0
    %v2428 = vadd.f32 0.0, %v2427
    %v2429 = vpop.f32.mrf.mxu0
    %v2430 = vadd.f32 0.0, %v2429
    %v2431 = vpop.f32.mrf.mxu0
    %v2432 = vadd.f32 0.0, %v2431
    %v2433 = vpop.f32.mrf.mxu0
    %v2434 = vadd.f32 0.0, %v2433
    %2435 = vmatprep.mubr.bf16.mxu0 0
    %2436 = vmatmul.mubr.bf16.gmra.mxu0 %v2114
    %v2437 = vpop.f32.mrf.mxu0
    %v2438 = vadd.f32 0.0, %v2437
    %v2439 = vpop.f32.mrf.mxu0
    %v2440 = vadd.f32 0.0, %v2439
    %v2441 = vpop.f32.mrf.mxu0
    %v2442 = vadd.f32 0.0, %v2441
    %v2443 = vpop.f32.mrf.mxu0
    %v2444 = vadd.f32 0.0, %v2443
    %2445 = vmatprep.mubr.bf16.mxu0 0
    %2446 = vmatmul.mubr.bf16.gmra.mxu0 %v2115
    %v2447 = vpop.f32.mrf.mxu0
    %v2448 = vadd.f32 0.0, %v2447
    %v2449 = vpop.f32.mrf.mxu0
    %v2450 = vadd.f32 0.0, %v2449
    %v2451 = vpop.f32.mrf.mxu0
    %v2452 = vadd.f32 0.0, %v2451
    %v2453 = vpop.f32.mrf.mxu0
    %v2454 = vadd.f32 0.0, %v2453
    %2455 = vmatprep.mubr.bf16.mxu0 0
    %2456 = vmatmul.mubr.bf16.gmra.mxu0 %v2116
    %v2457 = vpop.f32.mrf.mxu0
    %v2458 = vadd.f32 0.0, %v2457
    %v2459 = vpop.f32.mrf.mxu0
    %v2460 = vadd.f32 0.0, %v2459
    %v2461 = vpop.f32.mrf.mxu0
    %v2462 = vadd.f32 0.0, %v2461
    %v2463 = vpop.f32.mrf.mxu0
    %v2464 = vadd.f32 0.0, %v2463
    %2465 = vmatprep.mubr.bf16.mxu0 0
    %2466 = vmatmul.mubr.bf16.gmra.mxu0 %v2117
    %v2467 = vpop.f32.mrf.mxu0
    %v2468 = vadd.f32 0.0, %v2467
    %v2469 = vpop.f32.mrf.mxu0
    %v2470 = vadd.f32 0.0, %v2469
    %v2471 = vpop.f32.mrf.mxu0
    %v2472 = vadd.f32 0.0, %v2471
    %v2473 = vpop.f32.mrf.mxu0
    %v2474 = vadd.f32 0.0, %v2473
    %2475 = vmatprep.mubr.bf16.mxu0 0
    %2476 = vmatmul.mubr.bf16.gmra.mxu0 %v2118
    %v2477 = vpop.f32.mrf.mxu0
    %v2478 = vadd.f32 0.0, %v2477
    %v2479 = vpop.f32.mrf.mxu0
    %v2480 = vadd.f32 0.0, %v2479
    %v2481 = vpop.f32.mrf.mxu0
    %v2482 = vadd.f32 0.0, %v2481
    %v2483 = vpop.f32.mrf.mxu0
    %v2484 = vadd.f32 0.0, %v2483
    %2485 = vmatprep.mubr.bf16.mxu0 0
    %2486 = vmatmul.mubr.bf16.gmra.mxu0 %v2119
    %v2487 = vpop.f32.mrf.mxu0
    %v2488 = vadd.f32 0.0, %v2487
    %v2489 = vpop.f32.mrf.mxu0
    %v2490 = vadd.f32 0.0, %v2489
    %v2491 = vpop.f32.mrf.mxu0
    %v2492 = vadd.f32 0.0, %v2491
    %v2493 = vpop.f32.mrf.mxu0
    %v2494 = vadd.f32 0.0, %v2493
    %2495 = vmatprep.mubr.bf16.mxu0 0
    %2496 = vmatmul.mubr.bf16.gmra.mxu0 %v2120
    %v2497 = vpop.f32.mrf.mxu0
    %v2498 = vadd.f32 0.0, %v2497
    %v2499 = vpop.f32.mrf.mxu0
    %v2500 = vadd.f32 0.0, %v2499
    %v2501 = vpop.f32.mrf.mxu0
    %v2502 = vadd.f32 0.0, %v2501
    %v2503 = vpop.f32.mrf.mxu0
    %v2504 = vadd.f32 0.0, %v2503
    %2505 = vdwg.mxu0
    %2506 = vmatprep.subr.bf16.mxu0 %v2280
    %2507 = vmatpush1.bf16.msra.mxu0 %v2279
    %2508 = vmatprep.subr.bf16.mxu0 %v2276
    %2509 = vmatpush1.bf16.msra.mxu0 %v2275
    %2510 = vmatprep.subr.bf16.mxu0 %v2272
    %2511 = vmatpush1.bf16.msra.mxu0 %v2271
    %2512 = vmatprep.subr.bf16.mxu0 %v2268
    %2513 = vmatpush1.bf16.msra.mxu0 %v2267
    %2514 = vmatprep.subr.bf16.mxu0 %v2264
    %2515 = vmatpush1.bf16.msra.mxu0 %v2263
    %2516 = vmatprep.subr.bf16.mxu0 %v2260
    %2517 = vmatpush1.bf16.msra.mxu0 %v2259
    %2518 = vmatprep.subr.bf16.mxu0 %v2256
    %2519 = vmatpush1.bf16.msra.mxu0 %v2255
    %2520 = vmatprep.subr.bf16.mxu0 %v2252
    %2521 = vmatpush1.bf16.msra.mxu0 %v2251
    %2522 = vmatprep.subr.bf16.mxu0 0
    %2523 = vmatpush2.bf16.msra.mxu0 0
    %2524 = vmatprep.subr.bf16.mxu0 0
    %2525 = vmatpush2.bf16.msra.mxu0 0
    %2526 = vmatprep.subr.bf16.mxu0 0
    %2527 = vmatpush2.bf16.msra.mxu0 0
    %2528 = vmatprep.subr.bf16.mxu0 0
    %2529 = vmatpush2.bf16.msra.mxu0 0
    %2530 = vmatprep.subr.bf16.mxu0 0
    %2531 = vmatpush2.bf16.msra.mxu0 0
    %2532 = vmatprep.subr.bf16.mxu0 0
    %2533 = vmatpush2.bf16.msra.mxu0 0
    %2534 = vmatprep.subr.bf16.mxu0 0
    %2535 = vmatpush2.bf16.msra.mxu0 0
    %2536 = vmatprep.subr.bf16.mxu0 0
    %2537 = vmatpush2.bf16.msra.mxu0 0
    %2538 = vmatprep.mubr.bf16.mxu0 0
    %2539 = vmatmul.mubr.bf16.gmra.mxu0 %v2105
    %v2540 = vpop.f32.mrf.mxu0
    %v2541 = vadd.f32 0.0, %v2540
    %v2542 = vpop.f32.mrf.mxu0
    %v2543 = vadd.f32 0.0, %v2542
    %v2544 = vpop.f32.mrf.mxu0
    %v2545 = vadd.f32 0.0, %v2544
    %v2546 = vpop.f32.mrf.mxu0
    %v2547 = vadd.f32 0.0, %v2546
    %2548 = vmatprep.mubr.bf16.mxu0 0
    %2549 = vmatmul.mubr.bf16.gmra.mxu0 %v2106
    %v2550 = vpop.f32.mrf.mxu0
    %v2551 = vadd.f32 0.0, %v2550
    %v2552 = vpop.f32.mrf.mxu0
    %v2553 = vadd.f32 0.0, %v2552
    %v2554 = vpop.f32.mrf.mxu0
    %v2555 = vadd.f32 0.0, %v2554
    %v2556 = vpop.f32.mrf.mxu0
    %v2557 = vadd.f32 0.0, %v2556
    %2558 = vmatprep.mubr.bf16.mxu0 0
    %2559 = vmatmul.mubr.bf16.gmra.mxu0 %v2107
    %v2560 = vpop.f32.mrf.mxu0
    %v2561 = vadd.f32 0.0, %v2560
    %v2562 = vpop.f32.mrf.mxu0
    %v2563 = vadd.f32 0.0, %v2562
    %v2564 = vpop.f32.mrf.mxu0
    %v2565 = vadd.f32 0.0, %v2564
    %v2566 = vpop.f32.mrf.mxu0
    %v2567 = vadd.f32 0.0, %v2566
    %2568 = vmatprep.mubr.bf16.mxu0 0
    %2569 = vmatmul.mubr.bf16.gmra.mxu0 %v2108
    %v2570 = vpop.f32.mrf.mxu0
    %v2571 = vadd.f32 0.0, %v2570
    %v2572 = vpop.f32.mrf.mxu0
    %v2573 = vadd.f32 0.0, %v2572
    %v2574 = vpop.f32.mrf.mxu0
    %v2575 = vadd.f32 0.0, %v2574
    %v2576 = vpop.f32.mrf.mxu0
    %v2577 = vadd.f32 0.0, %v2576
    %2578 = vmatprep.mubr.bf16.mxu0 0
    %2579 = vmatmul.mubr.bf16.gmra.mxu0 %v2109
    %v2580 = vpop.f32.mrf.mxu0
    %v2581 = vadd.f32 0.0, %v2580
    %v2582 = vpop.f32.mrf.mxu0
    %v2583 = vadd.f32 0.0, %v2582
    %v2584 = vpop.f32.mrf.mxu0
    %v2585 = vadd.f32 0.0, %v2584
    %v2586 = vpop.f32.mrf.mxu0
    %v2587 = vadd.f32 0.0, %v2586
    %2588 = vmatprep.mubr.bf16.mxu0 0
    %2589 = vmatmul.mubr.bf16.gmra.mxu0 %v2110
    %v2590 = vpop.f32.mrf.mxu0
    %v2591 = vadd.f32 0.0, %v2590
    %v2592 = vpop.f32.mrf.mxu0
    %v2593 = vadd.f32 0.0, %v2592
    %v2594 = vpop.f32.mrf.mxu0
    %v2595 = vadd.f32 0.0, %v2594
    %v2596 = vpop.f32.mrf.mxu0
    %v2597 = vadd.f32 0.0, %v2596
    %2598 = vmatprep.mubr.bf16.mxu0 0
    %2599 = vmatmul.mubr.bf16.gmra.mxu0 %v2111
    %v2600 = vpop.f32.mrf.mxu0
    %v2601 = vadd.f32 0.0, %v2600
    %v2602 = vpop.f32.mrf.mxu0
    %v2603 = vadd.f32 0.0, %v2602
    %v2604 = vpop.f32.mrf.mxu0
    %v2605 = vadd.f32 0.0, %v2604
    %v2606 = vpop.f32.mrf.mxu0
    %v2607 = vadd.f32 0.0, %v2606
    %2608 = vmatprep.mubr.bf16.mxu0 0
    %2609 = vmatmul.mubr.bf16.gmra.mxu0 %v2112
    %v2610 = vpop.f32.mrf.mxu0
    %v2611 = vadd.f32 0.0, %v2610
    %v2612 = vpop.f32.mrf.mxu0
    %v2613 = vadd.f32 0.0, %v2612
    %v2614 = vpop.f32.mrf.mxu0
    %v2615 = vadd.f32 0.0, %v2614
    %v2616 = vpop.f32.mrf.mxu0
    %v2617 = vadd.f32 0.0, %v2616
    %2618 = vmatprep.mubr.bf16.mxu0 0
    %2619 = vmatmul.mubr.bf16.gmra.mxu0 %v2113
    %v2620 = vpop.f32.mrf.mxu0
    %v2621 = vadd.f32 0.0, %v2620
    %v2622 = vpop.f32.mrf.mxu0
    %v2623 = vadd.f32 0.0, %v2622
    %v2624 = vpop.f32.mrf.mxu0
    %v2625 = vadd.f32 0.0, %v2624
    %v2626 = vpop.f32.mrf.mxu0
    %v2627 = vadd.f32 0.0, %v2626
    %2628 = vmatprep.mubr.bf16.mxu0 0
    %2629 = vmatmul.mubr.bf16.gmra.mxu0 %v2114
    %v2630 = vpop.f32.mrf.mxu0
    %v2631 = vadd.f32 0.0, %v2630
    %v2632 = vpop.f32.mrf.mxu0
    %v2633 = vadd.f32 0.0, %v2632
    %v2634 = vpop.f32.mrf.mxu0
    %v2635 = vadd.f32 0.0, %v2634
    %v2636 = vpop.f32.mrf.mxu0
    %v2637 = vadd.f32 0.0, %v2636
    %2638 = vmatprep.mubr.bf16.mxu0 0
    %2639 = vmatmul.mubr.bf16.gmra.mxu0 %v2115
    %v2640 = vpop.f32.mrf.mxu0
    %v2641 = vadd.f32 0.0, %v2640
    %v2642 = vpop.f32.mrf.mxu0
    %v2643 = vadd.f32 0.0, %v2642
    %v2644 = vpop.f32.mrf.mxu0
    %v2645 = vadd.f32 0.0, %v2644
    %v2646 = vpop.f32.mrf.mxu0
    %v2647 = vadd.f32 0.0, %v2646
    %2648 = vmatprep.mubr.bf16.mxu0 0
    %2649 = vmatmul.mubr.bf16.gmra.mxu0 %v2116
    %v2650 = vpop.f32.mrf.mxu0
    %v2651 = vadd.f32 0.0, %v2650
    %v2652 = vpop.f32.mrf.mxu0
    %v2653 = vadd.f32 0.0, %v2652
    %v2654 = vpop.f32.mrf.mxu0
    %v2655 = vadd.f32 0.0, %v2654
    %v2656 = vpop.f32.mrf.mxu0
    %v2657 = vadd.f32 0.0, %v2656
    %2658 = vmatprep.mubr.bf16.mxu0 0
    %2659 = vmatmul.mubr.bf16.gmra.mxu0 %v2117
    %v2660 = vpop.f32.mrf.mxu0
    %v2661 = vadd.f32 0.0, %v2660
    %v2662 = vpop.f32.mrf.mxu0
    %v2663 = vadd.f32 0.0, %v2662
    %v2664 = vpop.f32.mrf.mxu0
    %v2665 = vadd.f32 0.0, %v2664
    %v2666 = vpop.f32.mrf.mxu0
    %v2667 = vadd.f32 0.0, %v2666
    %2668 = vmatprep.mubr.bf16.mxu0 0
    %2669 = vmatmul.mubr.bf16.gmra.mxu0 %v2118
    %v2670 = vpop.f32.mrf.mxu0
    %v2671 = vadd.f32 0.0, %v2670
    %v2672 = vpop.f32.mrf.mxu0
    %v2673 = vadd.f32 0.0, %v2672
    %v2674 = vpop.f32.mrf.mxu0
    %v2675 = vadd.f32 0.0, %v2674
    %v2676 = vpop.f32.mrf.mxu0
    %v2677 = vadd.f32 0.0, %v2676
    %2678 = vmatprep.mubr.bf16.mxu0 0
    %2679 = vmatmul.mubr.bf16.gmra.mxu0 %v2119
    %v2680 = vpop.f32.mrf.mxu0
    %v2681 = vadd.f32 0.0, %v2680
    %v2682 = vpop.f32.mrf.mxu0
    %v2683 = vadd.f32 0.0, %v2682
    %v2684 = vpop.f32.mrf.mxu0
    %v2685 = vadd.f32 0.0, %v2684
    %v2686 = vpop.f32.mrf.mxu0
    %v2687 = vadd.f32 0.0, %v2686
    %2688 = vmatprep.mubr.bf16.mxu0 0
    %2689 = vmatmul.mubr.bf16.gmra.mxu0 %v2120
    %v2690 = vpop.f32.mrf.mxu0
    %v2691 = vadd.f32 0.0, %v2690
    %v2692 = vpop.f32.mrf.mxu0
    %v2693 = vadd.f32 0.0, %v2692
    %v2694 = vpop.f32.mrf.mxu0
    %v2695 = vadd.f32 0.0, %v2694
    %v2696 = vpop.f32.mrf.mxu0
    %v2697 = vadd.f32 0.0, %v2696
    %2698 = vdwg.mxu0
    %2699 = vst [vmem:[#allocation12] sm:$0xff] %v2348
    %2700 = vst [vmem:[#allocation12 + $0x8] sm:$0xff] %v2350
    %2701 = vst [vmem:[#allocation12 + $0x10] sm:$0xff] %v2541
    %2702 = vst [vmem:[#allocation12 + $0x18] sm:$0xff] %v2543
    %2703 = vst [vmem:[#allocation12 + $0x20] sm:$0xff] %v2352
    %2704 = vst [vmem:[#allocation12 + $0x28] sm:$0xff] %v2354
    %2705 = vst [vmem:[#allocation12 + $0x30] sm:$0xff] %v2545
    %2706 = vst [vmem:[#allocation12 + $0x38] sm:$0xff] %v2547
    %2707 = vst [vmem:[#allocation12 + $0x40] sm:$0xff] %v2358
    %2708 = vst [vmem:[#allocation12 + $0x48] sm:$0xff] %v2360
    %2709 = vst [vmem:[#allocation12 + $0x50] sm:$0xff] %v2551
    %2710 = vst [vmem:[#allocation12 + $0x58] sm:$0xff] %v2553
    %2711 = vst [vmem:[#allocation12 + $0x60] sm:$0xff] %v2362
    %2712 = vst [vmem:[#allocation12 + $0x68] sm:$0xff] %v2364
    %2713 = vst [vmem:[#allocation12 + $0x70] sm:$0xff] %v2555
    %2714 = vst [vmem:[#allocation12 + $0x78] sm:$0xff] %v2557
    %2715 = vst [vmem:[#allocation12 + $0x80] sm:$0xff] %v2368
    %2716 = vst [vmem:[#allocation12 + $0x88] sm:$0xff] %v2370
    %2717 = vst [vmem:[#allocation12 + $0x90] sm:$0xff] %v2561
    %2718 = vst [vmem:[#allocation12 + $0x98] sm:$0xff] %v2563
    %2719 = vst [vmem:[#allocation12 + $0xa0] sm:$0xff] %v2372
    %2720 = vst [vmem:[#allocation12 + $0xa8] sm:$0xff] %v2374
    %2721 = vst [vmem:[#allocation12 + $0xb0] sm:$0xff] %v2565
    %2722 = vst [vmem:[#allocation12 + $0xb8] sm:$0xff] %v2567
    %2723 = vst [vmem:[#allocation12 + $0xc0] sm:$0xff] %v2378
    %2724 = vst [vmem:[#allocation12 + $0xc8] sm:$0xff] %v2380
    %2725 = vst [vmem:[#allocation12 + $0xd0] sm:$0xff] %v2571
    %2726 = vst [vmem:[#allocation12 + $0xd8] sm:$0xff] %v2573
    %2727 = vst [vmem:[#allocation12 + $0xe0] sm:$0xff] %v2382
    %2728 = vst [vmem:[#allocation12 + $0xe8] sm:$0xff] %v2384
    %2729 = vst [vmem:[#allocation12 + $0xf0] sm:$0xff] %v2575
    %2730 = vst [vmem:[#allocation12 + $0xf8] sm:$0xff] %v2577
    %2731 = vst [vmem:[#allocation12 + $0x100] sm:$0xff] %v2388
    %2732 = vst [vmem:[#allocation12 + $0x108] sm:$0xff] %v2390
    %2733 = vst [vmem:[#allocation12 + $0x110] sm:$0xff] %v2581
    %2734 = vst [vmem:[#allocation12 + $0x118] sm:$0xff] %v2583
    %2735 = vst [vmem:[#allocation12 + $0x120] sm:$0xff] %v2392
    %2736 = vst [vmem:[#allocation12 + $0x128] sm:$0xff] %v2394
    %2737 = vst [vmem:[#allocation12 + $0x130] sm:$0xff] %v2585
    %2738 = vst [vmem:[#allocation12 + $0x138] sm:$0xff] %v2587
    %2739 = vst [vmem:[#allocation12 + $0x140] sm:$0xff] %v2398
    %2740 = vst [vmem:[#allocation12 + $0x148] sm:$0xff] %v2400
    %2741 = vst [vmem:[#allocation12 + $0x150] sm:$0xff] %v2591
    %2742 = vst [vmem:[#allocation12 + $0x158] sm:$0xff] %v2593
    %2743 = vst [vmem:[#allocation12 + $0x160] sm:$0xff] %v2402
    %2744 = vst [vmem:[#allocation12 + $0x168] sm:$0xff] %v2404
    %2745 = vst [vmem:[#allocation12 + $0x170] sm:$0xff] %v2595
    %2746 = vst [vmem:[#allocation12 + $0x178] sm:$0xff] %v2597
    %2747 = vst [vmem:[#allocation12 + $0x180] sm:$0xff] %v2408
    %2748 = vst [vmem:[#allocation12 + $0x188] sm:$0xff] %v2410
    %2749 = vst [vmem:[#allocation12 + $0x190] sm:$0xff] %v2601
    %2750 = vst [vmem:[#allocation12 + $0x198] sm:$0xff] %v2603
    %2751 = vst [vmem:[#allocation12 + $0x1a0] sm:$0xff] %v2412
    %2752 = vst [vmem:[#allocation12 + $0x1a8] sm:$0xff] %v2414
    %2753 = vst [vmem:[#allocation12 + $0x1b0] sm:$0xff] %v2605
    %2754 = vst [vmem:[#allocation12 + $0x1b8] sm:$0xff] %v2607
    %2755 = vst [vmem:[#allocation12 + $0x1c0] sm:$0xff] %v2418
    %2756 = vst [vmem:[#allocation12 + $0x1c8] sm:$0xff] %v2420
    %2757 = vst [vmem:[#allocation12 + $0x1d0] sm:$0xff] %v2611
    %2758 = vst [vmem:[#allocation12 + $0x1d8] sm:$0xff] %v2613
    %2759 = vst [vmem:[#allocation12 + $0x1e0] sm:$0xff] %v2422
    %2760 = vst [vmem:[#allocation12 + $0x1e8] sm:$0xff] %v2424
    %2761 = vst [vmem:[#allocation12 + $0x1f0] sm:$0xff] %v2615
    %2762 = vst [vmem:[#allocation12 + $0x1f8] sm:$0xff] %v2617
    %2763 = vst [vmem:[#allocation12 + $0x200] sm:$0xff] %v2428
    %2764 = vst [vmem:[#allocation12 + $0x208] sm:$0xff] %v2430
    %2765 = vst [vmem:[#allocation12 + $0x210] sm:$0xff] %v2621
    %2766 = vst [vmem:[#allocation12 + $0x218] sm:$0xff] %v2623
    %2767 = vst [vmem:[#allocation12 + $0x220] sm:$0xff] %v2432
    %2768 = vst [vmem:[#allocation12 + $0x228] sm:$0xff] %v2434
    %2769 = vst [vmem:[#allocation12 + $0x230] sm:$0xff] %v2625
    %2770 = vst [vmem:[#allocation12 + $0x238] sm:$0xff] %v2627
    %2771 = vst [vmem:[#allocation12 + $0x240] sm:$0xff] %v2438
    %2772 = vst [vmem:[#allocation12 + $0x248] sm:$0xff] %v2440
    %2773 = vst [vmem:[#allocation12 + $0x250] sm:$0xff] %v2631
    %2774 = vst [vmem:[#allocation12 + $0x258] sm:$0xff] %v2633
    %2775 = vst [vmem:[#allocation12 + $0x260] sm:$0xff] %v2442
    %2776 = vst [vmem:[#allocation12 + $0x268] sm:$0xff] %v2444
    %2777 = vst [vmem:[#allocation12 + $0x270] sm:$0xff] %v2635
    %2778 = vst [vmem:[#allocation12 + $0x278] sm:$0xff] %v2637
    %2779 = vst [vmem:[#allocation12 + $0x280] sm:$0xff] %v2448
    %2780 = vst [vmem:[#allocation12 + $0x288] sm:$0xff] %v2450
    %2781 = vst [vmem:[#allocation12 + $0x290] sm:$0xff] %v2641
    %2782 = vst [vmem:[#allocation12 + $0x298] sm:$0xff] %v2643
    %2783 = vst [vmem:[#allocation12 + $0x2a0] sm:$0xff] %v2452
    %2784 = vst [vmem:[#allocation12 + $0x2a8] sm:$0xff] %v2454
    %2785 = vst [vmem:[#allocation12 + $0x2b0] sm:$0xff] %v2645
    %2786 = vst [vmem:[#allocation12 + $0x2b8] sm:$0xff] %v2647
    %2787 = vst [vmem:[#allocation12 + $0x2c0] sm:$0xff] %v2458
    %2788 = vst [vmem:[#allocation12 + $0x2c8] sm:$0xff] %v2460
    %2789 = vst [vmem:[#allocation12 + $0x2d0] sm:$0xff] %v2651
    %2790 = vst [vmem:[#allocation12 + $0x2d8] sm:$0xff] %v2653
    %2791 = vst [vmem:[#allocation12 + $0x2e0] sm:$0xff] %v2462
    %2792 = vst [vmem:[#allocation12 + $0x2e8] sm:$0xff] %v2464
    %2793 = vst [vmem:[#allocation12 + $0x2f0] sm:$0xff] %v2655
    %2794 = vst [vmem:[#allocation12 + $0x2f8] sm:$0xff] %v2657
    %2795 = vst [vmem:[#allocation12 + $0x300] sm:$0xff] %v2468
    %2796 = vst [vmem:[#allocation12 + $0x308] sm:$0xff] %v2470
    %2797 = vst [vmem:[#allocation12 + $0x310] sm:$0xff] %v2661
    %2798 = vst [vmem:[#allocation12 + $0x318] sm:$0xff] %v2663
    %2799 = vst [vmem:[#allocation12 + $0x320] sm:$0xff] %v2472
    %2800 = vst [vmem:[#allocation12 + $0x328] sm:$0xff] %v2474
    %2801 = vst [vmem:[#allocation12 + $0x330] sm:$0xff] %v2665
    %2802 = vst [vmem:[#allocation12 + $0x338] sm:$0xff] %v2667
    %2803 = vst [vmem:[#allocation12 + $0x340] sm:$0xff] %v2478
    %2804 = vst [vmem:[#allocation12 + $0x348] sm:$0xff] %v2480
    %2805 = vst [vmem:[#allocation12 + $0x350] sm:$0xff] %v2671
    %2806 = vst [vmem:[#allocation12 + $0x358] sm:$0xff] %v2673
    %2807 = vst [vmem:[#allocation12 + $0x360] sm:$0xff] %v2482
    %2808 = vst [vmem:[#allocation12 + $0x368] sm:$0xff] %v2484
    %2809 = vst [vmem:[#allocation12 + $0x370] sm:$0xff] %v2675
    %2810 = vst [vmem:[#allocation12 + $0x378] sm:$0xff] %v2677
    %2811 = vst [vmem:[#allocation12 + $0x380] sm:$0xff] %v2488
    %2812 = vst [vmem:[#allocation12 + $0x388] sm:$0xff] %v2490
    %2813 = vst [vmem:[#allocation12 + $0x390] sm:$0xff] %v2681
    %2814 = vst [vmem:[#allocation12 + $0x398] sm:$0xff] %v2683
    %2815 = vst [vmem:[#allocation12 + $0x3a0] sm:$0xff] %v2492
    %2816 = vst [vmem:[#allocation12 + $0x3a8] sm:$0xff] %v2494
    %2817 = vst [vmem:[#allocation12 + $0x3b0] sm:$0xff] %v2685
    %2818 = vst [vmem:[#allocation12 + $0x3b8] sm:$0xff] %v2687
    %2819 = vst [vmem:[#allocation12 + $0x3c0] sm:$0xff] %v2498
    %2820 = vst [vmem:[#allocation12 + $0x3c8] sm:$0xff] %v2500
    %2821 = vst [vmem:[#allocation12 + $0x3d0] sm:$0xff] %v2691
    %2822 = vst [vmem:[#allocation12 + $0x3d8] sm:$0xff] %v2693
    %2823 = vst [vmem:[#allocation12 + $0x3e0] sm:$0xff] %v2502
    %2824 = vst [vmem:[#allocation12 + $0x3e8] sm:$0xff] %v2504
    %2825 = vst [vmem:[#allocation12 + $0x3f0] sm:$0xff] %v2695
    %2826 = vst [vmem:[#allocation12 + $0x3f8] sm:$0xff] %v2697
    // Predicated region
    $region54: #{tpu_custom_call.1} parent=1 // pred_check
      _
    $region55: #{tpu_custom_call.1} parent=1 // pred_check_branch
      %2828 = sbr.rel (0) target = $region57
    $region56: #{tpu_custom_call.1} parent=1 // pred_region
      %s2830 = ssub.s32 4096, 4096
      %2831 = vsyncadd [#allocation4], %s2830
      %s2832 = sshll.u32 [#allocation11], 4
      %s2833 = int_to_ptr.vmem [resolvable:$true] %s2832
      %2838 = dma.vmem_to_hbm [thread:$0]  %s2833, 4096, %s8, [#allocation4], 128, 128, 8
    $region57: #{tpu_custom_call.1} parent=1 // pred_fallthru
      _
    // Predicated region
    $region58: #{tpu_custom_call.1} parent=1 // pred_check
      _
    $region59: #{tpu_custom_call.1} parent=1 // pred_check_branch
      %2840 = sbr.rel (0) target = $region61
    $region60: #{tpu_custom_call.1} parent=1 // pred_region
      %s2842 = ssub.s32 16384, 16384
      %2843 = vsyncadd [#allocation13], %s2842
      %s2844 = sshll.u32 [#allocation12], 4
      %s2845 = int_to_ptr.vmem [resolvable:$true] %s2844
      %2850 = dma.vmem_to_hbm [thread:$0]  %s2845, 16384, %s9, [#allocation13], 512, 512, 32
    $region61: #{tpu_custom_call.1} parent=1 // pred_fallthru
      _
    // Predicated region
    $region62: #{tpu_custom_call.1} parent=1 // pred_check
      _
    $region63: #{tpu_custom_call.1} parent=1 // pred_check_branch
      %2852 = sbr.rel (0) target = $region65
    $region64: #{tpu_custom_call.1} parent=1 // pred_region
      %s2854 = ssub.s32 4096, 4096
      %2855 = vsyncadd [#allocation13], %s2854
      %s2856 = sshll.u32 [#allocation14], 4
      %s2857 = int_to_ptr.vmem [resolvable:$true] %s2856
      %2862 = dma.vmem_to_hbm [thread:$0]  %s2857, 4096, %s10, [#allocation13], 128, 128, 8
    $region65: #{tpu_custom_call.1} parent=1 // pred_fallthru
      _
    // Predicated region
    $region66: #{tpu_custom_call.1} parent=1 // pred_check
      _
    $region67: #{tpu_custom_call.1} parent=1 // pred_check_branch
      %2864 = sbr.rel (0) target = $region69
    $region68: #{tpu_custom_call.1} parent=1 // pred_region
      %2865 = dma.done [#allocation4], 4096
    $region69: #{tpu_custom_call.1} parent=1 // pred_fallthru
      _
    // Predicated region
    $region70: #{tpu_custom_call.1} parent=1 // pred_check
      _
    $region71: #{tpu_custom_call.1} parent=1 // pred_check_branch
      %2867 = sbr.rel (0) target = $region73
    $region72: #{tpu_custom_call.1} parent=1 // pred_region
      %2868 = dma.done [#allocation13], 16384
    $region73: #{tpu_custom_call.1} parent=1 // pred_fallthru
      _
    // Predicated region
    $region74: #{tpu_custom_call.1} parent=1 // pred_check
      _
    $region75: #{tpu_custom_call.1} parent=1 // pred_check_branch
      %2870 = sbr.rel (0) target = $region77
    $region76: #{tpu_custom_call.1} parent=1 // pred_region
      %2871 = dma.done [#allocation13], 4096
    $region77: #{tpu_custom_call.1} parent=1 // pred_fallthru
      _
    %2872 = vsyncpa [#allocation3], 1
    %2873 = vsyncpa [#allocation6], 1
    %2874 = vsyncpa [#allocation9], 1
    %2875 = vsyncpa [#allocation4], 1
    %2876 = vsyncpa [#allocation13], 1

// kernel: tpu_custom_call.1
$region0: #{tpu_custom_call.1}
  #allocation0 [shape = 'u32[]', space=smem, size = 0x4, offset = 0x4, fixed_abs, tag = 'smem constant byte address 0x4 - core index']
  #allocation1 [shape = 'u32[144,128]{1,0:T(1,128)}', space=vmem, size = 0x12000, scoped, tag = 'internal scratch']
  %s0 = inlined_call_operand.hbm [shape: f32[256,128], index: 0, kind: input, shape index: {}]
  %s1 = inlined_call_operand.hbm [shape: bf16[128,256], index: 1, kind: input, shape index: {}]
  %s2 = inlined_call_operand.vmem [shape: f32[1,256], index: 2, kind: input, shape index: {}]
  %s3 = inlined_call_operand.hbm [shape: bf16[256,256], index: 3, kind: input, shape index: {}]
  %s4 = inlined_call_operand.vmem [shape: f32[1,256], index: 4, kind: input, shape index: {}]
  %s5 = inlined_call_operand.hbm [shape: bf16[256,128], index: 5, kind: input, shape index: {}]
  %s6 = inlined_call_operand.vmem [shape: f32[1,128], index: 6, kind: input, shape index: {}]
  %s7 = inlined_call_operand.hbm [shape: bf16[128,512], index: 7, kind: input, shape index: {}]
  %s8 = inlined_call_operand.hbm [shape: f32[256,128], index: 8, kind: output, shape index: {0}]
  %s9 = inlined_call_operand.hbm [shape: f32[256,512], index: 9, kind: output, shape index: {1}]
  %s10 = inlined_call_operand.hbm [shape: f32[256,128], index: 10, kind: output, shape index: {2}]
  %11 = xla_tuple %s8, %s9, %s10
  %s12 = sld [smem:[#allocation0]]
  $region78: #{tpu_custom_call.1} parent=0
    _
  %s14 = ssub.s32 1, %s12
  %s15 = scalar_select 0, %s14, %s12
  $region1: #{tpu_custom_call.1} parent=0
    #allocation2 [shape = 'u8[131072]{0}', space=vmem, size = 0x20000, scoped, tag = 'input window, operand 0, single buffered']
    #allocation3 [shape = 's32[1]{0}', space=sflag, size = 0x4, scoped, tag = 'scoped memory for tpu_custom_call.1']
    #allocation4 [shape = 's32[1]{0}', space=sflag, size = 0x4, scoped, tag = 'scoped memory for tpu_custom_call.1']
    #allocation5 [shape = 'u8[65536]{0}', space=vmem, size = 0x10000, scoped, tag = 'input window, operand 1, single buffered']
    #allocation6 [shape = 's32[1]{0}', space=sflag, size = 0x4, scoped, tag = 'scoped memory for tpu_custom_call.1']
    #allocation7 [shape = 'u8[131072]{0}', space=vmem, size = 0x20000, scoped, tag = 'input window, operand 3, single buffered']
    #allocation8 [shape = 'u8[65536]{0}', space=vmem, size = 0x10000, scoped, tag = 'input window, operand 5, single buffered']
    #allocation9 [shape = 's32[1]{0}', space=sflag, size = 0x4, scoped, tag = 'scoped memory for tpu_custom_call.1']
    #allocation10 [shape = 'u8[131072]{0}', space=vmem, size = 0x20000, scoped, tag = 'input window, operand 7, single buffered']
    #allocation11 [shape = 'u8[131072]{0}', space=vmem, size = 0x20000, scoped, tag = 'output window, operand 0, single buffered']
    #allocation12 [shape = 'u8[524288]{0}', space=vmem, size = 0x80000, scoped, tag = 'output window, operand 1, single buffered']
    #allocation13 [shape = 's32[1]{0}', space=sflag, size = 0x4, scoped, tag = 'scoped memory for tpu_custom_call.1']
    #allocation14 [shape = 'u8[131072]{0}', space=vmem, size = 0x20000, scoped, tag = 'output window, operand 2, single buffered']
    %16 = vsyncpa [#allocation3], 0
    %17 = vsyncpa [#allocation6], 0
    %18 = vsyncpa [#allocation9], 0
    %19 = vsyncpa [#allocation4], 0
    %20 = vsyncpa [#allocation13], 0
    // Predicated region
    $region2: #{tpu_custom_call.1} parent=1 // pred_check
      _
    $region3: #{tpu_custom_call.1} parent=1 // pred_check_branch
      %22 = sbr.rel (0) target = $region5
    $region4: #{tpu_custom_call.1} parent=1 // pred_region
      %s24 = ssub.s32 4096, 4096
      %25 = vsyncadd [#allocation3], %s24
      %s26 = sshll.u32 [#allocation2], 4
      %s27 = int_to_ptr.vmem [resolvable:$true] %s26
      %32 = dma.hbm_to_vmem [thread:$0]  %s0, 4096, %s27, [#allocation3], 128, 128, 8
    $region5: #{tpu_custom_call.1} parent=1 // pred_fallthru
      _
    // Predicated region
    $region6: #{tpu_custom_call.1} parent=1 // pred_check
      _
    $region7: #{tpu_custom_call.1} parent=1 // pred_check_branch
      %34 = sbr.rel (0) target = $region9
    $region8: #{tpu_custom_call.1} parent=1 // pred_region
      %s36 = ssub.s32 2048, 2048
      %37 = vsyncadd [#allocation6], %s36
      %s38 = sshll.u32 [#allocation5], 4
      %s39 = int_to_ptr.vmem [resolvable:$true] %s38
      %44 = dma.hbm_to_vmem [thread:$0]  %s1, 2048, %s39, [#allocation6], 128, 128, 8
    $region9: #{tpu_custom_call.1} parent=1 // pred_fallthru
      _
    // Predicated region
    $region10: #{tpu_custom_call.1} parent=1 // pred_check
      _
    $region11: #{tpu_custom_call.1} parent=1 // pred_check_branch
      %46 = sbr.rel (0) target = $region13
    $region12: #{tpu_custom_call.1} parent=1 // pred_region
      _
    $region13: #{tpu_custom_call.1} parent=1 // pred_fallthru
      _
    // Predicated region
    $region14: #{tpu_custom_call.1} parent=1 // pred_check
      _
    $region15: #{tpu_custom_call.1} parent=1 // pred_check_branch
      %48 = sbr.rel (0) target = $region17
    $region16: #{tpu_custom_call.1} parent=1 // pred_region
      %s50 = ssub.s32 4096, 4096
      %51 = vsyncadd [#allocation6], %s50
      %s52 = sshll.u32 [#allocation7], 4
      %s53 = int_to_ptr.vmem [resolvable:$true] %s52
      %58 = dma.hbm_to_vmem [thread:$0]  %s3, 4096, %s53, [#allocation6], 128, 128, 8
    $region17: #{tpu_custom_call.1} parent=1 // pred_fallthru
      _
    // Predicated region
    $region18: #{tpu_custom_call.1} parent=1 // pred_check
      _
    $region19: #{tpu_custom_call.1} parent=1 // pred_check_branch
      %60 = sbr.rel (0) target = $region21
    $region20: #{tpu_custom_call.1} parent=1 // pred_region
      _
    $region21: #{tpu_custom_call.1} parent=1 // pred_fallthru
      _
    // Predicated region
    $region22: #{tpu_custom_call.1} parent=1 // pred_check
      _
    $region23: #{tpu_custom_call.1} parent=1 // pred_check_branch
      %62 = sbr.rel (0) target = $region25
    $region24: #{tpu_custom_call.1} parent=1 // pred_region
      %s64 = ssub.s32 2048, 2048
      %65 = vsyncadd [#allocation9], %s64
      %s66 = sshll.u32 [#allocation8], 4
      %s67 = int_to_ptr.vmem [resolvable:$true] %s66
      %72 = dma.hbm_to_vmem [thread:$0]  %s5, 2048, %s67, [#allocation9], 64, 64, 4
    $region25: #{tpu_custom_call.1} parent=1 // pred_fallthru
      _
    // Predicated region
    $region26: #{tpu_custom_call.1} parent=1 // pred_check
      _
    $region27: #{tpu_custom_call.1} parent=1 // pred_check_branch
      %74 = sbr.rel (0) target = $region29
    $region28: #{tpu_custom_call.1} parent=1 // pred_region
      _
    $region29: #{tpu_custom_call.1} parent=1 // pred_fallthru
      _
    // Predicated region
    $region30: #{tpu_custom_call.1} parent=1 // pred_check
      _
    $region31: #{tpu_custom_call.1} parent=1 // pred_check_branch
      %76 = sbr.rel (0) target = $region33
    $region32: #{tpu_custom_call.1} parent=1 // pred_region
      %s78 = ssub.s32 4096, 4096
      %79 = vsyncadd [#allocation9], %s78
      %s80 = sshll.u32 [#allocation10], 4
      %s81 = int_to_ptr.vmem [resolvable:$true] %s80
      %86 = dma.hbm_to_vmem [thread:$0]  %s7, 4096, %s81, [#allocation9], 256, 256, 16
    $region33: #{tpu_custom_call.1} parent=1 // pred_fallthru
      _
    // Predicated region
    $region34: #{tpu_custom_call.1} parent=1 // pred_check
      _
    $region35: #{tpu_custom_call.1} parent=1 // pred_check_branch
      %88 = sbr.rel (0) target = $region37
    $region36: #{tpu_custom_call.1} parent=1 // pred_region
      %89 = dma.done [#allocation3], 4096
    $region37: #{tpu_custom_call.1} parent=1 // pred_fallthru
      _
    // Predicated region
    $region38: #{tpu_custom_call.1} parent=1 // pred_check
      _
    $region39: #{tpu_custom_call.1} parent=1 // pred_check_branch
      %91 = sbr.rel (0) target = $region41
    $region40: #{tpu_custom_call.1} parent=1 // pred_region
      %92 = dma.done [#allocation6], 2048
    $region41: #{tpu_custom_call.1} parent=1 // pred_fallthru
      _
    // Predicated region
    $region42: #{tpu_custom_call.1} parent=1 // pred_check
      _
    $region43: #{tpu_custom_call.1} parent=1 // pred_check_branch
      %94 = sbr.rel (0) target = $region45
    $region44: #{tpu_custom_call.1} parent=1 // pred_region
      %95 = dma.done [#allocation6], 4096
    $region45: #{tpu_custom_call.1} parent=1 // pred_fallthru
      _
    // Predicated region
    $region46: #{tpu_custom_call.1} parent=1 // pred_check
      _
    $region47: #{tpu_custom_call.1} parent=1 // pred_check_branch
      %97 = sbr.rel (0) target = $region49
    $region48: #{tpu_custom_call.1} parent=1 // pred_region
      %98 = dma.done [#allocation9], 2048
    $region49: #{tpu_custom_call.1} parent=1 // pred_fallthru
      _
    // Predicated region
    $region50: #{tpu_custom_call.1} parent=1 // pred_check
      _
    $region51: #{tpu_custom_call.1} parent=1 // pred_check_branch
      %100 = sbr.rel (0) target = $region53
    $region52: #{tpu_custom_call.1} parent=1 // pred_region
      %101 = dma.done [#allocation9], 4096
    $region53: #{tpu_custom_call.1} parent=1 // pred_fallthru
      _
    %v103 = vld [vmem:[#allocation2] sm:$0xff]
    %v104 = vld [vmem:[#allocation2 + $0x8] sm:$0xff]
    %v105 = vld [vmem:[#allocation2 + $0x10] sm:$0xff]
    %v106 = vld [vmem:[#allocation2 + $0x18] sm:$0xff]
    %v107 = vld [vmem:[#allocation2 + $0x20] sm:$0xff]
    %v108 = vld [vmem:[#allocation2 + $0x28] sm:$0xff]
    %v109 = vld [vmem:[#allocation2 + $0x30] sm:$0xff]
    %v110 = vld [vmem:[#allocation2 + $0x38] sm:$0xff]
    %v111 = vld [vmem:[#allocation2 + $0x40] sm:$0xff]
    %v112 = vld [vmem:[#allocation2 + $0x48] sm:$0xff]
    %v113 = vld [vmem:[#allocation2 + $0x50] sm:$0xff]
    %v114 = vld [vmem:[#allocation2 + $0x58] sm:$0xff]
    %v115 = vld [vmem:[#allocation2 + $0x60] sm:$0xff]
    %v116 = vld [vmem:[#allocation2 + $0x68] sm:$0xff]
    %v117 = vld [vmem:[#allocation2 + $0x70] sm:$0xff]
    %v118 = vld [vmem:[#allocation2 + $0x78] sm:$0xff]
    %v119 = vld [vmem:[#allocation2 + $0x80] sm:$0xff]
    %v120 = vld [vmem:[#allocation2 + $0x88] sm:$0xff]
    %v121 = vld [vmem:[#allocation2 + $0x90] sm:$0xff]
    %v122 = vld [vmem:[#allocation2 + $0x98] sm:$0xff]
    %v123 = vld [vmem:[#allocation2 + $0xa0] sm:$0xff]
    %v124 = vld [vmem:[#allocation2 + $0xa8] sm:$0xff]
    %v125 = vld [vmem:[#allocation2 + $0xb0] sm:$0xff]
    %v126 = vld [vmem:[#allocation2 + $0xb8] sm:$0xff]
    %v127 = vld [vmem:[#allocation2 + $0xc0] sm:$0xff]
    %v128 = vld [vmem:[#allocation2 + $0xc8] sm:$0xff]
    %v129 = vld [vmem:[#allocation2 + $0xd0] sm:$0xff]
    %v130 = vld [vmem:[#allocation2 + $0xd8] sm:$0xff]
    %v131 = vld [vmem:[#allocation2 + $0xe0] sm:$0xff]
    %v132 = vld [vmem:[#allocation2 + $0xe8] sm:$0xff]
    %v133 = vld [vmem:[#allocation2 + $0xf0] sm:$0xff]
    %v134 = vld [vmem:[#allocation2 + $0xf8] sm:$0xff]
    %v135 = vpack.c.bf16 %v104, %v103
    %v136 = vpack.c.bf16 %v106, %v105
    %v137 = vpack.c.bf16 %v108, %v107
    %v138 = vpack.c.bf16 %v110, %v109
    %v139 = vpack.c.bf16 %v112, %v111
    %v140 = vpack.c.bf16 %v114, %v113
    %v141 = vpack.c.bf16 %v116, %v115
    %v142 = vpack.c.bf16 %v118, %v117
    %v143 = vpack.c.bf16 %v120, %v119
    %v144 = vpack.c.bf16 %v122, %v121
    %v145 = vpack.c.bf16 %v124, %v123
    %v146 = vpack.c.bf16 %v126, %v125
    %v147 = vpack.c.bf16 %v128, %v127
    %v148 = vpack.c.bf16 %v130, %v129
    %v149 = vpack.c.bf16 %v132, %v131
    %v150 = vpack.c.bf16 %v134, %v133
    %v151 = vld [vmem:[#allocation5] sm:$0xff]
    %v152 = vld [vmem:[#allocation5 + $0x8] sm:$0xff]
    %v153 = vld [vmem:[#allocation5 + $0x10] sm:$0xff]
    %v154 = vld [vmem:[#allocation5 + $0x18] sm:$0xff]
    %v155 = vld [vmem:[#allocation5 + $0x20] sm:$0xff]
    %v156 = vld [vmem:[#allocation5 + $0x28] sm:$0xff]
    %v157 = vld [vmem:[#allocation5 + $0x30] sm:$0xff]
    %v158 = vld [vmem:[#allocation5 + $0x38] sm:$0xff]
    %v159 = vld [vmem:[#allocation5 + $0x40] sm:$0xff]
    %v160 = vld [vmem:[#allocation5 + $0x48] sm:$0xff]
    %v161 = vld [vmem:[#allocation5 + $0x50] sm:$0xff]
    %v162 = vld [vmem:[#allocation5 + $0x58] sm:$0xff]
    %v163 = vld [vmem:[#allocation5 + $0x60] sm:$0xff]
    %v164 = vld [vmem:[#allocation5 + $0x68] sm:$0xff]
    %v165 = vld [vmem:[#allocation5 + $0x70] sm:$0xff]
    %v166 = vld [vmem:[#allocation5 + $0x78] sm:$0xff]
    %v167 = vld [vmem:[%s2] sm:$0x3]
    %v169 = vlaneseq
    %v170 = vshrl.u32 %v169, 7
    %v171 = vsub.s32 0, %v170
    %v172 = vrot.slane %v167, %v171
    %v173 = vlaneseq
    %v174 = vshrl.u32 %v173, 7
    %v175 = vsub.s32 1, %v174
    %v176 = vrot.slane %v167, %v175
    %v195 = vunpack.c.l.b16 %v151
    %v196 = vunpack.c.h.b16 %v151
    %v197 = vunpack.c.l.b16 %v152
    %v198 = vunpack.c.h.b16 %v152
    %v199 = vunpack.c.l.b16 %v153
    %v200 = vunpack.c.h.b16 %v153
    %v201 = vunpack.c.l.b16 %v154
    %v202 = vunpack.c.h.b16 %v154
    %v203 = vunpack.c.l.b16 %v155
    %v204 = vunpack.c.h.b16 %v155
    %v205 = vunpack.c.l.b16 %v156
    %v206 = vunpack.c.h.b16 %v156
    %v207 = vunpack.c.l.b16 %v157
    %v208 = vunpack.c.h.b16 %v157
    %v209 = vunpack.c.l.b16 %v158
    %v210 = vunpack.c.h.b16 %v158
    %v211 = vunpack.c.l.b16 %v159
    %v212 = vunpack.c.h.b16 %v159
    %v213 = vunpack.c.l.b16 %v160
    %v214 = vunpack.c.h.b16 %v160
    %v215 = vunpack.c.l.b16 %v161
    %v216 = vunpack.c.h.b16 %v161
    %v217 = vunpack.c.l.b16 %v162
    %v218 = vunpack.c.h.b16 %v162
    %v219 = vunpack.c.l.b16 %v163
    %v220 = vunpack.c.h.b16 %v163
    %v221 = vunpack.c.l.b16 %v164
    %v222 = vunpack.c.h.b16 %v164
    %v223 = vunpack.c.l.b16 %v165
    %v224 = vunpack.c.h.b16 %v165
    %v225 = vunpack.c.l.b16 %v166
    %v226 = vunpack.c.h.b16 %v166
    %v227 = vpack.c.b16 %v197, %v195
    %v228 = vpack.c.b16 %v198, %v196
    %v229 = vpack.c.b16 %v201, %v199
    %v230 = vpack.c.b16 %v202, %v200
    %v231 = vpack.c.b16 %v205, %v203
    %v232 = vpack.c.b16 %v206, %v204
    %v233 = vpack.c.b16 %v209, %v207
    %v234 = vpack.c.b16 %v210, %v208
    %v235 = vpack.c.b16 %v213, %v211
    %v236 = vpack.c.b16 %v214, %v212
    %v237 = vpack.c.b16 %v217, %v215
    %v238 = vpack.c.b16 %v218, %v216
    %v239 = vpack.c.b16 %v221, %v219
    %v240 = vpack.c.b16 %v222, %v220
    %v241 = vpack.c.b16 %v225, %v223
    %v242 = vpack.c.b16 %v226, %v224
    %259 = vmatprep.subr.bf16.mxu0 %v242
    %260 = vmatpush1.bf16.msra.mxu0 %v241
    %261 = vmatprep.subr.bf16.mxu0 %v240
    %262 = vmatpush1.bf16.msra.mxu0 %v239
    %263 = vmatprep.subr.bf16.mxu0 %v238
    %264 = vmatpush1.bf16.msra.mxu0 %v237
    %265 = vmatprep.subr.bf16.mxu0 %v236
    %266 = vmatpush1.bf16.msra.mxu0 %v235
    %267 = vmatprep.subr.bf16.mxu0 %v234
    %268 = vmatpush1.bf16.msra.mxu0 %v233
    %269 = vmatprep.subr.bf16.mxu0 %v232
    %270 = vmatpush1.bf16.msra.mxu0 %v231
    %271 = vmatprep.subr.bf16.mxu0 %v230
    %272 = vmatpush1.bf16.msra.mxu0 %v229
    %273 = vmatprep.subr.bf16.mxu0 %v228
    %274 = vmatpush1.bf16.msra.mxu0 %v227
    %275 = vmatprep.subr.bf16.mxu0 0
    %276 = vmatpush2.bf16.msra.mxu0 0
    %277 = vmatprep.subr.bf16.mxu0 0
    %278 = vmatpush2.bf16.msra.mxu0 0
    %279 = vmatprep.subr.bf16.mxu0 0
    %280 = vmatpush2.bf16.msra.mxu0 0
    %281 = vmatprep.subr.bf16.mxu0 0
    %282 = vmatpush2.bf16.msra.mxu0 0
    %283 = vmatprep.subr.bf16.mxu0 0
    %284 = vmatpush2.bf16.msra.mxu0 0
    %285 = vmatprep.subr.bf16.mxu0 0
    %286 = vmatpush2.bf16.msra.mxu0 0
    %287 = vmatprep.subr.bf16.mxu0 0
    %288 = vmatpush2.bf16.msra.mxu0 0
    %289 = vmatprep.subr.bf16.mxu0 0
    %290 = vmatpush2.bf16.msra.mxu0 0
    %291 = vmatprep.mubr.bf16.mxu0 0
    %292 = vmatmul.mubr.bf16.gmra.mxu0 %v135
    %v293 = vpop.f32.mrf.mxu0
    %v294 = vadd.f32 %v172, %v293
    %v295 = vpop.f32.mrf.mxu0
    %v296 = vadd.f32 %v176, %v295
    %v297 = vpop.f32.mrf.mxu0
    %v298 = vadd.f32 %v172, %v297
    %v299 = vpop.f32.mrf.mxu0
    %v300 = vadd.f32 %v176, %v299
    %301 = vmatprep.mubr.bf16.mxu0 0
    %302 = vmatmul.mubr.bf16.gmra.mxu0 %v136
    %v303 = vpop.f32.mrf.mxu0
    %v304 = vadd.f32 %v172, %v303
    %v305 = vpop.f32.mrf.mxu0
    %v306 = vadd.f32 %v176, %v305
    %v307 = vpop.f32.mrf.mxu0
    %v308 = vadd.f32 %v172, %v307
    %v309 = vpop.f32.mrf.mxu0
    %v310 = vadd.f32 %v176, %v309
    %311 = vmatprep.mubr.bf16.mxu0 0
    %312 = vmatmul.mubr.bf16.gmra.mxu0 %v137
    %v313 = vpop.f32.mrf.mxu0
    %v314 = vadd.f32 %v172, %v313
    %v315 = vpop.f32.mrf.mxu0
    %v316 = vadd.f32 %v176, %v315
    %v317 = vpop.f32.mrf.mxu0
    %v318 = vadd.f32 %v172, %v317
    %v319 = vpop.f32.mrf.mxu0
    %v320 = vadd.f32 %v176, %v319
    %321 = vmatprep.mubr.bf16.mxu0 0
    %322 = vmatmul.mubr.bf16.gmra.mxu0 %v138
    %v323 = vpop.f32.mrf.mxu0
    %v324 = vadd.f32 %v172, %v323
    %v325 = vpop.f32.mrf.mxu0
    %v326 = vadd.f32 %v176, %v325
    %v327 = vpop.f32.mrf.mxu0
    %v328 = vadd.f32 %v172, %v327
    %v329 = vpop.f32.mrf.mxu0
    %v330 = vadd.f32 %v176, %v329
    %331 = vmatprep.mubr.bf16.mxu0 0
    %332 = vmatmul.mubr.bf16.gmra.mxu0 %v139
    %v333 = vpop.f32.mrf.mxu0
    %v334 = vadd.f32 %v172, %v333
    %v335 = vpop.f32.mrf.mxu0
    %v336 = vadd.f32 %v176, %v335
    %v337 = vpop.f32.mrf.mxu0
    %v338 = vadd.f32 %v172, %v337
    %v339 = vpop.f32.mrf.mxu0
    %v340 = vadd.f32 %v176, %v339
    %341 = vmatprep.mubr.bf16.mxu0 0
    %342 = vmatmul.mubr.bf16.gmra.mxu0 %v140
    %v343 = vpop.f32.mrf.mxu0
    %v344 = vadd.f32 %v172, %v343
    %v345 = vpop.f32.mrf.mxu0
    %v346 = vadd.f32 %v176, %v345
    %v347 = vpop.f32.mrf.mxu0
    %v348 = vadd.f32 %v172, %v347
    %v349 = vpop.f32.mrf.mxu0
    %v350 = vadd.f32 %v176, %v349
    %351 = vmatprep.mubr.bf16.mxu0 0
    %352 = vmatmul.mubr.bf16.gmra.mxu0 %v141
    %v353 = vpop.f32.mrf.mxu0
    %v354 = vadd.f32 %v172, %v353
    %v355 = vpop.f32.mrf.mxu0
    %v356 = vadd.f32 %v176, %v355
    %v357 = vpop.f32.mrf.mxu0
    %v358 = vadd.f32 %v172, %v357
    %v359 = vpop.f32.mrf.mxu0
    %v360 = vadd.f32 %v176, %v359
    %361 = vmatprep.mubr.bf16.mxu0 0
    %362 = vmatmul.mubr.bf16.gmra.mxu0 %v142
    %v363 = vpop.f32.mrf.mxu0
    %v364 = vadd.f32 %v172, %v363
    %v365 = vpop.f32.mrf.mxu0
    %v366 = vadd.f32 %v176, %v365
    %v367 = vpop.f32.mrf.mxu0
    %v368 = vadd.f32 %v172, %v367
    %v369 = vpop.f32.mrf.mxu0
    %v370 = vadd.f32 %v176, %v369
    %371 = vmatprep.mubr.bf16.mxu0 0
    %372 = vmatmul.mubr.bf16.gmra.mxu0 %v143
    %v373 = vpop.f32.mrf.mxu0
    %v374 = vadd.f32 %v172, %v373
    %v375 = vpop.f32.mrf.mxu0
    %v376 = vadd.f32 %v176, %v375
    %v377 = vpop.f32.mrf.mxu0
    %v378 = vadd.f32 %v172, %v377
    %v379 = vpop.f32.mrf.mxu0
    %v380 = vadd.f32 %v176, %v379
    %381 = vmatprep.mubr.bf16.mxu0 0
    %382 = vmatmul.mubr.bf16.gmra.mxu0 %v144
    %v383 = vpop.f32.mrf.mxu0
    %v384 = vadd.f32 %v172, %v383
    %v385 = vpop.f32.mrf.mxu0
    %v386 = vadd.f32 %v176, %v385
    %v387 = vpop.f32.mrf.mxu0
    %v388 = vadd.f32 %v172, %v387
    %v389 = vpop.f32.mrf.mxu0
    %v390 = vadd.f32 %v176, %v389
    %391 = vmatprep.mubr.bf16.mxu0 0
    %392 = vmatmul.mubr.bf16.gmra.mxu0 %v145
    %v393 = vpop.f32.mrf.mxu0
    %v394 = vadd.f32 %v172, %v393
    %v395 = vpop.f32.mrf.mxu0
    %v396 = vadd.f32 %v176, %v395
    %v397 = vpop.f32.mrf.mxu0
    %v398 = vadd.f32 %v172, %v397
    %v399 = vpop.f32.mrf.mxu0
    %v400 = vadd.f32 %v176, %v399
    %401 = vmatprep.mubr.bf16.mxu0 0
    %402 = vmatmul.mubr.bf16.gmra.mxu0 %v146
    %v403 = vpop.f32.mrf.mxu0
    %v404 = vadd.f32 %v172, %v403
    %v405 = vpop.f32.mrf.mxu0
    %v406 = vadd.f32 %v176, %v405
    %v407 = vpop.f32.mrf.mxu0
    %v408 = vadd.f32 %v172, %v407
    %v409 = vpop.f32.mrf.mxu0
    %v410 = vadd.f32 %v176, %v409
    %411 = vmatprep.mubr.bf16.mxu0 0
    %412 = vmatmul.mubr.bf16.gmra.mxu0 %v147
    %v413 = vpop.f32.mrf.mxu0
    %v414 = vadd.f32 %v172, %v413
    %v415 = vpop.f32.mrf.mxu0
    %v416 = vadd.f32 %v176, %v415
    %v417 = vpop.f32.mrf.mxu0
    %v418 = vadd.f32 %v172, %v417
    %v419 = vpop.f32.mrf.mxu0
    %v420 = vadd.f32 %v176, %v419
    %421 = vmatprep.mubr.bf16.mxu0 0
    %422 = vmatmul.mubr.bf16.gmra.mxu0 %v148
    %v423 = vpop.f32.mrf.mxu0
    %v424 = vadd.f32 %v172, %v423
    %v425 = vpop.f32.mrf.mxu0
    %v426 = vadd.f32 %v176, %v425
    %v427 = vpop.f32.mrf.mxu0
    %v428 = vadd.f32 %v172, %v427
    %v429 = vpop.f32.mrf.mxu0
    %v430 = vadd.f32 %v176, %v429
    %431 = vmatprep.mubr.bf16.mxu0 0
    %432 = vmatmul.mubr.bf16.gmra.mxu0 %v149
    %v433 = vpop.f32.mrf.mxu0
    %v434 = vadd.f32 %v172, %v433
    %v435 = vpop.f32.mrf.mxu0
    %v436 = vadd.f32 %v176, %v435
    %v437 = vpop.f32.mrf.mxu0
    %v438 = vadd.f32 %v172, %v437
    %v439 = vpop.f32.mrf.mxu0
    %v440 = vadd.f32 %v176, %v439
    %441 = vmatprep.mubr.bf16.mxu0 0
    %442 = vmatmul.mubr.bf16.gmra.mxu0 %v150
    %v443 = vpop.f32.mrf.mxu0
    %v444 = vadd.f32 %v172, %v443
    %v445 = vpop.f32.mrf.mxu0
    %v446 = vadd.f32 %v176, %v445
    %v447 = vpop.f32.mrf.mxu0
    %v448 = vadd.f32 %v172, %v447
    %v449 = vpop.f32.mrf.mxu0
    %v450 = vadd.f32 %v176, %v449
    %451 = vdwg.mxu0
    %v452 = vmul.f32 %v294, 0.5
    %v453 = vmul.f32 %v296, 0.5
    %v454 = vmul.f32 %v298, 0.5
    %v455 = vmul.f32 %v300, 0.5
    %v456 = vmul.f32 %v304, 0.5
    %v457 = vmul.f32 %v306, 0.5
    %v458 = vmul.f32 %v308, 0.5
    %v459 = vmul.f32 %v310, 0.5
    %v460 = vmul.f32 %v314, 0.5
    %v461 = vmul.f32 %v316, 0.5
    %v462 = vmul.f32 %v318, 0.5
    %v463 = vmul.f32 %v320, 0.5
    %v464 = vmul.f32 %v324, 0.5
    %v465 = vmul.f32 %v326, 0.5
    %v466 = vmul.f32 %v328, 0.5
    %v467 = vmul.f32 %v330, 0.5
    %v468 = vmul.f32 %v334, 0.5
    %v469 = vmul.f32 %v336, 0.5
    %v470 = vmul.f32 %v338, 0.5
    %v471 = vmul.f32 %v340, 0.5
    %v472 = vmul.f32 %v344, 0.5
    %v473 = vmul.f32 %v346, 0.5
    %v474 = vmul.f32 %v348, 0.5
    %v475 = vmul.f32 %v350, 0.5
    %v476 = vmul.f32 %v354, 0.5
    %v477 = vmul.f32 %v356, 0.5
    %v478 = vmul.f32 %v358, 0.5
    %v479 = vmul.f32 %v360, 0.5
    %v480 = vmul.f32 %v364, 0.5
    %v481 = vmul.f32 %v366, 0.5
    %v482 = vmul.f32 %v368, 0.5
    %v483 = vmul.f32 %v370, 0.5
    %v484 = vmul.f32 %v374, 0.5
    %v485 = vmul.f32 %v376, 0.5
    %v486 = vmul.f32 %v378, 0.5
    %v487 = vmul.f32 %v380, 0.5
    %v488 = vmul.f32 %v384, 0.5
    %v489 = vmul.f32 %v386, 0.5
    %v490 = vmul.f32 %v388, 0.5
    %v491 = vmul.f32 %v390, 0.5
    %v492 = vmul.f32 %v394, 0.5
    %v493 = vmul.f32 %v396, 0.5
    %v494 = vmul.f32 %v398, 0.5
    %v495 = vmul.f32 %v400, 0.5
    %v496 = vmul.f32 %v404, 0.5
    %v497 = vmul.f32 %v406, 0.5
    %v498 = vmul.f32 %v408, 0.5
    %v499 = vmul.f32 %v410, 0.5
    %v500 = vmul.f32 %v414, 0.5
    %v501 = vmul.f32 %v416, 0.5
    %v502 = vmul.f32 %v418, 0.5
    %v503 = vmul.f32 %v420, 0.5
    %v504 = vmul.f32 %v424, 0.5
    %v505 = vmul.f32 %v426, 0.5
    %v506 = vmul.f32 %v428, 0.5
    %v507 = vmul.f32 %v430, 0.5
    %v508 = vmul.f32 %v434, 0.5
    %v509 = vmul.f32 %v436, 0.5
    %v510 = vmul.f32 %v438, 0.5
    %v511 = vmul.f32 %v440, 0.5
    %v512 = vmul.f32 %v444, 0.5
    %v513 = vmul.f32 %v446, 0.5
    %v514 = vmul.f32 %v448, 0.5
    %v515 = vmul.f32 %v450, 0.5
    %v516 = vmul.f32 %v294, 0.70710677
    %v517 = vmul.f32 %v296, 0.70710677
    %v518 = vmul.f32 %v298, 0.70710677
    %v519 = vmul.f32 %v300, 0.70710677
    %v520 = vmul.f32 %v304, 0.70710677
    %v521 = vmul.f32 %v306, 0.70710677
    %v522 = vmul.f32 %v308, 0.70710677
    %v523 = vmul.f32 %v310, 0.70710677
    %v524 = vmul.f32 %v314, 0.70710677
    %v525 = vmul.f32 %v316, 0.70710677
    %v526 = vmul.f32 %v318, 0.70710677
    %v527 = vmul.f32 %v320, 0.70710677
    %v528 = vmul.f32 %v324, 0.70710677
    %v529 = vmul.f32 %v326, 0.70710677
    %v530 = vmul.f32 %v328, 0.70710677
    %v531 = vmul.f32 %v330, 0.70710677
    %v532 = vmul.f32 %v334, 0.70710677
    %v533 = vmul.f32 %v336, 0.70710677
    %v534 = vmul.f32 %v338, 0.70710677
    %v535 = vmul.f32 %v340, 0.70710677
    %v536 = vmul.f32 %v344, 0.70710677
    %v537 = vmul.f32 %v346, 0.70710677
    %v538 = vmul.f32 %v348, 0.70710677
    %v539 = vmul.f32 %v350, 0.70710677
    %v540 = vmul.f32 %v354, 0.70710677
    %v541 = vmul.f32 %v356, 0.70710677
    %v542 = vmul.f32 %v358, 0.70710677
    %v543 = vmul.f32 %v360, 0.70710677
    %v544 = vmul.f32 %v364, 0.70710677
    %v545 = vmul.f32 %v366, 0.70710677
    %v546 = vmul.f32 %v368, 0.70710677
    %v547 = vmul.f32 %v370, 0.70710677
    %v548 = vmul.f32 %v374, 0.70710677
    %v549 = vmul.f32 %v376, 0.70710677
    %v550 = vmul.f32 %v378, 0.70710677
    %v551 = vmul.f32 %v380, 0.70710677
    %v552 = vmul.f32 %v384, 0.70710677
    %v553 = vmul.f32 %v386, 0.70710677
    %v554 = vmul.f32 %v388, 0.70710677
    %v555 = vmul.f32 %v390, 0.70710677
    %v556 = vmul.f32 %v394, 0.70710677
    %v557 = vmul.f32 %v396, 0.70710677
    %v558 = vmul.f32 %v398, 0.70710677
    %v559 = vmul.f32 %v400, 0.70710677
    %v560 = vmul.f32 %v404, 0.70710677
    %v561 = vmul.f32 %v406, 0.70710677
    %v562 = vmul.f32 %v408, 0.70710677
    %v563 = vmul.f32 %v410, 0.70710677
    %v564 = vmul.f32 %v414, 0.70710677
    %v565 = vmul.f32 %v416, 0.70710677
    %v566 = vmul.f32 %v418, 0.70710677
    %v567 = vmul.f32 %v420, 0.70710677
    %v568 = vmul.f32 %v424, 0.70710677
    %v569 = vmul.f32 %v426, 0.70710677
    %v570 = vmul.f32 %v428, 0.70710677
    %v571 = vmul.f32 %v430, 0.70710677
    %v572 = vmul.f32 %v434, 0.70710677
    %v573 = vmul.f32 %v436, 0.70710677
    %v574 = vmul.f32 %v438, 0.70710677
    %v575 = vmul.f32 %v440, 0.70710677
    %v576 = vmul.f32 %v444, 0.70710677
    %v577 = vmul.f32 %v446, 0.70710677
    %v578 = vmul.f32 %v448, 0.70710677
    %v579 = vmul.f32 %v450, 0.70710677
    %v580 = verf.f32.pop %v516
    %v581 = verf.f32.pop %v517
    %v582 = verf.f32.pop %v518
    %v583 = verf.f32.pop %v519
    %v584 = verf.f32.pop %v520
    %v585 = verf.f32.pop %v521
    %v586 = verf.f32.pop %v522
    %v587 = verf.f32.pop %v523
    %v588 = verf.f32.pop %v524
    %v589 = verf.f32.pop %v525
    %v590 = verf.f32.pop %v526
    %v591 = verf.f32.pop %v527
    %v592 = verf.f32.pop %v528
    %v593 = verf.f32.pop %v529
    %v594 = verf.f32.pop %v530
    %v595 = verf.f32.pop %v531
    %v596 = verf.f32.pop %v532
    %v597 = verf.f32.pop %v533
    %v598 = verf.f32.pop %v534
    %v599 = verf.f32.pop %v535
    %v600 = verf.f32.pop %v536
    %v601 = verf.f32.pop %v537
    %v602 = verf.f32.pop %v538
    %v603 = verf.f32.pop %v539
    %v604 = verf.f32.pop %v540
    %v605 = verf.f32.pop %v541
    %v606 = verf.f32.pop %v542
    %v607 = verf.f32.pop %v543
    %v608 = verf.f32.pop %v544
    %v609 = verf.f32.pop %v545
    %v610 = verf.f32.pop %v546
    %v611 = verf.f32.pop %v547
    %v612 = verf.f32.pop %v548
    %v613 = verf.f32.pop %v549
    %v614 = verf.f32.pop %v550
    %v615 = verf.f32.pop %v551
    %v616 = verf.f32.pop %v552
    %v617 = verf.f32.pop %v553
    %v618 = verf.f32.pop %v554
    %v619 = verf.f32.pop %v555
    %v620 = verf.f32.pop %v556
    %v621 = verf.f32.pop %v557
    %v622 = verf.f32.pop %v558
    %v623 = verf.f32.pop %v559
    %v624 = verf.f32.pop %v560
    %v625 = verf.f32.pop %v561
    %v626 = verf.f32.pop %v562
    %v627 = verf.f32.pop %v563
    %v628 = verf.f32.pop %v564
    %v629 = verf.f32.pop %v565
    %v630 = verf.f32.pop %v566
    %v631 = verf.f32.pop %v567
    %v632 = verf.f32.pop %v568
    %v633 = verf.f32.pop %v569
    %v634 = verf.f32.pop %v570
    %v635 = verf.f32.pop %v571
    %v636 = verf.f32.pop %v572
    %v637 = verf.f32.pop %v573
    %v638 = verf.f32.pop %v574
    %v639 = verf.f32.pop %v575
    %v640 = verf.f32.pop %v576
    %v641 = verf.f32.pop %v577
    %v642 = verf.f32.pop %v578
    %v643 = verf.f32.pop %v579
    %v644 = vadd.f32 %v580, 1.0
    %v645 = vadd.f32 %v581, 1.0
    %v646 = vadd.f32 %v582, 1.0
    %v647 = vadd.f32 %v583, 1.0
    %v648 = vadd.f32 %v584, 1.0
    %v649 = vadd.f32 %v585, 1.0
    %v650 = vadd.f32 %v586, 1.0
    %v651 = vadd.f32 %v587, 1.0
    %v652 = vadd.f32 %v588, 1.0
    %v653 = vadd.f32 %v589, 1.0
    %v654 = vadd.f32 %v590, 1.0
    %v655 = vadd.f32 %v591, 1.0
    %v656 = vadd.f32 %v592, 1.0
    %v657 = vadd.f32 %v593, 1.0
    %v658 = vadd.f32 %v594, 1.0
    %v659 = vadd.f32 %v595, 1.0
    %v660 = vadd.f32 %v596, 1.0
    %v661 = vadd.f32 %v597, 1.0
    %v662 = vadd.f32 %v598, 1.0
    %v663 = vadd.f32 %v599, 1.0
    %v664 = vadd.f32 %v600, 1.0
    %v665 = vadd.f32 %v601, 1.0
    %v666 = vadd.f32 %v602, 1.0
    %v667 = vadd.f32 %v603, 1.0
    %v668 = vadd.f32 %v604, 1.0
    %v669 = vadd.f32 %v605, 1.0
    %v670 = vadd.f32 %v606, 1.0
    %v671 = vadd.f32 %v607, 1.0
    %v672 = vadd.f32 %v608, 1.0
    %v673 = vadd.f32 %v609, 1.0
    %v674 = vadd.f32 %v610, 1.0
    %v675 = vadd.f32 %v611, 1.0
    %v676 = vadd.f32 %v612, 1.0
    %v677 = vadd.f32 %v613, 1.0
    %v678 = vadd.f32 %v614, 1.0
    %v679 = vadd.f32 %v615, 1.0
    %v680 = vadd.f32 %v616, 1.0
    %v681 = vadd.f32 %v617, 1.0
    %v682 = vadd.f32 %v618, 1.0
    %v683 = vadd.f32 %v619, 1.0
    %v684 = vadd.f32 %v620, 1.0
    %v685 = vadd.f32 %v621, 1.0
    %v686 = vadd.f32 %v622, 1.0
    %v687 = vadd.f32 %v623, 1.0
    %v688 = vadd.f32 %v624, 1.0
    %v689 = vadd.f32 %v625, 1.0
    %v690 = vadd.f32 %v626, 1.0
    %v691 = vadd.f32 %v627, 1.0
    %v692 = vadd.f32 %v628, 1.0
    %v693 = vadd.f32 %v629, 1.0
    %v694 = vadd.f32 %v630, 1.0
    %v695 = vadd.f32 %v631, 1.0
    %v696 = vadd.f32 %v632, 1.0
    %v697 = vadd.f32 %v633, 1.0
    %v698 = vadd.f32 %v634, 1.0
    %v699 = vadd.f32 %v635, 1.0
    %v700 = vadd.f32 %v636, 1.0
    %v701 = vadd.f32 %v637, 1.0
    %v702 = vadd.f32 %v638, 1.0
    %v703 = vadd.f32 %v639, 1.0
    %v704 = vadd.f32 %v640, 1.0
    %v705 = vadd.f32 %v641, 1.0
    %v706 = vadd.f32 %v642, 1.0
    %v707 = vadd.f32 %v643, 1.0
    %v708 = vmul.f32 %v452, %v644
    %v709 = vmul.f32 %v453, %v645
    %v710 = vmul.f32 %v454, %v646
    %v711 = vmul.f32 %v455, %v647
    %v712 = vmul.f32 %v456, %v648
    %v713 = vmul.f32 %v457, %v649
    %v714 = vmul.f32 %v458, %v650
    %v715 = vmul.f32 %v459, %v651
    %v716 = vmul.f32 %v460, %v652
    %v717 = vmul.f32 %v461, %v653
    %v718 = vmul.f32 %v462, %v654
    %v719 = vmul.f32 %v463, %v655
    %v720 = vmul.f32 %v464, %v656
    %v721 = vmul.f32 %v465, %v657
    %v722 = vmul.f32 %v466, %v658
    %v723 = vmul.f32 %v467, %v659
    %v724 = vmul.f32 %v468, %v660
    %v725 = vmul.f32 %v469, %v661
    %v726 = vmul.f32 %v470, %v662
    %v727 = vmul.f32 %v471, %v663
    %v728 = vmul.f32 %v472, %v664
    %v729 = vmul.f32 %v473, %v665
    %v730 = vmul.f32 %v474, %v666
    %v731 = vmul.f32 %v475, %v667
    %v732 = vmul.f32 %v476, %v668
    %v733 = vmul.f32 %v477, %v669
    %v734 = vmul.f32 %v478, %v670
    %v735 = vmul.f32 %v479, %v671
    %v736 = vmul.f32 %v480, %v672
    %v737 = vmul.f32 %v481, %v673
    %v738 = vmul.f32 %v482, %v674
    %v739 = vmul.f32 %v483, %v675
    %v740 = vmul.f32 %v484, %v676
    %v741 = vmul.f32 %v485, %v677
    %v742 = vmul.f32 %v486, %v678
    %v743 = vmul.f32 %v487, %v679
    %v744 = vmul.f32 %v488, %v680
    %v745 = vmul.f32 %v489, %v681
    %v746 = vmul.f32 %v490, %v682
    %v747 = vmul.f32 %v491, %v683
    %v748 = vmul.f32 %v492, %v684
    %v749 = vmul.f32 %v493, %v685
    %v750 = vmul.f32 %v494, %v686
    %v751 = vmul.f32 %v495, %v687
    %v752 = vmul.f32 %v496, %v688
    %v753 = vmul.f32 %v497, %v689
    %v754 = vmul.f32 %v498, %v690
    %v755 = vmul.f32 %v499, %v691
    %v756 = vmul.f32 %v500, %v692
    %v757 = vmul.f32 %v501, %v693
    %v758 = vmul.f32 %v502, %v694
    %v759 = vmul.f32 %v503, %v695
    %v760 = vmul.f32 %v504, %v696
    %v761 = vmul.f32 %v505, %v697
    %v762 = vmul.f32 %v506, %v698
    %v763 = vmul.f32 %v507, %v699
    %v764 = vmul.f32 %v508, %v700
    %v765 = vmul.f32 %v509, %v701
    %v766 = vmul.f32 %v510, %v702
    %v767 = vmul.f32 %v511, %v703
    %v768 = vmul.f32 %v512, %v704
    %v769 = vmul.f32 %v513, %v705
    %v770 = vmul.f32 %v514, %v706
    %v771 = vmul.f32 %v515, %v707
    %v772 = vpack.c.bf16 %v710, %v708
    %v773 = vpack.c.bf16 %v711, %v709
    %v774 = vpack.c.bf16 %v714, %v712
    %v775 = vpack.c.bf16 %v715, %v713
    %v776 = vpack.c.bf16 %v718, %v716
    %v777 = vpack.c.bf16 %v719, %v717
    %v778 = vpack.c.bf16 %v722, %v720
    %v779 = vpack.c.bf16 %v723, %v721
    %v780 = vpack.c.bf16 %v726, %v724
    %v781 = vpack.c.bf16 %v727, %v725
    %v782 = vpack.c.bf16 %v730, %v728
    %v783 = vpack.c.bf16 %v731, %v729
    %v784 = vpack.c.bf16 %v734, %v732
    %v785 = vpack.c.bf16 %v735, %v733
    %v786 = vpack.c.bf16 %v738, %v736
    %v787 = vpack.c.bf16 %v739, %v737
    %v788 = vpack.c.bf16 %v742, %v740
    %v789 = vpack.c.bf16 %v743, %v741
    %v790 = vpack.c.bf16 %v746, %v744
    %v791 = vpack.c.bf16 %v747, %v745
    %v792 = vpack.c.bf16 %v750, %v748
    %v793 = vpack.c.bf16 %v751, %v749
    %v794 = vpack.c.bf16 %v754, %v752
    %v795 = vpack.c.bf16 %v755, %v753
    %v796 = vpack.c.bf16 %v758, %v756
    %v797 = vpack.c.bf16 %v759, %v757
    %v798 = vpack.c.bf16 %v762, %v760
    %v799 = vpack.c.bf16 %v763, %v761
    %v800 = vpack.c.bf16 %v766, %v764
    %v801 = vpack.c.bf16 %v767, %v765
    %v802 = vpack.c.bf16 %v770, %v768
    %v803 = vpack.c.bf16 %v771, %v769
    %v804 = vld [vmem:[#allocation7] sm:$0xff]
    %v805 = vld [vmem:[#allocation7 + $0x8] sm:$0xff]
    %v806 = vld [vmem:[#allocation7 + $0x10] sm:$0xff]
    %v807 = vld [vmem:[#allocation7 + $0x18] sm:$0xff]
    %v808 = vld [vmem:[#allocation7 + $0x20] sm:$0xff]
    %v809 = vld [vmem:[#allocation7 + $0x28] sm:$0xff]
    %v810 = vld [vmem:[#allocation7 + $0x30] sm:$0xff]
    %v811 = vld [vmem:[#allocation7 + $0x38] sm:$0xff]
    %v812 = vld [vmem:[#allocation7 + $0x40] sm:$0xff]
    %v813 = vld [vmem:[#allocation7 + $0x48] sm:$0xff]
    %v814 = vld [vmem:[#allocation7 + $0x50] sm:$0xff]
    %v815 = vld [vmem:[#allocation7 + $0x58] sm:$0xff]
    %v816 = vld [vmem:[#allocation7 + $0x60] sm:$0xff]
    %v817 = vld [vmem:[#allocation7 + $0x68] sm:$0xff]
    %v818 = vld [vmem:[#allocation7 + $0x70] sm:$0xff]
    %v819 = vld [vmem:[#allocation7 + $0x78] sm:$0xff]
    %v820 = vld [vmem:[#allocation7 + $0x80] sm:$0xff]
    %v821 = vld [vmem:[#allocation7 + $0x88] sm:$0xff]
    %v822 = vld [vmem:[#allocation7 + $0x90] sm:$0xff]
    %v823 = vld [vmem:[#allocation7 + $0x98] sm:$0xff]
    %v824 = vld [vmem:[#allocation7 + $0xa0] sm:$0xff]
    %v825 = vld [vmem:[#allocation7 + $0xa8] sm:$0xff]
    %v826 = vld [vmem:[#allocation7 + $0xb0] sm:$0xff]
    %v827 = vld [vmem:[#allocation7 + $0xb8] sm:$0xff]
    %v828 = vld [vmem:[#allocation7 + $0xc0] sm:$0xff]
    %v829 = vld [vmem:[#allocation7 + $0xc8] sm:$0xff]
    %v830 = vld [vmem:[#allocation7 + $0xd0] sm:$0xff]
    %v831 = vld [vmem:[#allocation7 + $0xd8] sm:$0xff]
    %v832 = vld [vmem:[#allocation7 + $0xe0] sm:$0xff]
    %v833 = vld [vmem:[#allocation7 + $0xe8] sm:$0xff]
    %v834 = vld [vmem:[#allocation7 + $0xf0] sm:$0xff]
    %v835 = vld [vmem:[#allocation7 + $0xf8] sm:$0xff]
    %v836 = vld [vmem:[%s4] sm:$0x3]
    %v838 = vlaneseq
    %v839 = vshrl.u32 %v838, 7
    %v840 = vsub.s32 0, %v839
    %v841 = vrot.slane %v836, %v840
    %v842 = vlaneseq
    %v843 = vshrl.u32 %v842, 7
    %v844 = vsub.s32 1, %v843
    %v845 = vrot.slane %v836, %v844
    %v880 = vunpack.c.l.b16 %v804
    %v881 = vunpack.c.h.b16 %v804
    %v882 = vunpack.c.l.b16 %v805
    %v883 = vunpack.c.h.b16 %v805
    %v884 = vunpack.c.l.b16 %v806
    %v885 = vunpack.c.h.b16 %v806
    %v886 = vunpack.c.l.b16 %v807
    %v887 = vunpack.c.h.b16 %v807
    %v888 = vunpack.c.l.b16 %v808
    %v889 = vunpack.c.h.b16 %v808
    %v890 = vunpack.c.l.b16 %v809
    %v891 = vunpack.c.h.b16 %v809
    %v892 = vunpack.c.l.b16 %v810
    %v893 = vunpack.c.h.b16 %v810
    %v894 = vunpack.c.l.b16 %v811
    %v895 = vunpack.c.h.b16 %v811
    %v896 = vunpack.c.l.b16 %v812
    %v897 = vunpack.c.h.b16 %v812
    %v898 = vunpack.c.l.b16 %v813
    %v899 = vunpack.c.h.b16 %v813
    %v900 = vunpack.c.l.b16 %v814
    %v901 = vunpack.c.h.b16 %v814
    %v902 = vunpack.c.l.b16 %v815
    %v903 = vunpack.c.h.b16 %v815
    %v904 = vunpack.c.l.b16 %v816
    %v905 = vunpack.c.h.b16 %v816
    %v906 = vunpack.c.l.b16 %v817
    %v907 = vunpack.c.h.b16 %v817
    %v908 = vunpack.c.l.b16 %v818
    %v909 = vunpack.c.h.b16 %v818
    %v910 = vunpack.c.l.b16 %v819
    %v911 = vunpack.c.h.b16 %v819
    %v912 = vunpack.c.l.b16 %v820
    %v913 = vunpack.c.h.b16 %v820
    %v914 = vunpack.c.l.b16 %v821
    %v915 = vunpack.c.h.b16 %v821
    %v916 = vunpack.c.l.b16 %v822
    %v917 = vunpack.c.h.b16 %v822
    %v918 = vunpack.c.l.b16 %v823
    %v919 = vunpack.c.h.b16 %v823
    %v920 = vunpack.c.l.b16 %v824
    %v921 = vunpack.c.h.b16 %v824
    %v922 = vunpack.c.l.b16 %v825
    %v923 = vunpack.c.h.b16 %v825
    %v924 = vunpack.c.l.b16 %v826
    %v925 = vunpack.c.h.b16 %v826
    %v926 = vunpack.c.l.b16 %v827
    %v927 = vunpack.c.h.b16 %v827
    %v928 = vunpack.c.l.b16 %v828
    %v929 = vunpack.c.h.b16 %v828
    %v930 = vunpack.c.l.b16 %v829
    %v931 = vunpack.c.h.b16 %v829
    %v932 = vunpack.c.l.b16 %v830
    %v933 = vunpack.c.h.b16 %v830
    %v934 = vunpack.c.l.b16 %v831
    %v935 = vunpack.c.h.b16 %v831
    %v936 = vunpack.c.l.b16 %v832
    %v937 = vunpack.c.h.b16 %v832
    %v938 = vunpack.c.l.b16 %v833
    %v939 = vunpack.c.h.b16 %v833
    %v940 = vunpack.c.l.b16 %v834
    %v941 = vunpack.c.h.b16 %v834
    %v942 = vunpack.c.l.b16 %v835
    %v943 = vunpack.c.h.b16 %v835
    %v944 = vpack.c.b16 %v882, %v880
    %v945 = vpack.c.b16 %v883, %v881
    %v946 = vpack.c.b16 %v886, %v884
    %v947 = vpack.c.b16 %v887, %v885
    %v948 = vpack.c.b16 %v890, %v888
    %v949 = vpack.c.b16 %v891, %v889
    %v950 = vpack.c.b16 %v894, %v892
    %v951 = vpack.c.b16 %v895, %v893
    %v952 = vpack.c.b16 %v898, %v896
    %v953 = vpack.c.b16 %v899, %v897
    %v954 = vpack.c.b16 %v902, %v900
    %v955 = vpack.c.b16 %v903, %v901
    %v956 = vpack.c.b16 %v906, %v904
    %v957 = vpack.c.b16 %v907, %v905
    %v958 = vpack.c.b16 %v910, %v908
    %v959 = vpack.c.b16 %v911, %v909
    %v960 = vpack.c.b16 %v914, %v912
    %v961 = vpack.c.b16 %v915, %v913
    %v962 = vpack.c.b16 %v918, %v916
    %v963 = vpack.c.b16 %v919, %v917
    %v964 = vpack.c.b16 %v922, %v920
    %v965 = vpack.c.b16 %v923, %v921
    %v966 = vpack.c.b16 %v926, %v924
    %v967 = vpack.c.b16 %v927, %v925
    %v968 = vpack.c.b16 %v930, %v928
    %v969 = vpack.c.b16 %v931, %v929
    %v970 = vpack.c.b16 %v934, %v932
    %v971 = vpack.c.b16 %v935, %v933
    %v972 = vpack.c.b16 %v938, %v936
    %v973 = vpack.c.b16 %v939, %v937
    %v974 = vpack.c.b16 %v942, %v940
    %v975 = vpack.c.b16 %v943, %v941
    %1008 = vmatprep.subr.bf16.mxu0 %v959
    %1009 = vmatpush1.bf16.msra.mxu0 %v958
    %1010 = vmatprep.subr.bf16.mxu0 %v957
    %1011 = vmatpush1.bf16.msra.mxu0 %v956
    %1012 = vmatprep.subr.bf16.mxu0 %v955
    %1013 = vmatpush1.bf16.msra.mxu0 %v954
    %1014 = vmatprep.subr.bf16.mxu0 %v953
    %1015 = vmatpush1.bf16.msra.mxu0 %v952
    %1016 = vmatprep.subr.bf16.mxu0 %v951
    %1017 = vmatpush1.bf16.msra.mxu0 %v950
    %1018 = vmatprep.subr.bf16.mxu0 %v949
    %1019 = vmatpush1.bf16.msra.mxu0 %v948
    %1020 = vmatprep.subr.bf16.mxu0 %v947
    %1021 = vmatpush1.bf16.msra.mxu0 %v946
    %1022 = vmatprep.subr.bf16.mxu0 %v945
    %1023 = vmatpush1.bf16.msra.mxu0 %v944
    %1024 = vmatprep.subr.bf16.mxu0 %v975
    %1025 = vmatpush2.bf16.msra.mxu0 %v974
    %1026 = vmatprep.subr.bf16.mxu0 %v973
    %1027 = vmatpush2.bf16.msra.mxu0 %v972
    %1028 = vmatprep.subr.bf16.mxu0 %v971
    %1029 = vmatpush2.bf16.msra.mxu0 %v970
    %1030 = vmatprep.subr.bf16.mxu0 %v969
    %1031 = vmatpush2.bf16.msra.mxu0 %v968
    %1032 = vmatprep.subr.bf16.mxu0 %v967
    %1033 = vmatpush2.bf16.msra.mxu0 %v966
    %1034 = vmatprep.subr.bf16.mxu0 %v965
    %1035 = vmatpush2.bf16.msra.mxu0 %v964
    %1036 = vmatprep.subr.bf16.mxu0 %v963
    %1037 = vmatpush2.bf16.msra.mxu0 %v962
    %1038 = vmatprep.subr.bf16.mxu0 %v961
    %1039 = vmatpush2.bf16.msra.mxu0 %v960
    %1040 = vmatprep.mubr.bf16.mxu0 %v773
    %1041 = vmatmul.mubr.bf16.gmra.mxu0 %v772
    %v1042 = vpop.f32.mrf.mxu0
    %v1043 = vadd.f32 %v841, %v1042
    %v1044 = vpop.f32.mrf.mxu0
    %v1045 = vadd.f32 %v845, %v1044
    %v1046 = vpop.f32.mrf.mxu0
    %v1047 = vadd.f32 %v841, %v1046
    %v1048 = vpop.f32.mrf.mxu0
    %v1049 = vadd.f32 %v845, %v1048
    %1050 = vmatprep.mubr.bf16.mxu0 %v775
    %1051 = vmatmul.mubr.bf16.gmra.mxu0 %v774
    %v1052 = vpop.f32.mrf.mxu0
    %v1053 = vadd.f32 %v841, %v1052
    %v1054 = vpop.f32.mrf.mxu0
    %v1055 = vadd.f32 %v845, %v1054
    %v1056 = vpop.f32.mrf.mxu0
    %v1057 = vadd.f32 %v841, %v1056
    %v1058 = vpop.f32.mrf.mxu0
    %v1059 = vadd.f32 %v845, %v1058
    %1060 = vmatprep.mubr.bf16.mxu0 %v777
    %1061 = vmatmul.mubr.bf16.gmra.mxu0 %v776
    %v1062 = vpop.f32.mrf.mxu0
    %v1063 = vadd.f32 %v841, %v1062
    %v1064 = vpop.f32.mrf.mxu0
    %v1065 = vadd.f32 %v845, %v1064
    %v1066 = vpop.f32.mrf.mxu0
    %v1067 = vadd.f32 %v841, %v1066
    %v1068 = vpop.f32.mrf.mxu0
    %v1069 = vadd.f32 %v845, %v1068
    %1070 = vmatprep.mubr.bf16.mxu0 %v779
    %1071 = vmatmul.mubr.bf16.gmra.mxu0 %v778
    %v1072 = vpop.f32.mrf.mxu0
    %v1073 = vadd.f32 %v841, %v1072
    %v1074 = vpop.f32.mrf.mxu0
    %v1075 = vadd.f32 %v845, %v1074
    %v1076 = vpop.f32.mrf.mxu0
    %v1077 = vadd.f32 %v841, %v1076
    %v1078 = vpop.f32.mrf.mxu0
    %v1079 = vadd.f32 %v845, %v1078
    %1080 = vmatprep.mubr.bf16.mxu0 %v781
    %1081 = vmatmul.mubr.bf16.gmra.mxu0 %v780
    %v1082 = vpop.f32.mrf.mxu0
    %v1083 = vadd.f32 %v841, %v1082
    %v1084 = vpop.f32.mrf.mxu0
    %v1085 = vadd.f32 %v845, %v1084
    %v1086 = vpop.f32.mrf.mxu0
    %v1087 = vadd.f32 %v841, %v1086
    %v1088 = vpop.f32.mrf.mxu0
    %v1089 = vadd.f32 %v845, %v1088
    %1090 = vmatprep.mubr.bf16.mxu0 %v783
    %1091 = vmatmul.mubr.bf16.gmra.mxu0 %v782
    %v1092 = vpop.f32.mrf.mxu0
    %v1093 = vadd.f32 %v841, %v1092
    %v1094 = vpop.f32.mrf.mxu0
    %v1095 = vadd.f32 %v845, %v1094
    %v1096 = vpop.f32.mrf.mxu0
    %v1097 = vadd.f32 %v841, %v1096
    %v1098 = vpop.f32.mrf.mxu0
    %v1099 = vadd.f32 %v845, %v1098
    %1100 = vmatprep.mubr.bf16.mxu0 %v785
    %1101 = vmatmul.mubr.bf16.gmra.mxu0 %v784
    %v1102 = vpop.f32.mrf.mxu0
    %v1103 = vadd.f32 %v841, %v1102
    %v1104 = vpop.f32.mrf.mxu0
    %v1105 = vadd.f32 %v845, %v1104
    %v1106 = vpop.f32.mrf.mxu0
    %v1107 = vadd.f32 %v841, %v1106
    %v1108 = vpop.f32.mrf.mxu0
    %v1109 = vadd.f32 %v845, %v1108
    %1110 = vmatprep.mubr.bf16.mxu0 %v787
    %1111 = vmatmul.mubr.bf16.gmra.mxu0 %v786
    %v1112 = vpop.f32.mrf.mxu0
    %v1113 = vadd.f32 %v841, %v1112
    %v1114 = vpop.f32.mrf.mxu0
    %v1115 = vadd.f32 %v845, %v1114
    %v1116 = vpop.f32.mrf.mxu0
    %v1117 = vadd.f32 %v841, %v1116
    %v1118 = vpop.f32.mrf.mxu0
    %v1119 = vadd.f32 %v845, %v1118
    %1120 = vmatprep.mubr.bf16.mxu0 %v789
    %1121 = vmatmul.mubr.bf16.gmra.mxu0 %v788
    %v1122 = vpop.f32.mrf.mxu0
    %v1123 = vadd.f32 %v841, %v1122
    %v1124 = vpop.f32.mrf.mxu0
    %v1125 = vadd.f32 %v845, %v1124
    %v1126 = vpop.f32.mrf.mxu0
    %v1127 = vadd.f32 %v841, %v1126
    %v1128 = vpop.f32.mrf.mxu0
    %v1129 = vadd.f32 %v845, %v1128
    %1130 = vmatprep.mubr.bf16.mxu0 %v791
    %1131 = vmatmul.mubr.bf16.gmra.mxu0 %v790
    %v1132 = vpop.f32.mrf.mxu0
    %v1133 = vadd.f32 %v841, %v1132
    %v1134 = vpop.f32.mrf.mxu0
    %v1135 = vadd.f32 %v845, %v1134
    %v1136 = vpop.f32.mrf.mxu0
    %v1137 = vadd.f32 %v841, %v1136
    %v1138 = vpop.f32.mrf.mxu0
    %v1139 = vadd.f32 %v845, %v1138
    %1140 = vmatprep.mubr.bf16.mxu0 %v793
    %1141 = vmatmul.mubr.bf16.gmra.mxu0 %v792
    %v1142 = vpop.f32.mrf.mxu0
    %v1143 = vadd.f32 %v841, %v1142
    %v1144 = vpop.f32.mrf.mxu0
    %v1145 = vadd.f32 %v845, %v1144
    %v1146 = vpop.f32.mrf.mxu0
    %v1147 = vadd.f32 %v841, %v1146
    %v1148 = vpop.f32.mrf.mxu0
    %v1149 = vadd.f32 %v845, %v1148
    %1150 = vmatprep.mubr.bf16.mxu0 %v795
    %1151 = vmatmul.mubr.bf16.gmra.mxu0 %v794
    %v1152 = vpop.f32.mrf.mxu0
    %v1153 = vadd.f32 %v841, %v1152
    %v1154 = vpop.f32.mrf.mxu0
    %v1155 = vadd.f32 %v845, %v1154
    %v1156 = vpop.f32.mrf.mxu0
    %v1157 = vadd.f32 %v841, %v1156
    %v1158 = vpop.f32.mrf.mxu0
    %v1159 = vadd.f32 %v845, %v1158
    %1160 = vmatprep.mubr.bf16.mxu0 %v797
    %1161 = vmatmul.mubr.bf16.gmra.mxu0 %v796
    %v1162 = vpop.f32.mrf.mxu0
    %v1163 = vadd.f32 %v841, %v1162
    %v1164 = vpop.f32.mrf.mxu0
    %v1165 = vadd.f32 %v845, %v1164
    %v1166 = vpop.f32.mrf.mxu0
    %v1167 = vadd.f32 %v841, %v1166
    %v1168 = vpop.f32.mrf.mxu0
    %v1169 = vadd.f32 %v845, %v1168
    %1170 = vmatprep.mubr.bf16.mxu0 %v799
    %1171 = vmatmul.mubr.bf16.gmra.mxu0 %v798
    %v1172 = vpop.f32.mrf.mxu0
    %v1173 = vadd.f32 %v841, %v1172
    %v1174 = vpop.f32.mrf.mxu0
    %v1175 = vadd.f32 %v845, %v1174
    %v1176 = vpop.f32.mrf.mxu0
    %v1177 = vadd.f32 %v841, %v1176
    %v1178 = vpop.f32.mrf.mxu0
    %v1179 = vadd.f32 %v845, %v1178
    %1180 = vmatprep.mubr.bf16.mxu0 %v801
    %1181 = vmatmul.mubr.bf16.gmra.mxu0 %v800
    %v1182 = vpop.f32.mrf.mxu0
    %v1183 = vadd.f32 %v841, %v1182
    %v1184 = vpop.f32.mrf.mxu0
    %v1185 = vadd.f32 %v845, %v1184
    %v1186 = vpop.f32.mrf.mxu0
    %v1187 = vadd.f32 %v841, %v1186
    %v1188 = vpop.f32.mrf.mxu0
    %v1189 = vadd.f32 %v845, %v1188
    %1190 = vmatprep.mubr.bf16.mxu0 %v803
    %1191 = vmatmul.mubr.bf16.gmra.mxu0 %v802
    %v1192 = vpop.f32.mrf.mxu0
    %v1193 = vadd.f32 %v841, %v1192
    %v1194 = vpop.f32.mrf.mxu0
    %v1195 = vadd.f32 %v845, %v1194
    %v1196 = vpop.f32.mrf.mxu0
    %v1197 = vadd.f32 %v841, %v1196
    %v1198 = vpop.f32.mrf.mxu0
    %v1199 = vadd.f32 %v845, %v1198
    %1200 = vdwg.mxu0
    %v1201 = vmul.f32 %v1043, 0.5
    %v1202 = vmul.f32 %v1045, 0.5
    %v1203 = vmul.f32 %v1047, 0.5
    %v1204 = vmul.f32 %v1049, 0.5
    %v1205 = vmul.f32 %v1053, 0.5
    %v1206 = vmul.f32 %v1055, 0.5
    %v1207 = vmul.f32 %v1057, 0.5
    %v1208 = vmul.f32 %v1059, 0.5
    %v1209 = vmul.f32 %v1063, 0.5
    %v1210 = vmul.f32 %v1065, 0.5
    %v1211 = vmul.f32 %v1067, 0.5
    %v1212 = vmul.f32 %v1069, 0.5
    %v1213 = vmul.f32 %v1073, 0.5
    %v1214 = vmul.f32 %v1075, 0.5
    %v1215 = vmul.f32 %v1077, 0.5
    %v1216 = vmul.f32 %v1079, 0.5
    %v1217 = vmul.f32 %v1083, 0.5
    %v1218 = vmul.f32 %v1085, 0.5
    %v1219 = vmul.f32 %v1087, 0.5
    %v1220 = vmul.f32 %v1089, 0.5
    %v1221 = vmul.f32 %v1093, 0.5
    %v1222 = vmul.f32 %v1095, 0.5
    %v1223 = vmul.f32 %v1097, 0.5
    %v1224 = vmul.f32 %v1099, 0.5
    %v1225 = vmul.f32 %v1103, 0.5
    %v1226 = vmul.f32 %v1105, 0.5
    %v1227 = vmul.f32 %v1107, 0.5
    %v1228 = vmul.f32 %v1109, 0.5
    %v1229 = vmul.f32 %v1113, 0.5
    %v1230 = vmul.f32 %v1115, 0.5
    %v1231 = vmul.f32 %v1117, 0.5
    %v1232 = vmul.f32 %v1119, 0.5
    %v1233 = vmul.f32 %v1123, 0.5
    %v1234 = vmul.f32 %v1125, 0.5
    %v1235 = vmul.f32 %v1127, 0.5
    %v1236 = vmul.f32 %v1129, 0.5
    %v1237 = vmul.f32 %v1133, 0.5
    %v1238 = vmul.f32 %v1135, 0.5
    %v1239 = vmul.f32 %v1137, 0.5
    %v1240 = vmul.f32 %v1139, 0.5
    %v1241 = vmul.f32 %v1143, 0.5
    %v1242 = vmul.f32 %v1145, 0.5
    %v1243 = vmul.f32 %v1147, 0.5
    %v1244 = vmul.f32 %v1149, 0.5
    %v1245 = vmul.f32 %v1153, 0.5
    %v1246 = vmul.f32 %v1155, 0.5
    %v1247 = vmul.f32 %v1157, 0.5
    %v1248 = vmul.f32 %v1159, 0.5
    %v1249 = vmul.f32 %v1163, 0.5
    %v1250 = vmul.f32 %v1165, 0.5
    %v1251 = vmul.f32 %v1167, 0.5
    %v1252 = vmul.f32 %v1169, 0.5
    %v1253 = vmul.f32 %v1173, 0.5
    %v1254 = vmul.f32 %v1175, 0.5
    %v1255 = vmul.f32 %v1177, 0.5
    %v1256 = vmul.f32 %v1179, 0.5
    %v1257 = vmul.f32 %v1183, 0.5
    %v1258 = vmul.f32 %v1185, 0.5
    %v1259 = vmul.f32 %v1187, 0.5
    %v1260 = vmul.f32 %v1189, 0.5
    %v1261 = vmul.f32 %v1193, 0.5
    %v1262 = vmul.f32 %v1195, 0.5
    %v1263 = vmul.f32 %v1197, 0.5
    %v1264 = vmul.f32 %v1199, 0.5
    %v1265 = vmul.f32 %v1043, 0.70710677
    %v1266 = vmul.f32 %v1045, 0.70710677
    %v1267 = vmul.f32 %v1047, 0.70710677
    %v1268 = vmul.f32 %v1049, 0.70710677
    %v1269 = vmul.f32 %v1053, 0.70710677
    %v1270 = vmul.f32 %v1055, 0.70710677
    %v1271 = vmul.f32 %v1057, 0.70710677
    %v1272 = vmul.f32 %v1059, 0.70710677
    %v1273 = vmul.f32 %v1063, 0.70710677
    %v1274 = vmul.f32 %v1065, 0.70710677
    %v1275 = vmul.f32 %v1067, 0.70710677
    %v1276 = vmul.f32 %v1069, 0.70710677
    %v1277 = vmul.f32 %v1073, 0.70710677
    %v1278 = vmul.f32 %v1075, 0.70710677
    %v1279 = vmul.f32 %v1077, 0.70710677
    %v1280 = vmul.f32 %v1079, 0.70710677
    %v1281 = vmul.f32 %v1083, 0.70710677
    %v1282 = vmul.f32 %v1085, 0.70710677
    %v1283 = vmul.f32 %v1087, 0.70710677
    %v1284 = vmul.f32 %v1089, 0.70710677
    %v1285 = vmul.f32 %v1093, 0.70710677
    %v1286 = vmul.f32 %v1095, 0.70710677
    %v1287 = vmul.f32 %v1097, 0.70710677
    %v1288 = vmul.f32 %v1099, 0.70710677
    %v1289 = vmul.f32 %v1103, 0.70710677
    %v1290 = vmul.f32 %v1105, 0.70710677
    %v1291 = vmul.f32 %v1107, 0.70710677
    %v1292 = vmul.f32 %v1109, 0.70710677
    %v1293 = vmul.f32 %v1113, 0.70710677
    %v1294 = vmul.f32 %v1115, 0.70710677
    %v1295 = vmul.f32 %v1117, 0.70710677
    %v1296 = vmul.f32 %v1119, 0.70710677
    %v1297 = vmul.f32 %v1123, 0.70710677
    %v1298 = vmul.f32 %v1125, 0.70710677
    %v1299 = vmul.f32 %v1127, 0.70710677
    %v1300 = vmul.f32 %v1129, 0.70710677
    %v1301 = vmul.f32 %v1133, 0.70710677
    %v1302 = vmul.f32 %v1135, 0.70710677
    %v1303 = vmul.f32 %v1137, 0.70710677
    %v1304 = vmul.f32 %v1139, 0.70710677
    %v1305 = vmul.f32 %v1143, 0.70710677
    %v1306 = vmul.f32 %v1145, 0.70710677
    %v1307 = vmul.f32 %v1147, 0.70710677
    %v1308 = vmul.f32 %v1149, 0.70710677
    %v1309 = vmul.f32 %v1153, 0.70710677
    %v1310 = vmul.f32 %v1155, 0.70710677
    %v1311 = vmul.f32 %v1157, 0.70710677
    %v1312 = vmul.f32 %v1159, 0.70710677
    %v1313 = vmul.f32 %v1163, 0.70710677
    %v1314 = vmul.f32 %v1165, 0.70710677
    %v1315 = vmul.f32 %v1167, 0.70710677
    %v1316 = vmul.f32 %v1169, 0.70710677
    %v1317 = vmul.f32 %v1173, 0.70710677
    %v1318 = vmul.f32 %v1175, 0.70710677
    %v1319 = vmul.f32 %v1177, 0.70710677
    %v1320 = vmul.f32 %v1179, 0.70710677
    %v1321 = vmul.f32 %v1183, 0.70710677
    %v1322 = vmul.f32 %v1185, 0.70710677
    %v1323 = vmul.f32 %v1187, 0.70710677
    %v1324 = vmul.f32 %v1189, 0.70710677
    %v1325 = vmul.f32 %v1193, 0.70710677
    %v1326 = vmul.f32 %v1195, 0.70710677
    %v1327 = vmul.f32 %v1197, 0.70710677
    %v1328 = vmul.f32 %v1199, 0.70710677
    %v1329 = verf.f32.pop %v1265
    %v1330 = verf.f32.pop %v1266
    %v1331 = verf.f32.pop %v1267
    %v1332 = verf.f32.pop %v1268
    %v1333 = verf.f32.pop %v1269
    %v1334 = verf.f32.pop %v1270
    %v1335 = verf.f32.pop %v1271
    %v1336 = verf.f32.pop %v1272
    %v1337 = verf.f32.pop %v1273
    %v1338 = verf.f32.pop %v1274
    %v1339 = verf.f32.pop %v1275
    %v1340 = verf.f32.pop %v1276
    %v1341 = verf.f32.pop %v1277
    %v1342 = verf.f32.pop %v1278
    %v1343 = verf.f32.pop %v1279
    %v1344 = verf.f32.pop %v1280
    %v1345 = verf.f32.pop %v1281
    %v1346 = verf.f32.pop %v1282
    %v1347 = verf.f32.pop %v1283
    %v1348 = verf.f32.pop %v1284
    %v1349 = verf.f32.pop %v1285
    %v1350 = verf.f32.pop %v1286
    %v1351 = verf.f32.pop %v1287
    %v1352 = verf.f32.pop %v1288
    %v1353 = verf.f32.pop %v1289
    %v1354 = verf.f32.pop %v1290
    %v1355 = verf.f32.pop %v1291
    %v1356 = verf.f32.pop %v1292
    %v1357 = verf.f32.pop %v1293
    %v1358 = verf.f32.pop %v1294
    %v1359 = verf.f32.pop %v1295
    %v1360 = verf.f32.pop %v1296
    %v1361 = verf.f32.pop %v1297
    %v1362 = verf.f32.pop %v1298
    %v1363 = verf.f32.pop %v1299
    %v1364 = verf.f32.pop %v1300
    %v1365 = verf.f32.pop %v1301
    %v1366 = verf.f32.pop %v1302
    %v1367 = verf.f32.pop %v1303
    %v1368 = verf.f32.pop %v1304
    %v1369 = verf.f32.pop %v1305
    %v1370 = verf.f32.pop %v1306
    %v1371 = verf.f32.pop %v1307
    %v1372 = verf.f32.pop %v1308
    %v1373 = verf.f32.pop %v1309
    %v1374 = verf.f32.pop %v1310
    %v1375 = verf.f32.pop %v1311
    %v1376 = verf.f32.pop %v1312
    %v1377 = verf.f32.pop %v1313
    %v1378 = verf.f32.pop %v1314
    %v1379 = verf.f32.pop %v1315
    %v1380 = verf.f32.pop %v1316
    %v1381 = verf.f32.pop %v1317
    %v1382 = verf.f32.pop %v1318
    %v1383 = verf.f32.pop %v1319
    %v1384 = verf.f32.pop %v1320
    %v1385 = verf.f32.pop %v1321
    %v1386 = verf.f32.pop %v1322
    %v1387 = verf.f32.pop %v1323
    %v1388 = verf.f32.pop %v1324
    %v1389 = verf.f32.pop %v1325
    %v1390 = verf.f32.pop %v1326
    %v1391 = verf.f32.pop %v1327
    %v1392 = verf.f32.pop %v1328
    %v1393 = vadd.f32 %v1329, 1.0
    %v1394 = vadd.f32 %v1330, 1.0
    %v1395 = vadd.f32 %v1331, 1.0
    %v1396 = vadd.f32 %v1332, 1.0
    %v1397 = vadd.f32 %v1333, 1.0
    %v1398 = vadd.f32 %v1334, 1.0
    %v1399 = vadd.f32 %v1335, 1.0
    %v1400 = vadd.f32 %v1336, 1.0
    %v1401 = vadd.f32 %v1337, 1.0
    %v1402 = vadd.f32 %v1338, 1.0
    %v1403 = vadd.f32 %v1339, 1.0
    %v1404 = vadd.f32 %v1340, 1.0
    %v1405 = vadd.f32 %v1341, 1.0
    %v1406 = vadd.f32 %v1342, 1.0
    %v1407 = vadd.f32 %v1343, 1.0
    %v1408 = vadd.f32 %v1344, 1.0
    %v1409 = vadd.f32 %v1345, 1.0
    %v1410 = vadd.f32 %v1346, 1.0
    %v1411 = vadd.f32 %v1347, 1.0
    %v1412 = vadd.f32 %v1348, 1.0
    %v1413 = vadd.f32 %v1349, 1.0
    %v1414 = vadd.f32 %v1350, 1.0
    %v1415 = vadd.f32 %v1351, 1.0
    %v1416 = vadd.f32 %v1352, 1.0
    %v1417 = vadd.f32 %v1353, 1.0
    %v1418 = vadd.f32 %v1354, 1.0
    %v1419 = vadd.f32 %v1355, 1.0
    %v1420 = vadd.f32 %v1356, 1.0
    %v1421 = vadd.f32 %v1357, 1.0
    %v1422 = vadd.f32 %v1358, 1.0
    %v1423 = vadd.f32 %v1359, 1.0
    %v1424 = vadd.f32 %v1360, 1.0
    %v1425 = vadd.f32 %v1361, 1.0
    %v1426 = vadd.f32 %v1362, 1.0
    %v1427 = vadd.f32 %v1363, 1.0
    %v1428 = vadd.f32 %v1364, 1.0
    %v1429 = vadd.f32 %v1365, 1.0
    %v1430 = vadd.f32 %v1366, 1.0
    %v1431 = vadd.f32 %v1367, 1.0
    %v1432 = vadd.f32 %v1368, 1.0
    %v1433 = vadd.f32 %v1369, 1.0
    %v1434 = vadd.f32 %v1370, 1.0
    %v1435 = vadd.f32 %v1371, 1.0
    %v1436 = vadd.f32 %v1372, 1.0
    %v1437 = vadd.f32 %v1373, 1.0
    %v1438 = vadd.f32 %v1374, 1.0
    %v1439 = vadd.f32 %v1375, 1.0
    %v1440 = vadd.f32 %v1376, 1.0
    %v1441 = vadd.f32 %v1377, 1.0
    %v1442 = vadd.f32 %v1378, 1.0
    %v1443 = vadd.f32 %v1379, 1.0
    %v1444 = vadd.f32 %v1380, 1.0
    %v1445 = vadd.f32 %v1381, 1.0
    %v1446 = vadd.f32 %v1382, 1.0
    %v1447 = vadd.f32 %v1383, 1.0
    %v1448 = vadd.f32 %v1384, 1.0
    %v1449 = vadd.f32 %v1385, 1.0
    %v1450 = vadd.f32 %v1386, 1.0
    %v1451 = vadd.f32 %v1387, 1.0
    %v1452 = vadd.f32 %v1388, 1.0
    %v1453 = vadd.f32 %v1389, 1.0
    %v1454 = vadd.f32 %v1390, 1.0
    %v1455 = vadd.f32 %v1391, 1.0
    %v1456 = vadd.f32 %v1392, 1.0
    %v1457 = vmul.f32 %v1201, %v1393
    %v1458 = vmul.f32 %v1202, %v1394
    %v1459 = vmul.f32 %v1203, %v1395
    %v1460 = vmul.f32 %v1204, %v1396
    %v1461 = vmul.f32 %v1205, %v1397
    %v1462 = vmul.f32 %v1206, %v1398
    %v1463 = vmul.f32 %v1207, %v1399
    %v1464 = vmul.f32 %v1208, %v1400
    %v1465 = vmul.f32 %v1209, %v1401
    %v1466 = vmul.f32 %v1210, %v1402
    %v1467 = vmul.f32 %v1211, %v1403
    %v1468 = vmul.f32 %v1212, %v1404
    %v1469 = vmul.f32 %v1213, %v1405
    %v1470 = vmul.f32 %v1214, %v1406
    %v1471 = vmul.f32 %v1215, %v1407
    %v1472 = vmul.f32 %v1216, %v1408
    %v1473 = vmul.f32 %v1217, %v1409
    %v1474 = vmul.f32 %v1218, %v1410
    %v1475 = vmul.f32 %v1219, %v1411
    %v1476 = vmul.f32 %v1220, %v1412
    %v1477 = vmul.f32 %v1221, %v1413
    %v1478 = vmul.f32 %v1222, %v1414
    %v1479 = vmul.f32 %v1223, %v1415
    %v1480 = vmul.f32 %v1224, %v1416
    %v1481 = vmul.f32 %v1225, %v1417
    %v1482 = vmul.f32 %v1226, %v1418
    %v1483 = vmul.f32 %v1227, %v1419
    %v1484 = vmul.f32 %v1228, %v1420
    %v1485 = vmul.f32 %v1229, %v1421
    %v1486 = vmul.f32 %v1230, %v1422
    %v1487 = vmul.f32 %v1231, %v1423
    %v1488 = vmul.f32 %v1232, %v1424
    %v1489 = vmul.f32 %v1233, %v1425
    %v1490 = vmul.f32 %v1234, %v1426
    %v1491 = vmul.f32 %v1235, %v1427
    %v1492 = vmul.f32 %v1236, %v1428
    %v1493 = vmul.f32 %v1237, %v1429
    %v1494 = vmul.f32 %v1238, %v1430
    %v1495 = vmul.f32 %v1239, %v1431
    %v1496 = vmul.f32 %v1240, %v1432
    %v1497 = vmul.f32 %v1241, %v1433
    %v1498 = vmul.f32 %v1242, %v1434
    %v1499 = vmul.f32 %v1243, %v1435
    %v1500 = vmul.f32 %v1244, %v1436
    %v1501 = vmul.f32 %v1245, %v1437
    %v1502 = vmul.f32 %v1246, %v1438
    %v1503 = vmul.f32 %v1247, %v1439
    %v1504 = vmul.f32 %v1248, %v1440
    %v1505 = vmul.f32 %v1249, %v1441
    %v1506 = vmul.f32 %v1250, %v1442
    %v1507 = vmul.f32 %v1251, %v1443
    %v1508 = vmul.f32 %v1252, %v1444
    %v1509 = vmul.f32 %v1253, %v1445
    %v1510 = vmul.f32 %v1254, %v1446
    %v1511 = vmul.f32 %v1255, %v1447
    %v1512 = vmul.f32 %v1256, %v1448
    %v1513 = vmul.f32 %v1257, %v1449
    %v1514 = vmul.f32 %v1258, %v1450
    %v1515 = vmul.f32 %v1259, %v1451
    %v1516 = vmul.f32 %v1260, %v1452
    %v1517 = vmul.f32 %v1261, %v1453
    %v1518 = vmul.f32 %v1262, %v1454
    %v1519 = vmul.f32 %v1263, %v1455
    %v1520 = vmul.f32 %v1264, %v1456
    %v1521 = vpack.c.bf16 %v1459, %v1457
    %v1522 = vpack.c.bf16 %v1460, %v1458
    %v1523 = vpack.c.bf16 %v1463, %v1461
    %v1524 = vpack.c.bf16 %v1464, %v1462
    %v1525 = vpack.c.bf16 %v1467, %v1465
    %v1526 = vpack.c.bf16 %v1468, %v1466
    %v1527 = vpack.c.bf16 %v1471, %v1469
    %v1528 = vpack.c.bf16 %v1472, %v1470
    %v1529 = vpack.c.bf16 %v1475, %v1473
    %v1530 = vpack.c.bf16 %v1476, %v1474
    %v1531 = vpack.c.bf16 %v1479, %v1477
    %v1532 = vpack.c.bf16 %v1480, %v1478
    %v1533 = vpack.c.bf16 %v1483, %v1481
    %v1534 = vpack.c.bf16 %v1484, %v1482
    %v1535 = vpack.c.bf16 %v1487, %v1485
    %v1536 = vpack.c.bf16 %v1488, %v1486
    %v1537 = vpack.c.bf16 %v1491, %v1489
    %v1538 = vpack.c.bf16 %v1492, %v1490
    %v1539 = vpack.c.bf16 %v1495, %v1493
    %v1540 = vpack.c.bf16 %v1496, %v1494
    %v1541 = vpack.c.bf16 %v1499, %v1497
    %v1542 = vpack.c.bf16 %v1500, %v1498
    %v1543 = vpack.c.bf16 %v1503, %v1501
    %v1544 = vpack.c.bf16 %v1504, %v1502
    %v1545 = vpack.c.bf16 %v1507, %v1505
    %v1546 = vpack.c.bf16 %v1508, %v1506
    %v1547 = vpack.c.bf16 %v1511, %v1509
    %v1548 = vpack.c.bf16 %v1512, %v1510
    %v1549 = vpack.c.bf16 %v1515, %v1513
    %v1550 = vpack.c.bf16 %v1516, %v1514
    %v1551 = vpack.c.bf16 %v1519, %v1517
    %v1552 = vpack.c.bf16 %v1520, %v1518
    %v1553 = vld [vmem:[#allocation8] sm:$0xf]
    %v1554 = vld [vmem:[#allocation8 + $0x4] sm:$0xf]
    %v1555 = vld [vmem:[#allocation8 + $0x8] sm:$0xf]
    %v1556 = vld [vmem:[#allocation8 + $0xc] sm:$0xf]
    %v1557 = vld [vmem:[#allocation8 + $0x10] sm:$0xf]
    %v1558 = vld [vmem:[#allocation8 + $0x14] sm:$0xf]
    %v1559 = vld [vmem:[#allocation8 + $0x18] sm:$0xf]
    %v1560 = vld [vmem:[#allocation8 + $0x1c] sm:$0xf]
    %v1561 = vld [vmem:[#allocation8 + $0x20] sm:$0xf]
    %v1562 = vld [vmem:[#allocation8 + $0x24] sm:$0xf]
    %v1563 = vld [vmem:[#allocation8 + $0x28] sm:$0xf]
    %v1564 = vld [vmem:[#allocation8 + $0x2c] sm:$0xf]
    %v1565 = vld [vmem:[#allocation8 + $0x30] sm:$0xf]
    %v1566 = vld [vmem:[#allocation8 + $0x34] sm:$0xf]
    %v1567 = vld [vmem:[#allocation8 + $0x38] sm:$0xf]
    %v1568 = vld [vmem:[#allocation8 + $0x3c] sm:$0xf]
    %v1569 = vld [vmem:[#allocation8 + $0x40] sm:$0xf]
    %v1570 = vld [vmem:[#allocation8 + $0x44] sm:$0xf]
    %v1571 = vld [vmem:[#allocation8 + $0x48] sm:$0xf]
    %v1572 = vld [vmem:[#allocation8 + $0x4c] sm:$0xf]
    %v1573 = vld [vmem:[#allocation8 + $0x50] sm:$0xf]
    %v1574 = vld [vmem:[#allocation8 + $0x54] sm:$0xf]
    %v1575 = vld [vmem:[#allocation8 + $0x58] sm:$0xf]
    %v1576 = vld [vmem:[#allocation8 + $0x5c] sm:$0xf]
    %v1577 = vld [vmem:[#allocation8 + $0x60] sm:$0xf]
    %v1578 = vld [vmem:[#allocation8 + $0x64] sm:$0xf]
    %v1579 = vld [vmem:[#allocation8 + $0x68] sm:$0xf]
    %v1580 = vld [vmem:[#allocation8 + $0x6c] sm:$0xf]
    %v1581 = vld [vmem:[#allocation8 + $0x70] sm:$0xf]
    %v1582 = vld [vmem:[#allocation8 + $0x74] sm:$0xf]
    %v1583 = vld [vmem:[#allocation8 + $0x78] sm:$0xf]
    %v1584 = vld [vmem:[#allocation8 + $0x7c] sm:$0xf]
    %v1585 = vld [vmem:[%s6] sm:$0x1]
    %v1587 = vlaneseq
    %v1588 = vshrl.u32 %v1587, 7
    %v1589 = vsub.s32 0, %v1588
    %v1590 = vrot.slane %v1585, %v1589
    %v1624 = vunpack.c.l.b16 %v1553
    %v1625 = vunpack.c.l.b16 %v1554
    %v1626 = vunpack.c.l.b16 %v1555
    %v1627 = vunpack.c.l.b16 %v1556
    %v1628 = vunpack.c.l.b16 %v1557
    %v1629 = vunpack.c.l.b16 %v1558
    %v1630 = vunpack.c.l.b16 %v1559
    %v1631 = vunpack.c.l.b16 %v1560
    %v1632 = vunpack.c.l.b16 %v1561
    %v1633 = vunpack.c.l.b16 %v1562
    %v1634 = vunpack.c.l.b16 %v1563
    %v1635 = vunpack.c.l.b16 %v1564
    %v1636 = vunpack.c.l.b16 %v1565
    %v1637 = vunpack.c.l.b16 %v1566
    %v1638 = vunpack.c.l.b16 %v1567
    %v1639 = vunpack.c.l.b16 %v1568
    %v1640 = vunpack.c.l.b16 %v1569
    %v1641 = vunpack.c.l.b16 %v1570
    %v1642 = vunpack.c.l.b16 %v1571
    %v1643 = vunpack.c.l.b16 %v1572
    %v1644 = vunpack.c.l.b16 %v1573
    %v1645 = vunpack.c.l.b16 %v1574
    %v1646 = vunpack.c.l.b16 %v1575
    %v1647 = vunpack.c.l.b16 %v1576
    %v1648 = vunpack.c.l.b16 %v1577
    %v1649 = vunpack.c.l.b16 %v1578
    %v1650 = vunpack.c.l.b16 %v1579
    %v1651 = vunpack.c.l.b16 %v1580
    %v1652 = vunpack.c.l.b16 %v1581
    %v1653 = vunpack.c.l.b16 %v1582
    %v1654 = vunpack.c.l.b16 %v1583
    %v1655 = vunpack.c.l.b16 %v1584
    %v1656 = vpack.c.b16 %v1625, %v1624
    %v1657 = vpack.c.b16 %v1627, %v1626
    %v1658 = vpack.c.b16 %v1629, %v1628
    %v1659 = vpack.c.b16 %v1631, %v1630
    %v1660 = vpack.c.b16 %v1633, %v1632
    %v1661 = vpack.c.b16 %v1635, %v1634
    %v1662 = vpack.c.b16 %v1637, %v1636
    %v1663 = vpack.c.b16 %v1639, %v1638
    %v1664 = vpack.c.b16 %v1641, %v1640
    %v1665 = vpack.c.b16 %v1643, %v1642
    %v1666 = vpack.c.b16 %v1645, %v1644
    %v1667 = vpack.c.b16 %v1647, %v1646
    %v1668 = vpack.c.b16 %v1649, %v1648
    %v1669 = vpack.c.b16 %v1651, %v1650
    %v1670 = vpack.c.b16 %v1653, %v1652
    %v1671 = vpack.c.b16 %v1655, %v1654
    %1688 = vmatprep.subr.bf16.mxu0 0
    %1689 = vmatpush1.bf16.msra.mxu0 %v1663
    %1690 = vmatprep.subr.bf16.mxu0 0
    %1691 = vmatpush1.bf16.msra.mxu0 %v1662
    %1692 = vmatprep.subr.bf16.mxu0 0
    %1693 = vmatpush1.bf16.msra.mxu0 %v1661
    %1694 = vmatprep.subr.bf16.mxu0 0
    %1695 = vmatpush1.bf16.msra.mxu0 %v1660
    %1696 = vmatprep.subr.bf16.mxu0 0
    %1697 = vmatpush1.bf16.msra.mxu0 %v1659
    %1698 = vmatprep.subr.bf16.mxu0 0
    %1699 = vmatpush1.bf16.msra.mxu0 %v1658
    %1700 = vmatprep.subr.bf16.mxu0 0
    %1701 = vmatpush1.bf16.msra.mxu0 %v1657
    %1702 = vmatprep.subr.bf16.mxu0 0
    %1703 = vmatpush1.bf16.msra.mxu0 %v1656
    %1704 = vmatprep.subr.bf16.mxu0 0
    %1705 = vmatpush2.bf16.msra.mxu0 %v1671
    %1706 = vmatprep.subr.bf16.mxu0 0
    %1707 = vmatpush2.bf16.msra.mxu0 %v1670
    %1708 = vmatprep.subr.bf16.mxu0 0
    %1709 = vmatpush2.bf16.msra.mxu0 %v1669
    %1710 = vmatprep.subr.bf16.mxu0 0
    %1711 = vmatpush2.bf16.msra.mxu0 %v1668
    %1712 = vmatprep.subr.bf16.mxu0 0
    %1713 = vmatpush2.bf16.msra.mxu0 %v1667
    %1714 = vmatprep.subr.bf16.mxu0 0
    %1715 = vmatpush2.bf16.msra.mxu0 %v1666
    %1716 = vmatprep.subr.bf16.mxu0 0
    %1717 = vmatpush2.bf16.msra.mxu0 %v1665
    %1718 = vmatprep.subr.bf16.mxu0 0
    %1719 = vmatpush2.bf16.msra.mxu0 %v1664
    %1720 = vmatprep.mubr.bf16.mxu0 %v1522
    %1721 = vmatmul.mubr.bf16.gmra.mxu0 %v1521
    %v1722 = vpop.f32.mrf.mxu0
    %v1723 = vadd.f32 %v1590, %v1722
    %v1724 = vpop.f32.mrf.mxu0
    %v1725 = vpop.f32.mrf.mxu0
    %v1726 = vadd.f32 %v1590, %v1725
    %v1727 = vpop.f32.mrf.mxu0
    %1728 = vmatprep.mubr.bf16.mxu0 %v1524
    %1729 = vmatmul.mubr.bf16.gmra.mxu0 %v1523
    %v1730 = vpop.f32.mrf.mxu0
    %v1731 = vadd.f32 %v1590, %v1730
    %v1732 = vpop.f32.mrf.mxu0
    %v1733 = vpop.f32.mrf.mxu0
    %v1734 = vadd.f32 %v1590, %v1733
    %v1735 = vpop.f32.mrf.mxu0
    %1736 = vmatprep.mubr.bf16.mxu0 %v1526
    %1737 = vmatmul.mubr.bf16.gmra.mxu0 %v1525
    %v1738 = vpop.f32.mrf.mxu0
    %v1739 = vadd.f32 %v1590, %v1738
    %v1740 = vpop.f32.mrf.mxu0
    %v1741 = vpop.f32.mrf.mxu0
    %v1742 = vadd.f32 %v1590, %v1741
    %v1743 = vpop.f32.mrf.mxu0
    %1744 = vmatprep.mubr.bf16.mxu0 %v1528
    %1745 = vmatmul.mubr.bf16.gmra.mxu0 %v1527
    %v1746 = vpop.f32.mrf.mxu0
    %v1747 = vadd.f32 %v1590, %v1746
    %v1748 = vpop.f32.mrf.mxu0
    %v1749 = vpop.f32.mrf.mxu0
    %v1750 = vadd.f32 %v1590, %v1749
    %v1751 = vpop.f32.mrf.mxu0
    %1752 = vmatprep.mubr.bf16.mxu0 %v1530
    %1753 = vmatmul.mubr.bf16.gmra.mxu0 %v1529
    %v1754 = vpop.f32.mrf.mxu0
    %v1755 = vadd.f32 %v1590, %v1754
    %v1756 = vpop.f32.mrf.mxu0
    %v1757 = vpop.f32.mrf.mxu0
    %v1758 = vadd.f32 %v1590, %v1757
    %v1759 = vpop.f32.mrf.mxu0
    %1760 = vmatprep.mubr.bf16.mxu0 %v1532
    %1761 = vmatmul.mubr.bf16.gmra.mxu0 %v1531
    %v1762 = vpop.f32.mrf.mxu0
    %v1763 = vadd.f32 %v1590, %v1762
    %v1764 = vpop.f32.mrf.mxu0
    %v1765 = vpop.f32.mrf.mxu0
    %v1766 = vadd.f32 %v1590, %v1765
    %v1767 = vpop.f32.mrf.mxu0
    %1768 = vmatprep.mubr.bf16.mxu0 %v1534
    %1769 = vmatmul.mubr.bf16.gmra.mxu0 %v1533
    %v1770 = vpop.f32.mrf.mxu0
    %v1771 = vadd.f32 %v1590, %v1770
    %v1772 = vpop.f32.mrf.mxu0
    %v1773 = vpop.f32.mrf.mxu0
    %v1774 = vadd.f32 %v1590, %v1773
    %v1775 = vpop.f32.mrf.mxu0
    %1776 = vmatprep.mubr.bf16.mxu0 %v1536
    %1777 = vmatmul.mubr.bf16.gmra.mxu0 %v1535
    %v1778 = vpop.f32.mrf.mxu0
    %v1779 = vadd.f32 %v1590, %v1778
    %v1780 = vpop.f32.mrf.mxu0
    %v1781 = vpop.f32.mrf.mxu0
    %v1782 = vadd.f32 %v1590, %v1781
    %v1783 = vpop.f32.mrf.mxu0
    %1784 = vmatprep.mubr.bf16.mxu0 %v1538
    %1785 = vmatmul.mubr.bf16.gmra.mxu0 %v1537
    %v1786 = vpop.f32.mrf.mxu0
    %v1787 = vadd.f32 %v1590, %v1786
    %v1788 = vpop.f32.mrf.mxu0
    %v1789 = vpop.f32.mrf.mxu0
    %v1790 = vadd.f32 %v1590, %v1789
    %v1791 = vpop.f32.mrf.mxu0
    %1792 = vmatprep.mubr.bf16.mxu0 %v1540
    %1793 = vmatmul.mubr.bf16.gmra.mxu0 %v1539
    %v1794 = vpop.f32.mrf.mxu0
    %v1795 = vadd.f32 %v1590, %v1794
    %v1796 = vpop.f32.mrf.mxu0
    %v1797 = vpop.f32.mrf.mxu0
    %v1798 = vadd.f32 %v1590, %v1797
    %v1799 = vpop.f32.mrf.mxu0
    %1800 = vmatprep.mubr.bf16.mxu0 %v1542
    %1801 = vmatmul.mubr.bf16.gmra.mxu0 %v1541
    %v1802 = vpop.f32.mrf.mxu0
    %v1803 = vadd.f32 %v1590, %v1802
    %v1804 = vpop.f32.mrf.mxu0
    %v1805 = vpop.f32.mrf.mxu0
    %v1806 = vadd.f32 %v1590, %v1805
    %v1807 = vpop.f32.mrf.mxu0
    %1808 = vmatprep.mubr.bf16.mxu0 %v1544
    %1809 = vmatmul.mubr.bf16.gmra.mxu0 %v1543
    %v1810 = vpop.f32.mrf.mxu0
    %v1811 = vadd.f32 %v1590, %v1810
    %v1812 = vpop.f32.mrf.mxu0
    %v1813 = vpop.f32.mrf.mxu0
    %v1814 = vadd.f32 %v1590, %v1813
    %v1815 = vpop.f32.mrf.mxu0
    %1816 = vmatprep.mubr.bf16.mxu0 %v1546
    %1817 = vmatmul.mubr.bf16.gmra.mxu0 %v1545
    %v1818 = vpop.f32.mrf.mxu0
    %v1819 = vadd.f32 %v1590, %v1818
    %v1820 = vpop.f32.mrf.mxu0
    %v1821 = vpop.f32.mrf.mxu0
    %v1822 = vadd.f32 %v1590, %v1821
    %v1823 = vpop.f32.mrf.mxu0
    %1824 = vmatprep.mubr.bf16.mxu0 %v1548
    %1825 = vmatmul.mubr.bf16.gmra.mxu0 %v1547
    %v1826 = vpop.f32.mrf.mxu0
    %v1827 = vadd.f32 %v1590, %v1826
    %v1828 = vpop.f32.mrf.mxu0
    %v1829 = vpop.f32.mrf.mxu0
    %v1830 = vadd.f32 %v1590, %v1829
    %v1831 = vpop.f32.mrf.mxu0
    %1832 = vmatprep.mubr.bf16.mxu0 %v1550
    %1833 = vmatmul.mubr.bf16.gmra.mxu0 %v1549
    %v1834 = vpop.f32.mrf.mxu0
    %v1835 = vadd.f32 %v1590, %v1834
    %v1836 = vpop.f32.mrf.mxu0
    %v1837 = vpop.f32.mrf.mxu0
    %v1838 = vadd.f32 %v1590, %v1837
    %v1839 = vpop.f32.mrf.mxu0
    %1840 = vmatprep.mubr.bf16.mxu0 %v1552
    %1841 = vmatmul.mubr.bf16.gmra.mxu0 %v1551
    %v1842 = vpop.f32.mrf.mxu0
    %v1843 = vadd.f32 %v1590, %v1842
    %v1844 = vpop.f32.mrf.mxu0
    %v1845 = vpop.f32.mrf.mxu0
    %v1846 = vadd.f32 %v1590, %v1845
    %v1847 = vpop.f32.mrf.mxu0
    %1848 = vdwg.mxu0
    %1849 = vst [vmem:[#allocation11] sm:$0xff] %v1723
    %1850 = vst [vmem:[#allocation11 + $0x8] sm:$0xff] %v1726
    %1851 = vst [vmem:[#allocation11 + $0x10] sm:$0xff] %v1731
    %1852 = vst [vmem:[#allocation11 + $0x18] sm:$0xff] %v1734
    %1853 = vst [vmem:[#allocation11 + $0x20] sm:$0xff] %v1739
    %1854 = vst [vmem:[#allocation11 + $0x28] sm:$0xff] %v1742
    %1855 = vst [vmem:[#allocation11 + $0x30] sm:$0xff] %v1747
    %1856 = vst [vmem:[#allocation11 + $0x38] sm:$0xff] %v1750
    %1857 = vst [vmem:[#allocation11 + $0x40] sm:$0xff] %v1755
    %1858 = vst [vmem:[#allocation11 + $0x48] sm:$0xff] %v1758
    %1859 = vst [vmem:[#allocation11 + $0x50] sm:$0xff] %v1763
    %1860 = vst [vmem:[#allocation11 + $0x58] sm:$0xff] %v1766
    %1861 = vst [vmem:[#allocation11 + $0x60] sm:$0xff] %v1771
    %1862 = vst [vmem:[#allocation11 + $0x68] sm:$0xff] %v1774
    %1863 = vst [vmem:[#allocation11 + $0x70] sm:$0xff] %v1779
    %1864 = vst [vmem:[#allocation11 + $0x78] sm:$0xff] %v1782
    %1865 = vst [vmem:[#allocation11 + $0x80] sm:$0xff] %v1787
    %1866 = vst [vmem:[#allocation11 + $0x88] sm:$0xff] %v1790
    %1867 = vst [vmem:[#allocation11 + $0x90] sm:$0xff] %v1795
    %1868 = vst [vmem:[#allocation11 + $0x98] sm:$0xff] %v1798
    %1869 = vst [vmem:[#allocation11 + $0xa0] sm:$0xff] %v1803
    %1870 = vst [vmem:[#allocation11 + $0xa8] sm:$0xff] %v1806
    %1871 = vst [vmem:[#allocation11 + $0xb0] sm:$0xff] %v1811
    %1872 = vst [vmem:[#allocation11 + $0xb8] sm:$0xff] %v1814
    %1873 = vst [vmem:[#allocation11 + $0xc0] sm:$0xff] %v1819
    %1874 = vst [vmem:[#allocation11 + $0xc8] sm:$0xff] %v1822
    %1875 = vst [vmem:[#allocation11 + $0xd0] sm:$0xff] %v1827
    %1876 = vst [vmem:[#allocation11 + $0xd8] sm:$0xff] %v1830
    %1877 = vst [vmem:[#allocation11 + $0xe0] sm:$0xff] %v1835
    %1878 = vst [vmem:[#allocation11 + $0xe8] sm:$0xff] %v1838
    %1879 = vst [vmem:[#allocation11 + $0xf0] sm:$0xff] %v1843
    %1880 = vst [vmem:[#allocation11 + $0xf8] sm:$0xff] %v1846
    %v1881 = vmul.f32 %v103, %v103
    %v1882 = vmul.f32 %v104, %v104
    %v1883 = vmul.f32 %v105, %v105
    %v1884 = vmul.f32 %v106, %v106
    %v1885 = vmul.f32 %v107, %v107
    %v1886 = vmul.f32 %v108, %v108
    %v1887 = vmul.f32 %v109, %v109
    %v1888 = vmul.f32 %v110, %v110
    %v1889 = vmul.f32 %v111, %v111
    %v1890 = vmul.f32 %v112, %v112
    %v1891 = vmul.f32 %v113, %v113
    %v1892 = vmul.f32 %v114, %v114
    %v1893 = vmul.f32 %v115, %v115
    %v1894 = vmul.f32 %v116, %v116
    %v1895 = vmul.f32 %v117, %v117
    %v1896 = vmul.f32 %v118, %v118
    %v1897 = vmul.f32 %v119, %v119
    %v1898 = vmul.f32 %v120, %v120
    %v1899 = vmul.f32 %v121, %v121
    %v1900 = vmul.f32 %v122, %v122
    %v1901 = vmul.f32 %v123, %v123
    %v1902 = vmul.f32 %v124, %v124
    %v1903 = vmul.f32 %v125, %v125
    %v1904 = vmul.f32 %v126, %v126
    %v1905 = vmul.f32 %v127, %v127
    %v1906 = vmul.f32 %v128, %v128
    %v1907 = vmul.f32 %v129, %v129
    %v1908 = vmul.f32 %v130, %v130
    %v1909 = vmul.f32 %v131, %v131
    %v1910 = vmul.f32 %v132, %v132
    %v1911 = vmul.f32 %v133, %v133
    %v1912 = vmul.f32 %v134, %v134
    %1913 = vadd.xlane.f32.xlu0 %v1881
    %v1914 = vpop.xlane.xlu0 %1913
    %1915 = vadd.xlane.f32.xlu0 %v1882
    %v1916 = vpop.xlane.xlu0 %1915
    %1917 = vadd.xlane.f32.xlu0 %v1883
    %v1918 = vpop.xlane.xlu0 %1917
    %1919 = vadd.xlane.f32.xlu0 %v1884
    %v1920 = vpop.xlane.xlu0 %1919
    %1921 = vadd.xlane.f32.xlu0 %v1885
    %v1922 = vpop.xlane.xlu0 %1921
    %1923 = vadd.xlane.f32.xlu0 %v1886
    %v1924 = vpop.xlane.xlu0 %1923
    %1925 = vadd.xlane.f32.xlu0 %v1887
    %v1926 = vpop.xlane.xlu0 %1925
    %1927 = vadd.xlane.f32.xlu0 %v1888
    %v1928 = vpop.xlane.xlu0 %1927
    %1929 = vadd.xlane.f32.xlu0 %v1889
    %v1930 = vpop.xlane.xlu0 %1929
    %1931 = vadd.xlane.f32.xlu0 %v1890
    %v1932 = vpop.xlane.xlu0 %1931
    %1933 = vadd.xlane.f32.xlu0 %v1891
    %v1934 = vpop.xlane.xlu0 %1933
    %1935 = vadd.xlane.f32.xlu0 %v1892
    %v1936 = vpop.xlane.xlu0 %1935
    %1937 = vadd.xlane.f32.xlu0 %v1893
    %v1938 = vpop.xlane.xlu0 %1937
    %1939 = vadd.xlane.f32.xlu0 %v1894
    %v1940 = vpop.xlane.xlu0 %1939
    %1941 = vadd.xlane.f32.xlu0 %v1895
    %v1942 = vpop.xlane.xlu0 %1941
    %1943 = vadd.xlane.f32.xlu0 %v1896
    %v1944 = vpop.xlane.xlu0 %1943
    %1945 = vadd.xlane.f32.xlu0 %v1897
    %v1946 = vpop.xlane.xlu0 %1945
    %1947 = vadd.xlane.f32.xlu0 %v1898
    %v1948 = vpop.xlane.xlu0 %1947
    %1949 = vadd.xlane.f32.xlu0 %v1899
    %v1950 = vpop.xlane.xlu0 %1949
    %1951 = vadd.xlane.f32.xlu0 %v1900
    %v1952 = vpop.xlane.xlu0 %1951
    %1953 = vadd.xlane.f32.xlu0 %v1901
    %v1954 = vpop.xlane.xlu0 %1953
    %1955 = vadd.xlane.f32.xlu0 %v1902
    %v1956 = vpop.xlane.xlu0 %1955
    %1957 = vadd.xlane.f32.xlu0 %v1903
    %v1958 = vpop.xlane.xlu0 %1957
    %1959 = vadd.xlane.f32.xlu0 %v1904
    %v1960 = vpop.xlane.xlu0 %1959
    %1961 = vadd.xlane.f32.xlu0 %v1905
    %v1962 = vpop.xlane.xlu0 %1961
    %1963 = vadd.xlane.f32.xlu0 %v1906
    %v1964 = vpop.xlane.xlu0 %1963
    %1965 = vadd.xlane.f32.xlu0 %v1907
    %v1966 = vpop.xlane.xlu0 %1965
    %1967 = vadd.xlane.f32.xlu0 %v1908
    %v1968 = vpop.xlane.xlu0 %1967
    %1969 = vadd.xlane.f32.xlu0 %v1909
    %v1970 = vpop.xlane.xlu0 %1969
    %1971 = vadd.xlane.f32.xlu0 %v1910
    %v1972 = vpop.xlane.xlu0 %1971
    %1973 = vadd.xlane.f32.xlu0 %v1911
    %v1974 = vpop.xlane.xlu0 %1973
    %1975 = vadd.xlane.f32.xlu0 %v1912
    %v1976 = vpop.xlane.xlu0 %1975
    %v1977 = vmax.f32 %v1914, 1e-24
    %v1978 = vmax.f32 %v1916, 1e-24
    %v1979 = vmax.f32 %v1918, 1e-24
    %v1980 = vmax.f32 %v1920, 1e-24
    %v1981 = vmax.f32 %v1922, 1e-24
    %v1982 = vmax.f32 %v1924, 1e-24
    %v1983 = vmax.f32 %v1926, 1e-24
    %v1984 = vmax.f32 %v1928, 1e-24
    %v1985 = vmax.f32 %v1930, 1e-24
    %v1986 = vmax.f32 %v1932, 1e-24
    %v1987 = vmax.f32 %v1934, 1e-24
    %v1988 = vmax.f32 %v1936, 1e-24
    %v1989 = vmax.f32 %v1938, 1e-24
    %v1990 = vmax.f32 %v1940, 1e-24
    %v1991 = vmax.f32 %v1942, 1e-24
    %v1992 = vmax.f32 %v1944, 1e-24
    %v1993 = vmax.f32 %v1946, 1e-24
    %v1994 = vmax.f32 %v1948, 1e-24
    %v1995 = vmax.f32 %v1950, 1e-24
    %v1996 = vmax.f32 %v1952, 1e-24
    %v1997 = vmax.f32 %v1954, 1e-24
    %v1998 = vmax.f32 %v1956, 1e-24
    %v1999 = vmax.f32 %v1958, 1e-24
    %v2000 = vmax.f32 %v1960, 1e-24
    %v2001 = vmax.f32 %v1962, 1e-24
    %v2002 = vmax.f32 %v1964, 1e-24
    %v2003 = vmax.f32 %v1966, 1e-24
    %v2004 = vmax.f32 %v1968, 1e-24
    %v2005 = vmax.f32 %v1970, 1e-24
    %v2006 = vmax.f32 %v1972, 1e-24
    %v2007 = vmax.f32 %v1974, 1e-24
    %v2008 = vmax.f32 %v1976, 1e-24
    %v2009 = vrsqrt.pop %v1977
    %v2010 = vrsqrt.pop %v1978
    %v2011 = vrsqrt.pop %v1979
    %v2012 = vrsqrt.pop %v1980
    %v2013 = vrsqrt.pop %v1981
    %v2014 = vrsqrt.pop %v1982
    %v2015 = vrsqrt.pop %v1983
    %v2016 = vrsqrt.pop %v1984
    %v2017 = vrsqrt.pop %v1985
    %v2018 = vrsqrt.pop %v1986
    %v2019 = vrsqrt.pop %v1987
    %v2020 = vrsqrt.pop %v1988
    %v2021 = vrsqrt.pop %v1989
    %v2022 = vrsqrt.pop %v1990
    %v2023 = vrsqrt.pop %v1991
    %v2024 = vrsqrt.pop %v1992
    %v2025 = vrsqrt.pop %v1993
    %v2026 = vrsqrt.pop %v1994
    %v2027 = vrsqrt.pop %v1995
    %v2028 = vrsqrt.pop %v1996
    %v2029 = vrsqrt.pop %v1997
    %v2030 = vrsqrt.pop %v1998
    %v2031 = vrsqrt.pop %v1999
    %v2032 = vrsqrt.pop %v2000
    %v2033 = vrsqrt.pop %v2001
    %v2034 = vrsqrt.pop %v2002
    %v2035 = vrsqrt.pop %v2003
    %v2036 = vrsqrt.pop %v2004
    %v2037 = vrsqrt.pop %v2005
    %v2038 = vrsqrt.pop %v2006
    %v2039 = vrsqrt.pop %v2007
    %v2040 = vrsqrt.pop %v2008
    %v2041 = vmul.f32 %v103, %v2009
    %v2042 = vmul.f32 %v104, %v2010
    %v2043 = vmul.f32 %v105, %v2011
    %v2044 = vmul.f32 %v106, %v2012
    %v2045 = vmul.f32 %v107, %v2013
    %v2046 = vmul.f32 %v108, %v2014
    %v2047 = vmul.f32 %v109, %v2015
    %v2048 = vmul.f32 %v110, %v2016
    %v2049 = vmul.f32 %v111, %v2017
    %v2050 = vmul.f32 %v112, %v2018
    %v2051 = vmul.f32 %v113, %v2019
    %v2052 = vmul.f32 %v114, %v2020
    %v2053 = vmul.f32 %v115, %v2021
    %v2054 = vmul.f32 %v116, %v2022
    %v2055 = vmul.f32 %v117, %v2023
    %v2056 = vmul.f32 %v118, %v2024
    %v2057 = vmul.f32 %v119, %v2025
    %v2058 = vmul.f32 %v120, %v2026
    %v2059 = vmul.f32 %v121, %v2027
    %v2060 = vmul.f32 %v122, %v2028
    %v2061 = vmul.f32 %v123, %v2029
    %v2062 = vmul.f32 %v124, %v2030
    %v2063 = vmul.f32 %v125, %v2031
    %v2064 = vmul.f32 %v126, %v2032
    %v2065 = vmul.f32 %v127, %v2033
    %v2066 = vmul.f32 %v128, %v2034
    %v2067 = vmul.f32 %v129, %v2035
    %v2068 = vmul.f32 %v130, %v2036
    %v2069 = vmul.f32 %v131, %v2037
    %v2070 = vmul.f32 %v132, %v2038
    %v2071 = vmul.f32 %v133, %v2039
    %v2072 = vmul.f32 %v134, %v2040
    %2073 = vst [vmem:[#allocation14] sm:$0xff] %v2041
    %2074 = vst [vmem:[#allocation14 + $0x8] sm:$0xff] %v2042
    %2075 = vst [vmem:[#allocation14 + $0x10] sm:$0xff] %v2043
    %2076 = vst [vmem:[#allocation14 + $0x18] sm:$0xff] %v2044
    %2077 = vst [vmem:[#allocation14 + $0x20] sm:$0xff] %v2045
    %2078 = vst [vmem:[#allocation14 + $0x28] sm:$0xff] %v2046
    %2079 = vst [vmem:[#allocation14 + $0x30] sm:$0xff] %v2047
    %2080 = vst [vmem:[#allocation14 + $0x38] sm:$0xff] %v2048
    %2081 = vst [vmem:[#allocation14 + $0x40] sm:$0xff] %v2049
    %2082 = vst [vmem:[#allocation14 + $0x48] sm:$0xff] %v2050
    %2083 = vst [vmem:[#allocation14 + $0x50] sm:$0xff] %v2051
    %2084 = vst [vmem:[#allocation14 + $0x58] sm:$0xff] %v2052
    %2085 = vst [vmem:[#allocation14 + $0x60] sm:$0xff] %v2053
    %2086 = vst [vmem:[#allocation14 + $0x68] sm:$0xff] %v2054
    %2087 = vst [vmem:[#allocation14 + $0x70] sm:$0xff] %v2055
    %2088 = vst [vmem:[#allocation14 + $0x78] sm:$0xff] %v2056
    %2089 = vst [vmem:[#allocation14 + $0x80] sm:$0xff] %v2057
    %2090 = vst [vmem:[#allocation14 + $0x88] sm:$0xff] %v2058
    %2091 = vst [vmem:[#allocation14 + $0x90] sm:$0xff] %v2059
    %2092 = vst [vmem:[#allocation14 + $0x98] sm:$0xff] %v2060
    %2093 = vst [vmem:[#allocation14 + $0xa0] sm:$0xff] %v2061
    %2094 = vst [vmem:[#allocation14 + $0xa8] sm:$0xff] %v2062
    %2095 = vst [vmem:[#allocation14 + $0xb0] sm:$0xff] %v2063
    %2096 = vst [vmem:[#allocation14 + $0xb8] sm:$0xff] %v2064
    %2097 = vst [vmem:[#allocation14 + $0xc0] sm:$0xff] %v2065
    %2098 = vst [vmem:[#allocation14 + $0xc8] sm:$0xff] %v2066
    %2099 = vst [vmem:[#allocation14 + $0xd0] sm:$0xff] %v2067
    %2100 = vst [vmem:[#allocation14 + $0xd8] sm:$0xff] %v2068
    %2101 = vst [vmem:[#allocation14 + $0xe0] sm:$0xff] %v2069
    %2102 = vst [vmem:[#allocation14 + $0xe8] sm:$0xff] %v2070
    %2103 = vst [vmem:[#allocation14 + $0xf0] sm:$0xff] %v2071
    %2104 = vst [vmem:[#allocation14 + $0xf8] sm:$0xff] %v2072
    %v2105 = vpack.c.bf16 %v2042, %v2041
    %v2106 = vpack.c.bf16 %v2044, %v2043
    %v2107 = vpack.c.bf16 %v2046, %v2045
    %v2108 = vpack.c.bf16 %v2048, %v2047
    %v2109 = vpack.c.bf16 %v2050, %v2049
    %v2110 = vpack.c.bf16 %v2052, %v2051
    %v2111 = vpack.c.bf16 %v2054, %v2053
    %v2112 = vpack.c.bf16 %v2056, %v2055
    %v2113 = vpack.c.bf16 %v2058, %v2057
    %v2114 = vpack.c.bf16 %v2060, %v2059
    %v2115 = vpack.c.bf16 %v2062, %v2061
    %v2116 = vpack.c.bf16 %v2064, %v2063
    %v2117 = vpack.c.bf16 %v2066, %v2065
    %v2118 = vpack.c.bf16 %v2068, %v2067
    %v2119 = vpack.c.bf16 %v2070, %v2069
    %v2120 = vpack.c.bf16 %v2072, %v2071
    %v2121 = vld [vmem:[#allocation10] sm:$0xff]
    %v2122 = vld [vmem:[#allocation10 + $0x8] sm:$0xff]
    %v2123 = vld [vmem:[#allocation10 + $0x10] sm:$0xff]
    %v2124 = vld [vmem:[#allocation10 + $0x18] sm:$0xff]
    %v2125 = vld [vmem:[#allocation10 + $0x20] sm:$0xff]
    %v2126 = vld [vmem:[#allocation10 + $0x28] sm:$0xff]
    %v2127 = vld [vmem:[#allocation10 + $0x30] sm:$0xff]
    %v2128 = vld [vmem:[#allocation10 + $0x38] sm:$0xff]
    %v2129 = vld [vmem:[#allocation10 + $0x40] sm:$0xff]
    %v2130 = vld [vmem:[#allocation10 + $0x48] sm:$0xff]
    %v2131 = vld [vmem:[#allocation10 + $0x50] sm:$0xff]
    %v2132 = vld [vmem:[#allocation10 + $0x58] sm:$0xff]
    %v2133 = vld [vmem:[#allocation10 + $0x60] sm:$0xff]
    %v2134 = vld [vmem:[#allocation10 + $0x68] sm:$0xff]
    %v2135 = vld [vmem:[#allocation10 + $0x70] sm:$0xff]
    %v2136 = vld [vmem:[#allocation10 + $0x78] sm:$0xff]
    %v2137 = vld [vmem:[#allocation10 + $0x80] sm:$0xff]
    %v2138 = vld [vmem:[#allocation10 + $0x88] sm:$0xff]
    %v2139 = vld [vmem:[#allocation10 + $0x90] sm:$0xff]
    %v2140 = vld [vmem:[#allocation10 + $0x98] sm:$0xff]
    %v2141 = vld [vmem:[#allocation10 + $0xa0] sm:$0xff]
    %v2142 = vld [vmem:[#allocation10 + $0xa8] sm:$0xff]
    %v2143 = vld [vmem:[#allocation10 + $0xb0] sm:$0xff]
    %v2144 = vld [vmem:[#allocation10 + $0xb8] sm:$0xff]
    %v2145 = vld [vmem:[#allocation10 + $0xc0] sm:$0xff]
    %v2146 = vld [vmem:[#allocation10 + $0xc8] sm:$0xff]
    %v2147 = vld [vmem:[#allocation10 + $0xd0] sm:$0xff]
    %v2148 = vld [vmem:[#allocation10 + $0xd8] sm:$0xff]
    %v2149 = vld [vmem:[#allocation10 + $0xe0] sm:$0xff]
    %v2150 = vld [vmem:[#allocation10 + $0xe8] sm:$0xff]
    %v2151 = vld [vmem:[#allocation10 + $0xf0] sm:$0xff]
    %v2152 = vld [vmem:[#allocation10 + $0xf8] sm:$0xff]
    %v2185 = vunpack.c.l.b16 %v2121
    %v2186 = vunpack.c.h.b16 %v2121
    %v2187 = vunpack.c.l.b16 %v2122
    %v2188 = vunpack.c.h.b16 %v2122
    %v2189 = vunpack.c.l.b16 %v2123
    %v2190 = vunpack.c.h.b16 %v2123
    %v2191 = vunpack.c.l.b16 %v2124
    %v2192 = vunpack.c.h.b16 %v2124
    %v2193 = vunpack.c.l.b16 %v2125
    %v2194 = vunpack.c.h.b16 %v2125
    %v2195 = vunpack.c.l.b16 %v2126
    %v2196 = vunpack.c.h.b16 %v2126
    %v2197 = vunpack.c.l.b16 %v2127
    %v2198 = vunpack.c.h.b16 %v2127
    %v2199 = vunpack.c.l.b16 %v2128
    %v2200 = vunpack.c.h.b16 %v2128
    %v2201 = vunpack.c.l.b16 %v2129
    %v2202 = vunpack.c.h.b16 %v2129
    %v2203 = vunpack.c.l.b16 %v2130
    %v2204 = vunpack.c.h.b16 %v2130
    %v2205 = vunpack.c.l.b16 %v2131
    %v2206 = vunpack.c.h.b16 %v2131
    %v2207 = vunpack.c.l.b16 %v2132
    %v2208 = vunpack.c.h.b16 %v2132
    %v2209 = vunpack.c.l.b16 %v2133
    %v2210 = vunpack.c.h.b16 %v2133
    %v2211 = vunpack.c.l.b16 %v2134
    %v2212 = vunpack.c.h.b16 %v2134
    %v2213 = vunpack.c.l.b16 %v2135
    %v2214 = vunpack.c.h.b16 %v2135
    %v2215 = vunpack.c.l.b16 %v2136
    %v2216 = vunpack.c.h.b16 %v2136
    %v2217 = vunpack.c.l.b16 %v2137
    %v2218 = vunpack.c.h.b16 %v2137
    %v2219 = vunpack.c.l.b16 %v2138
    %v2220 = vunpack.c.h.b16 %v2138
    %v2221 = vunpack.c.l.b16 %v2139
    %v2222 = vunpack.c.h.b16 %v2139
    %v2223 = vunpack.c.l.b16 %v2140
    %v2224 = vunpack.c.h.b16 %v2140
    %v2225 = vunpack.c.l.b16 %v2141
    %v2226 = vunpack.c.h.b16 %v2141
    %v2227 = vunpack.c.l.b16 %v2142
    %v2228 = vunpack.c.h.b16 %v2142
    %v2229 = vunpack.c.l.b16 %v2143
    %v2230 = vunpack.c.h.b16 %v2143
    %v2231 = vunpack.c.l.b16 %v2144
    %v2232 = vunpack.c.h.b16 %v2144
    %v2233 = vunpack.c.l.b16 %v2145
    %v2234 = vunpack.c.h.b16 %v2145
    %v2235 = vunpack.c.l.b16 %v2146
    %v2236 = vunpack.c.h.b16 %v2146
    %v2237 = vunpack.c.l.b16 %v2147
    %v2238 = vunpack.c.h.b16 %v2147
    %v2239 = vunpack.c.l.b16 %v2148
    %v2240 = vunpack.c.h.b16 %v2148
    %v2241 = vunpack.c.l.b16 %v2149
    %v2242 = vunpack.c.h.b16 %v2149
    %v2243 = vunpack.c.l.b16 %v2150
    %v2244 = vunpack.c.h.b16 %v2150
    %v2245 = vunpack.c.l.b16 %v2151
    %v2246 = vunpack.c.h.b16 %v2151
    %v2247 = vunpack.c.l.b16 %v2152
    %v2248 = vunpack.c.h.b16 %v2152
    %v2249 = vpack.c.b16 %v2189, %v2185
    %v2250 = vpack.c.b16 %v2190, %v2186
    %v2251 = vpack.c.b16 %v2191, %v2187
    %v2252 = vpack.c.b16 %v2192, %v2188
    %v2253 = vpack.c.b16 %v2197, %v2193
    %v2254 = vpack.c.b16 %v2198, %v2194
    %v2255 = vpack.c.b16 %v2199, %v2195
    %v2256 = vpack.c.b16 %v2200, %v2196
    %v2257 = vpack.c.b16 %v2205, %v2201
    %v2258 = vpack.c.b16 %v2206, %v2202
    %v2259 = vpack.c.b16 %v2207, %v2203
    %v2260 = vpack.c.b16 %v2208, %v2204
    %v2261 = vpack.c.b16 %v2213, %v2209
    %v2262 = vpack.c.b16 %v2214, %v2210
    %v2263 = vpack.c.b16 %v2215, %v2211
    %v2264 = vpack.c.b16 %v2216, %v2212
    %v2265 = vpack.c.b16 %v2221, %v2217
    %v2266 = vpack.c.b16 %v2222, %v2218
    %v2267 = vpack.c.b16 %v2223, %v2219
    %v2268 = vpack.c.b16 %v2224, %v2220
    %v2269 = vpack.c.b16 %v2229, %v2225
    %v2270 = vpack.c.b16 %v2230, %v2226
    %v2271 = vpack.c.b16 %v2231, %v2227
    %v2272 = vpack.c.b16 %v2232, %v2228
    %v2273 = vpack.c.b16 %v2237, %v2233
    %v2274 = vpack.c.b16 %v2238, %v2234
    %v2275 = vpack.c.b16 %v2239, %v2235
    %v2276 = vpack.c.b16 %v2240, %v2236
    %v2277 = vpack.c.b16 %v2245, %v2241
    %v2278 = vpack.c.b16 %v2246, %v2242
    %v2279 = vpack.c.b16 %v2247, %v2243
    %v2280 = vpack.c.b16 %v2248, %v2244
    %2313 = vmatprep.subr.bf16.mxu0 %v2278
    %2314 = vmatpush1.bf16.msra.mxu0 %v2277
    %2315 = vmatprep.subr.bf16.mxu0 %v2274
    %2316 = vmatpush1.bf16.msra.mxu0 %v2273
    %2317 = vmatprep.subr.bf16.mxu0 %v2270
    %2318 = vmatpush1.bf16.msra.mxu0 %v2269
    %2319 = vmatprep.subr.bf16.mxu0 %v2266
    %2320 = vmatpush1.bf16.msra.mxu0 %v2265
    %2321 = vmatprep.subr.bf16.mxu0 %v2262
    %2322 = vmatpush1.bf16.msra.mxu0 %v2261
    %2323 = vmatprep.subr.bf16.mxu0 %v2258
    %2324 = vmatpush1.bf16.msra.mxu0 %v2257
    %2325 = vmatprep.subr.bf16.mxu0 %v2254
    %2326 = vmatpush1.bf16.msra.mxu0 %v2253
    %2327 = vmatprep.subr.bf16.mxu0 %v2250
    %2328 = vmatpush1.bf16.msra.mxu0 %v2249
    %2329 = vmatprep.subr.bf16.mxu0 0
    %2330 = vmatpush2.bf16.msra.mxu0 0
    %2331 = vmatprep.subr.bf16.mxu0 0
    %2332 = vmatpush2.bf16.msra.mxu0 0
    %2333 = vmatprep.subr.bf16.mxu0 0
    %2334 = vmatpush2.bf16.msra.mxu0 0
    %2335 = vmatprep.subr.bf16.mxu0 0
    %2336 = vmatpush2.bf16.msra.mxu0 0
    %2337 = vmatprep.subr.bf16.mxu0 0
    %2338 = vmatpush2.bf16.msra.mxu0 0
    %2339 = vmatprep.subr.bf16.mxu0 0
    %2340 = vmatpush2.bf16.msra.mxu0 0
    %2341 = vmatprep.subr.bf16.mxu0 0
    %2342 = vmatpush2.bf16.msra.mxu0 0
    %2343 = vmatprep.subr.bf16.mxu0 0
    %2344 = vmatpush2.bf16.msra.mxu0 0
    %2345 = vmatprep.mubr.bf16.mxu0 0
    %2346 = vmatmul.mubr.bf16.gmra.mxu0 %v2105
    %v2347 = vpop.f32.mrf.mxu0
    %v2348 = vadd.f32 0.0, %v2347
    %v2349 = vpop.f32.mrf.mxu0
    %v2350 = vadd.f32 0.0, %v2349
    %v2351 = vpop.f32.mrf.mxu0
    %v2352 = vadd.f32 0.0, %v2351
    %v2353 = vpop.f32.mrf.mxu0
    %v2354 = vadd.f32 0.0, %v2353
    %2355 = vmatprep.mubr.bf16.mxu0 0
    %2356 = vmatmul.mubr.bf16.gmra.mxu0 %v2106
    %v2357 = vpop.f32.mrf.mxu0
    %v2358 = vadd.f32 0.0, %v2357
    %v2359 = vpop.f32.mrf.mxu0
    %v2360 = vadd.f32 0.0, %v2359
    %v2361 = vpop.f32.mrf.mxu0
    %v2362 = vadd.f32 0.0, %v2361
    %v2363 = vpop.f32.mrf.mxu0
    %v2364 = vadd.f32 0.0, %v2363
    %2365 = vmatprep.mubr.bf16.mxu0 0
    %2366 = vmatmul.mubr.bf16.gmra.mxu0 %v2107
    %v2367 = vpop.f32.mrf.mxu0
    %v2368 = vadd.f32 0.0, %v2367
    %v2369 = vpop.f32.mrf.mxu0
    %v2370 = vadd.f32 0.0, %v2369
    %v2371 = vpop.f32.mrf.mxu0
    %v2372 = vadd.f32 0.0, %v2371
    %v2373 = vpop.f32.mrf.mxu0
    %v2374 = vadd.f32 0.0, %v2373
    %2375 = vmatprep.mubr.bf16.mxu0 0
    %2376 = vmatmul.mubr.bf16.gmra.mxu0 %v2108
    %v2377 = vpop.f32.mrf.mxu0
    %v2378 = vadd.f32 0.0, %v2377
    %v2379 = vpop.f32.mrf.mxu0
    %v2380 = vadd.f32 0.0, %v2379
    %v2381 = vpop.f32.mrf.mxu0
    %v2382 = vadd.f32 0.0, %v2381
    %v2383 = vpop.f32.mrf.mxu0
    %v2384 = vadd.f32 0.0, %v2383
    %2385 = vmatprep.mubr.bf16.mxu0 0
    %2386 = vmatmul.mubr.bf16.gmra.mxu0 %v2109
    %v2387 = vpop.f32.mrf.mxu0
    %v2388 = vadd.f32 0.0, %v2387
    %v2389 = vpop.f32.mrf.mxu0
    %v2390 = vadd.f32 0.0, %v2389
    %v2391 = vpop.f32.mrf.mxu0
    %v2392 = vadd.f32 0.0, %v2391
    %v2393 = vpop.f32.mrf.mxu0
    %v2394 = vadd.f32 0.0, %v2393
    %2395 = vmatprep.mubr.bf16.mxu0 0
    %2396 = vmatmul.mubr.bf16.gmra.mxu0 %v2110
    %v2397 = vpop.f32.mrf.mxu0
    %v2398 = vadd.f32 0.0, %v2397
    %v2399 = vpop.f32.mrf.mxu0
    %v2400 = vadd.f32 0.0, %v2399
    %v2401 = vpop.f32.mrf.mxu0
    %v2402 = vadd.f32 0.0, %v2401
    %v2403 = vpop.f32.mrf.mxu0
    %v2404 = vadd.f32 0.0, %v2403
    %2405 = vmatprep.mubr.bf16.mxu0 0
    %2406 = vmatmul.mubr.bf16.gmra.mxu0 %v2111
    %v2407 = vpop.f32.mrf.mxu0
    %v2408 = vadd.f32 0.0, %v2407
    %v2409 = vpop.f32.mrf.mxu0
    %v2410 = vadd.f32 0.0, %v2409
    %v2411 = vpop.f32.mrf.mxu0
    %v2412 = vadd.f32 0.0, %v2411
    %v2413 = vpop.f32.mrf.mxu0
    %v2414 = vadd.f32 0.0, %v2413
    %2415 = vmatprep.mubr.bf16.mxu0 0
    %2416 = vmatmul.mubr.bf16.gmra.mxu0 %v2112
    %v2417 = vpop.f32.mrf.mxu0
    %v2418 = vadd.f32 0.0, %v2417
    %v2419 = vpop.f32.mrf.mxu0
    %v2420 = vadd.f32 0.0, %v2419
    %v2421 = vpop.f32.mrf.mxu0
    %v2422 = vadd.f32 0.0, %v2421
    %v2423 = vpop.f32.mrf.mxu0
    %v2424 = vadd.f32 0.0, %v2423
    %2425 = vmatprep.mubr.bf16.mxu0 0
    %2426 = vmatmul.mubr.bf16.gmra.mxu0 %v2113
    %v2427 = vpop.f32.mrf.mxu0
    %v2428 = vadd.f32 0.0, %v2427
    %v2429 = vpop.f32.mrf.mxu0
    %v2430 = vadd.f32 0.0, %v2429
    %v2431 = vpop.f32.mrf.mxu0
    %v2432 = vadd.f32 0.0, %v2431
    %v2433 = vpop.f32.mrf.mxu0
    %v2434 = vadd.f32 0.0, %v2433
    %2435 = vmatprep.mubr.bf16.mxu0 0
    %2436 = vmatmul.mubr.bf16.gmra.mxu0 %v2114
    %v2437 = vpop.f32.mrf.mxu0
    %v2438 = vadd.f32 0.0, %v2437
    %v2439 = vpop.f32.mrf.mxu0
    %v2440 = vadd.f32 0.0, %v2439
    %v2441 = vpop.f32.mrf.mxu0
    %v2442 = vadd.f32 0.0, %v2441
    %v2443 = vpop.f32.mrf.mxu0
    %v2444 = vadd.f32 0.0, %v2443
    %2445 = vmatprep.mubr.bf16.mxu0 0
    %2446 = vmatmul.mubr.bf16.gmra.mxu0 %v2115
    %v2447 = vpop.f32.mrf.mxu0
    %v2448 = vadd.f32 0.0, %v2447
    %v2449 = vpop.f32.mrf.mxu0
    %v2450 = vadd.f32 0.0, %v2449
    %v2451 = vpop.f32.mrf.mxu0
    %v2452 = vadd.f32 0.0, %v2451
    %v2453 = vpop.f32.mrf.mxu0
    %v2454 = vadd.f32 0.0, %v2453
    %2455 = vmatprep.mubr.bf16.mxu0 0
    %2456 = vmatmul.mubr.bf16.gmra.mxu0 %v2116
    %v2457 = vpop.f32.mrf.mxu0
    %v2458 = vadd.f32 0.0, %v2457
    %v2459 = vpop.f32.mrf.mxu0
    %v2460 = vadd.f32 0.0, %v2459
    %v2461 = vpop.f32.mrf.mxu0
    %v2462 = vadd.f32 0.0, %v2461
    %v2463 = vpop.f32.mrf.mxu0
    %v2464 = vadd.f32 0.0, %v2463
    %2465 = vmatprep.mubr.bf16.mxu0 0
    %2466 = vmatmul.mubr.bf16.gmra.mxu0 %v2117
    %v2467 = vpop.f32.mrf.mxu0
    %v2468 = vadd.f32 0.0, %v2467
    %v2469 = vpop.f32.mrf.mxu0
    %v2470 = vadd.f32 0.0, %v2469
    %v2471 = vpop.f32.mrf.mxu0
    %v2472 = vadd.f32 0.0, %v2471
    %v2473 = vpop.f32.mrf.mxu0
    %v2474 = vadd.f32 0.0, %v2473
    %2475 = vmatprep.mubr.bf16.mxu0 0
    %2476 = vmatmul.mubr.bf16.gmra.mxu0 %v2118
    %v2477 = vpop.f32.mrf.mxu0
    %v2478 = vadd.f32 0.0, %v2477
    %v2479 = vpop.f32.mrf.mxu0
    %v2480 = vadd.f32 0.0, %v2479
    %v2481 = vpop.f32.mrf.mxu0
    %v2482 = vadd.f32 0.0, %v2481
    %v2483 = vpop.f32.mrf.mxu0
    %v2484 = vadd.f32 0.0, %v2483
    %2485 = vmatprep.mubr.bf16.mxu0 0
    %2486 = vmatmul.mubr.bf16.gmra.mxu0 %v2119
    %v2487 = vpop.f32.mrf.mxu0
    %v2488 = vadd.f32 0.0, %v2487
    %v2489 = vpop.f32.mrf.mxu0
    %v2490 = vadd.f32 0.0, %v2489
    %v2491 = vpop.f32.mrf.mxu0
    %v2492 = vadd.f32 0.0, %v2491
    %v2493 = vpop.f32.mrf.mxu0
    %v2494 = vadd.f32 0.0, %v2493
    %2495 = vmatprep.mubr.bf16.mxu0 0
    %2496 = vmatmul.mubr.bf16.gmra.mxu0 %v2120
    %v2497 = vpop.f32.mrf.mxu0
    %v2498 = vadd.f32 0.0, %v2497
    %v2499 = vpop.f32.mrf.mxu0
    %v2500 = vadd.f32 0.0, %v2499
    %v2501 = vpop.f32.mrf.mxu0
    %v2502 = vadd.f32 0.0, %v2501
    %v2503 = vpop.f32.mrf.mxu0
    %v2504 = vadd.f32 0.0, %v2503
    %2505 = vdwg.mxu0
    %2506 = vmatprep.subr.bf16.mxu0 %v2280
    %2507 = vmatpush1.bf16.msra.mxu0 %v2279
    %2508 = vmatprep.subr.bf16.mxu0 %v2276
    %2509 = vmatpush1.bf16.msra.mxu0 %v2275
    %2510 = vmatprep.subr.bf16.mxu0 %v2272
    %2511 = vmatpush1.bf16.msra.mxu0 %v2271
    %2512 = vmatprep.subr.bf16.mxu0 %v2268
    %2513 = vmatpush1.bf16.msra.mxu0 %v2267
    %2514 = vmatprep.subr.bf16.mxu0 %v2264
    %2515 = vmatpush1.bf16.msra.mxu0 %v2263
    %2516 = vmatprep.subr.bf16.mxu0 %v2260
    %2517 = vmatpush1.bf16.msra.mxu0 %v2259
    %2518 = vmatprep.subr.bf16.mxu0 %v2256
    %2519 = vmatpush1.bf16.msra.mxu0 %v2255
    %2520 = vmatprep.subr.bf16.mxu0 %v2252
    %2521 = vmatpush1.bf16.msra.mxu0 %v2251
    %2522 = vmatprep.subr.bf16.mxu0 0
    %2523 = vmatpush2.bf16.msra.mxu0 0
    %2524 = vmatprep.subr.bf16.mxu0 0
    %2525 = vmatpush2.bf16.msra.mxu0 0
    %2526 = vmatprep.subr.bf16.mxu0 0
    %2527 = vmatpush2.bf16.msra.mxu0 0
    %2528 = vmatprep.subr.bf16.mxu0 0
    %2529 = vmatpush2.bf16.msra.mxu0 0
    %2530 = vmatprep.subr.bf16.mxu0 0
    %2531 = vmatpush2.bf16.msra.mxu0 0
    %2532 = vmatprep.subr.bf16.mxu0 0
    %2533 = vmatpush2.bf16.msra.mxu0 0
    %2534 = vmatprep.subr.bf16.mxu0 0
    %2535 = vmatpush2.bf16.msra.mxu0 0
    %2536 = vmatprep.subr.bf16.mxu0 0
    %2537 = vmatpush2.bf16.msra.mxu0 0
    %2538 = vmatprep.mubr.bf16.mxu0 0
    %2539 = vmatmul.mubr.bf16.gmra.mxu0 %v2105
    %v2540 = vpop.f32.mrf.mxu0
    %v2541 = vadd.f32 0.0, %v2540
    %v2542 = vpop.f32.mrf.mxu0
    %v2543 = vadd.f32 0.0, %v2542
    %v2544 = vpop.f32.mrf.mxu0
    %v2545 = vadd.f32 0.0, %v2544
    %v2546 = vpop.f32.mrf.mxu0
    %v2547 = vadd.f32 0.0, %v2546
    %2548 = vmatprep.mubr.bf16.mxu0 0
    %2549 = vmatmul.mubr.bf16.gmra.mxu0 %v2106
    %v2550 = vpop.f32.mrf.mxu0
    %v2551 = vadd.f32 0.0, %v2550
    %v2552 = vpop.f32.mrf.mxu0
    %v2553 = vadd.f32 0.0, %v2552
    %v2554 = vpop.f32.mrf.mxu0
    %v2555 = vadd.f32 0.0, %v2554
    %v2556 = vpop.f32.mrf.mxu0
    %v2557 = vadd.f32 0.0, %v2556
    %2558 = vmatprep.mubr.bf16.mxu0 0
    %2559 = vmatmul.mubr.bf16.gmra.mxu0 %v2107
    %v2560 = vpop.f32.mrf.mxu0
    %v2561 = vadd.f32 0.0, %v2560
    %v2562 = vpop.f32.mrf.mxu0
    %v2563 = vadd.f32 0.0, %v2562
    %v2564 = vpop.f32.mrf.mxu0
    %v2565 = vadd.f32 0.0, %v2564
    %v2566 = vpop.f32.mrf.mxu0
    %v2567 = vadd.f32 0.0, %v2566
    %2568 = vmatprep.mubr.bf16.mxu0 0
    %2569 = vmatmul.mubr.bf16.gmra.mxu0 %v2108
    %v2570 = vpop.f32.mrf.mxu0
    %v2571 = vadd.f32 0.0, %v2570
    %v2572 = vpop.f32.mrf.mxu0
    %v2573 = vadd.f32 0.0, %v2572
    %v2574 = vpop.f32.mrf.mxu0
    %v2575 = vadd.f32 0.0, %v2574
    %v2576 = vpop.f32.mrf.mxu0
    %v2577 = vadd.f32 0.0, %v2576
    %2578 = vmatprep.mubr.bf16.mxu0 0
    %2579 = vmatmul.mubr.bf16.gmra.mxu0 %v2109
    %v2580 = vpop.f32.mrf.mxu0
    %v2581 = vadd.f32 0.0, %v2580
    %v2582 = vpop.f32.mrf.mxu0
    %v2583 = vadd.f32 0.0, %v2582
    %v2584 = vpop.f32.mrf.mxu0
    %v2585 = vadd.f32 0.0, %v2584
    %v2586 = vpop.f32.mrf.mxu0
    %v2587 = vadd.f32 0.0, %v2586
    %2588 = vmatprep.mubr.bf16.mxu0 0
    %2589 = vmatmul.mubr.bf16.gmra.mxu0 %v2110
    %v2590 = vpop.f32.mrf.mxu0
    %v2591 = vadd.f32 0.0, %v2590
    %v2592 = vpop.f32.mrf.mxu0
    %v2593 = vadd.f32 0.0, %v2592
    %v2594 = vpop.f32.mrf.mxu0
    %v2595 = vadd.f32 0.0, %v2594
    %v2596 = vpop.f32.mrf.mxu0
    %v2597 = vadd.f32 0.0, %v2596
    %2598 = vmatprep.mubr.bf16.mxu0 0
    %2599 = vmatmul.mubr.bf16.gmra.mxu0 %v2111
    %v2600 = vpop.f32.mrf.mxu0
    %v2601 = vadd.f32 0.0, %v2600
    %v2602 = vpop.f32.mrf.mxu0
    %v2603 = vadd.f32 0.0, %v2602
    %v2604 = vpop.f32.mrf.mxu0
    %v2605 = vadd.f32 0.0, %v2604
    %v2606 = vpop.f32.mrf.mxu0
    %v2607 = vadd.f32 0.0, %v2606
    %2608 = vmatprep.mubr.bf16.mxu0 0
    %2609 = vmatmul.mubr.bf16.gmra.mxu0 %v2112
    %v2610 = vpop.f32.mrf.mxu0
    %v2611 = vadd.f32 0.0, %v2610
    %v2612 = vpop.f32.mrf.mxu0
    %v2613 = vadd.f32 0.0, %v2612
    %v2614 = vpop.f32.mrf.mxu0
    %v2615 = vadd.f32 0.0, %v2614
    %v2616 = vpop.f32.mrf.mxu0
    %v2617 = vadd.f32 0.0, %v2616
    %2618 = vmatprep.mubr.bf16.mxu0 0
    %2619 = vmatmul.mubr.bf16.gmra.mxu0 %v2113
    %v2620 = vpop.f32.mrf.mxu0
    %v2621 = vadd.f32 0.0, %v2620
    %v2622 = vpop.f32.mrf.mxu0
    %v2623 = vadd.f32 0.0, %v2622
    %v2624 = vpop.f32.mrf.mxu0
    %v2625 = vadd.f32 0.0, %v2624
    %v2626 = vpop.f32.mrf.mxu0
    %v2627 = vadd.f32 0.0, %v2626
    %2628 = vmatprep.mubr.bf16.mxu0 0
    %2629 = vmatmul.mubr.bf16.gmra.mxu0 %v2114
    %v2630 = vpop.f32.mrf.mxu0
    %v2631 = vadd.f32 0.0, %v2630
    %v2632 = vpop.f32.mrf.mxu0
    %v2633 = vadd.f32 0.0, %v2632
    %v2634 = vpop.f32.mrf.mxu0
    %v2635 = vadd.f32 0.0, %v2634
    %v2636 = vpop.f32.mrf.mxu0
    %v2637 = vadd.f32 0.0, %v2636
    %2638 = vmatprep.mubr.bf16.mxu0 0
    %2639 = vmatmul.mubr.bf16.gmra.mxu0 %v2115
    %v2640 = vpop.f32.mrf.mxu0
    %v2641 = vadd.f32 0.0, %v2640
    %v2642 = vpop.f32.mrf.mxu0
    %v2643 = vadd.f32 0.0, %v2642
    %v2644 = vpop.f32.mrf.mxu0
    %v2645 = vadd.f32 0.0, %v2644
    %v2646 = vpop.f32.mrf.mxu0
    %v2647 = vadd.f32 0.0, %v2646
    %2648 = vmatprep.mubr.bf16.mxu0 0
    %2649 = vmatmul.mubr.bf16.gmra.mxu0 %v2116
    %v2650 = vpop.f32.mrf.mxu0
    %v2651 = vadd.f32 0.0, %v2650
    %v2652 = vpop.f32.mrf.mxu0
    %v2653 = vadd.f32 0.0, %v2652
    %v2654 = vpop.f32.mrf.mxu0
    %v2655 = vadd.f32 0.0, %v2654
    %v2656 = vpop.f32.mrf.mxu0
    %v2657 = vadd.f32 0.0, %v2656
    %2658 = vmatprep.mubr.bf16.mxu0 0
    %2659 = vmatmul.mubr.bf16.gmra.mxu0 %v2117
    %v2660 = vpop.f32.mrf.mxu0
    %v2661 = vadd.f32 0.0, %v2660
    %v2662 = vpop.f32.mrf.mxu0
    %v2663 = vadd.f32 0.0, %v2662
    %v2664 = vpop.f32.mrf.mxu0
    %v2665 = vadd.f32 0.0, %v2664
    %v2666 = vpop.f32.mrf.mxu0
    %v2667 = vadd.f32 0.0, %v2666
    %2668 = vmatprep.mubr.bf16.mxu0 0
    %2669 = vmatmul.mubr.bf16.gmra.mxu0 %v2118
    %v2670 = vpop.f32.mrf.mxu0
    %v2671 = vadd.f32 0.0, %v2670
    %v2672 = vpop.f32.mrf.mxu0
    %v2673 = vadd.f32 0.0, %v2672
    %v2674 = vpop.f32.mrf.mxu0
    %v2675 = vadd.f32 0.0, %v2674
    %v2676 = vpop.f32.mrf.mxu0
    %v2677 = vadd.f32 0.0, %v2676
    %2678 = vmatprep.mubr.bf16.mxu0 0
    %2679 = vmatmul.mubr.bf16.gmra.mxu0 %v2119
    %v2680 = vpop.f32.mrf.mxu0
    %v2681 = vadd.f32 0.0, %v2680
    %v2682 = vpop.f32.mrf.mxu0
    %v2683 = vadd.f32 0.0, %v2682
    %v2684 = vpop.f32.mrf.mxu0
    %v2685 = vadd.f32 0.0, %v2684
    %v2686 = vpop.f32.mrf.mxu0
    %v2687 = vadd.f32 0.0, %v2686
    %2688 = vmatprep.mubr.bf16.mxu0 0
    %2689 = vmatmul.mubr.bf16.gmra.mxu0 %v2120
    %v2690 = vpop.f32.mrf.mxu0
    %v2691 = vadd.f32 0.0, %v2690
    %v2692 = vpop.f32.mrf.mxu0
    %v2693 = vadd.f32 0.0, %v2692
    %v2694 = vpop.f32.mrf.mxu0
    %v2695 = vadd.f32 0.0, %v2694
    %v2696 = vpop.f32.mrf.mxu0
    %v2697 = vadd.f32 0.0, %v2696
    %2698 = vdwg.mxu0
    %2699 = vst [vmem:[#allocation12] sm:$0xff] %v2348
    %2700 = vst [vmem:[#allocation12 + $0x8] sm:$0xff] %v2350
    %2701 = vst [vmem:[#allocation12 + $0x10] sm:$0xff] %v2541
    %2702 = vst [vmem:[#allocation12 + $0x18] sm:$0xff] %v2543
    %2703 = vst [vmem:[#allocation12 + $0x20] sm:$0xff] %v2352
    %2704 = vst [vmem:[#allocation12 + $0x28] sm:$0xff] %v2354
    %2705 = vst [vmem:[#allocation12 + $0x30] sm:$0xff] %v2545
    %2706 = vst [vmem:[#allocation12 + $0x38] sm:$0xff] %v2547
    %2707 = vst [vmem:[#allocation12 + $0x40] sm:$0xff] %v2358
    %2708 = vst [vmem:[#allocation12 + $0x48] sm:$0xff] %v2360
    %2709 = vst [vmem:[#allocation12 + $0x50] sm:$0xff] %v2551
    %2710 = vst [vmem:[#allocation12 + $0x58] sm:$0xff] %v2553
    %2711 = vst [vmem:[#allocation12 + $0x60] sm:$0xff] %v2362
    %2712 = vst [vmem:[#allocation12 + $0x68] sm:$0xff] %v2364
    %2713 = vst [vmem:[#allocation12 + $0x70] sm:$0xff] %v2555
    %2714 = vst [vmem:[#allocation12 + $0x78] sm:$0xff] %v2557
    %2715 = vst [vmem:[#allocation12 + $0x80] sm:$0xff] %v2368
    %2716 = vst [vmem:[#allocation12 + $0x88] sm:$0xff] %v2370
    %2717 = vst [vmem:[#allocation12 + $0x90] sm:$0xff] %v2561
    %2718 = vst [vmem:[#allocation12 + $0x98] sm:$0xff] %v2563
    %2719 = vst [vmem:[#allocation12 + $0xa0] sm:$0xff] %v2372
    %2720 = vst [vmem:[#allocation12 + $0xa8] sm:$0xff] %v2374
    %2721 = vst [vmem:[#allocation12 + $0xb0] sm:$0xff] %v2565
    %2722 = vst [vmem:[#allocation12 + $0xb8] sm:$0xff] %v2567
    %2723 = vst [vmem:[#allocation12 + $0xc0] sm:$0xff] %v2378
    %2724 = vst [vmem:[#allocation12 + $0xc8] sm:$0xff] %v2380
    %2725 = vst [vmem:[#allocation12 + $0xd0] sm:$0xff] %v2571
    %2726 = vst [vmem:[#allocation12 + $0xd8] sm:$0xff] %v2573
    %2727 = vst [vmem:[#allocation12 + $0xe0] sm:$0xff] %v2382
    %2728 = vst [vmem:[#allocation12 + $0xe8] sm:$0xff] %v2384
    %2729 = vst [vmem:[#allocation12 + $0xf0] sm:$0xff] %v2575
    %2730 = vst [vmem:[#allocation12 + $0xf8] sm:$0xff] %v2577
    %2731 = vst [vmem:[#allocation12 + $0x100] sm:$0xff] %v2388
    %2732 = vst [vmem:[#allocation12 + $0x108] sm:$0xff] %v2390
    %2733 = vst [vmem:[#allocation12 + $0x110] sm:$0xff] %v2581
    %2734 = vst [vmem:[#allocation12 + $0x118] sm:$0xff] %v2583
    %2735 = vst [vmem:[#allocation12 + $0x120] sm:$0xff] %v2392
    %2736 = vst [vmem:[#allocation12 + $0x128] sm:$0xff] %v2394
    %2737 = vst [vmem:[#allocation12 + $0x130] sm:$0xff] %v2585
    %2738 = vst [vmem:[#allocation12 + $0x138] sm:$0xff] %v2587
    %2739 = vst [vmem:[#allocation12 + $0x140] sm:$0xff] %v2398
    %2740 = vst [vmem:[#allocation12 + $0x148] sm:$0xff] %v2400
    %2741 = vst [vmem:[#allocation12 + $0x150] sm:$0xff] %v2591
    %2742 = vst [vmem:[#allocation12 + $0x158] sm:$0xff] %v2593
    %2743 = vst [vmem:[#allocation12 + $0x160] sm:$0xff] %v2402
    %2744 = vst [vmem:[#allocation12 + $0x168] sm:$0xff] %v2404
    %2745 = vst [vmem:[#allocation12 + $0x170] sm:$0xff] %v2595
    %2746 = vst [vmem:[#allocation12 + $0x178] sm:$0xff] %v2597
    %2747 = vst [vmem:[#allocation12 + $0x180] sm:$0xff] %v2408
    %2748 = vst [vmem:[#allocation12 + $0x188] sm:$0xff] %v2410
    %2749 = vst [vmem:[#allocation12 + $0x190] sm:$0xff] %v2601
    %2750 = vst [vmem:[#allocation12 + $0x198] sm:$0xff] %v2603
    %2751 = vst [vmem:[#allocation12 + $0x1a0] sm:$0xff] %v2412
    %2752 = vst [vmem:[#allocation12 + $0x1a8] sm:$0xff] %v2414
    %2753 = vst [vmem:[#allocation12 + $0x1b0] sm:$0xff] %v2605
    %2754 = vst [vmem:[#allocation12 + $0x1b8] sm:$0xff] %v2607
    %2755 = vst [vmem:[#allocation12 + $0x1c0] sm:$0xff] %v2418
    %2756 = vst [vmem:[#allocation12 + $0x1c8] sm:$0xff] %v2420
    %2757 = vst [vmem:[#allocation12 + $0x1d0] sm:$0xff] %v2611
    %2758 = vst [vmem:[#allocation12 + $0x1d8] sm:$0xff] %v2613
    %2759 = vst [vmem:[#allocation12 + $0x1e0] sm:$0xff] %v2422
    %2760 = vst [vmem:[#allocation12 + $0x1e8] sm:$0xff] %v2424
    %2761 = vst [vmem:[#allocation12 + $0x1f0] sm:$0xff] %v2615
    %2762 = vst [vmem:[#allocation12 + $0x1f8] sm:$0xff] %v2617
    %2763 = vst [vmem:[#allocation12 + $0x200] sm:$0xff] %v2428
    %2764 = vst [vmem:[#allocation12 + $0x208] sm:$0xff] %v2430
    %2765 = vst [vmem:[#allocation12 + $0x210] sm:$0xff] %v2621
    %2766 = vst [vmem:[#allocation12 + $0x218] sm:$0xff] %v2623
    %2767 = vst [vmem:[#allocation12 + $0x220] sm:$0xff] %v2432
    %2768 = vst [vmem:[#allocation12 + $0x228] sm:$0xff] %v2434
    %2769 = vst [vmem:[#allocation12 + $0x230] sm:$0xff] %v2625
    %2770 = vst [vmem:[#allocation12 + $0x238] sm:$0xff] %v2627
    %2771 = vst [vmem:[#allocation12 + $0x240] sm:$0xff] %v2438
    %2772 = vst [vmem:[#allocation12 + $0x248] sm:$0xff] %v2440
    %2773 = vst [vmem:[#allocation12 + $0x250] sm:$0xff] %v2631
    %2774 = vst [vmem:[#allocation12 + $0x258] sm:$0xff] %v2633
    %2775 = vst [vmem:[#allocation12 + $0x260] sm:$0xff] %v2442
    %2776 = vst [vmem:[#allocation12 + $0x268] sm:$0xff] %v2444
    %2777 = vst [vmem:[#allocation12 + $0x270] sm:$0xff] %v2635
    %2778 = vst [vmem:[#allocation12 + $0x278] sm:$0xff] %v2637
    %2779 = vst [vmem:[#allocation12 + $0x280] sm:$0xff] %v2448
    %2780 = vst [vmem:[#allocation12 + $0x288] sm:$0xff] %v2450
    %2781 = vst [vmem:[#allocation12 + $0x290] sm:$0xff] %v2641
    %2782 = vst [vmem:[#allocation12 + $0x298] sm:$0xff] %v2643
    %2783 = vst [vmem:[#allocation12 + $0x2a0] sm:$0xff] %v2452
    %2784 = vst [vmem:[#allocation12 + $0x2a8] sm:$0xff] %v2454
    %2785 = vst [vmem:[#allocation12 + $0x2b0] sm:$0xff] %v2645
    %2786 = vst [vmem:[#allocation12 + $0x2b8] sm:$0xff] %v2647
    %2787 = vst [vmem:[#allocation12 + $0x2c0] sm:$0xff] %v2458
    %2788 = vst [vmem:[#allocation12 + $0x2c8] sm:$0xff] %v2460
    %2789 = vst [vmem:[#allocation12 + $0x2d0] sm:$0xff] %v2651
    %2790 = vst [vmem:[#allocation12 + $0x2d8] sm:$0xff] %v2653
    %2791 = vst [vmem:[#allocation12 + $0x2e0] sm:$0xff] %v2462
    %2792 = vst [vmem:[#allocation12 + $0x2e8] sm:$0xff] %v2464
    %2793 = vst [vmem:[#allocation12 + $0x2f0] sm:$0xff] %v2655
    %2794 = vst [vmem:[#allocation12 + $0x2f8] sm:$0xff] %v2657
    %2795 = vst [vmem:[#allocation12 + $0x300] sm:$0xff] %v2468
    %2796 = vst [vmem:[#allocation12 + $0x308] sm:$0xff] %v2470
    %2797 = vst [vmem:[#allocation12 + $0x310] sm:$0xff] %v2661
    %2798 = vst [vmem:[#allocation12 + $0x318] sm:$0xff] %v2663
    %2799 = vst [vmem:[#allocation12 + $0x320] sm:$0xff] %v2472
    %2800 = vst [vmem:[#allocation12 + $0x328] sm:$0xff] %v2474
    %2801 = vst [vmem:[#allocation12 + $0x330] sm:$0xff] %v2665
    %2802 = vst [vmem:[#allocation12 + $0x338] sm:$0xff] %v2667
    %2803 = vst [vmem:[#allocation12 + $0x340] sm:$0xff] %v2478
    %2804 = vst [vmem:[#allocation12 + $0x348] sm:$0xff] %v2480
    %2805 = vst [vmem:[#allocation12 + $0x350] sm:$0xff] %v2671
    %2806 = vst [vmem:[#allocation12 + $0x358] sm:$0xff] %v2673
    %2807 = vst [vmem:[#allocation12 + $0x360] sm:$0xff] %v2482
    %2808 = vst [vmem:[#allocation12 + $0x368] sm:$0xff] %v2484
    %2809 = vst [vmem:[#allocation12 + $0x370] sm:$0xff] %v2675
    %2810 = vst [vmem:[#allocation12 + $0x378] sm:$0xff] %v2677
    %2811 = vst [vmem:[#allocation12 + $0x380] sm:$0xff] %v2488
    %2812 = vst [vmem:[#allocation12 + $0x388] sm:$0xff] %v2490
    %2813 = vst [vmem:[#allocation12 + $0x390] sm:$0xff] %v2681
    %2814 = vst [vmem:[#allocation12 + $0x398] sm:$0xff] %v2683
    %2815 = vst [vmem:[#allocation12 + $0x3a0] sm:$0xff] %v2492
    %2816 = vst [vmem:[#allocation12 + $0x3a8] sm:$0xff] %v2494
    %2817 = vst [vmem:[#allocation12 + $0x3b0] sm:$0xff] %v2685
    %2818 = vst [vmem:[#allocation12 + $0x3b8] sm:$0xff] %v2687
    %2819 = vst [vmem:[#allocation12 + $0x3c0] sm:$0xff] %v2498
    %2820 = vst [vmem:[#allocation12 + $0x3c8] sm:$0xff] %v2500
    %2821 = vst [vmem:[#allocation12 + $0x3d0] sm:$0xff] %v2691
    %2822 = vst [vmem:[#allocation12 + $0x3d8] sm:$0xff] %v2693
    %2823 = vst [vmem:[#allocation12 + $0x3e0] sm:$0xff] %v2502
    %2824 = vst [vmem:[#allocation12 + $0x3e8] sm:$0xff] %v2504
    %2825 = vst [vmem:[#allocation12 + $0x3f0] sm:$0xff] %v2695
    %2826 = vst [vmem:[#allocation12 + $0x3f8] sm:$0xff] %v2697
    // Predicated region
    $region54: #{tpu_custom_call.1} parent=1 // pred_check
      _
    $region55: #{tpu_custom_call.1} parent=1 // pred_check_branch
      %2828 = sbr.rel (0) target = $region57
    $region56: #{tpu_custom_call.1} parent=1 // pred_region
      %s2830 = ssub.s32 4096, 4096
      %2831 = vsyncadd [#allocation4], %s2830
      %s2832 = sshll.u32 [#allocation11], 4
      %s2833 = int_to_ptr.vmem [resolvable:$true] %s2832
      %2838 = dma.vmem_to_hbm [thread:$0]  %s2833, 4096, %s8, [#allocation4], 128, 128, 8
    $region57: #{tpu_custom_call.1} parent=1 // pred_fallthru
      _
    // Predicated region
    $region58: #{tpu_custom_call.1} parent=1 // pred_check
      _
    $region59: #{tpu_custom_call.1} parent=1 // pred_check_branch
      %2840 = sbr.rel (0) target = $region61
    $region60: #{tpu_custom_call.1} parent=1 // pred_region
      %s2842 = ssub.s32 16384, 16384
      %2843 = vsyncadd [#allocation13], %s2842
      %s2844 = sshll.u32 [#allocation12], 4
      %s2845 = int_to_ptr.vmem [resolvable:$true] %s2844
      %2850 = dma.vmem_to_hbm [thread:$0]  %s2845, 16384, %s9, [#allocation13], 512, 512, 32
    $region61: #{tpu_custom_call.1} parent=1 // pred_fallthru
      _
    // Predicated region
    $region62: #{tpu_custom_call.1} parent=1 // pred_check
      _
    $region63: #{tpu_custom_call.1} parent=1 // pred_check_branch
      %2852 = sbr.rel (0) target = $region65
    $region64: #{tpu_custom_call.1} parent=1 // pred_region
      %s2854 = ssub.s32 4096, 4096
      %2855 = vsyncadd [#allocation13], %s2854
      %s2856 = sshll.u32 [#allocation14], 4
      %s2857 = int_to_ptr.vmem [resolvable:$true] %s2856
      %2862 = dma.vmem_to_hbm [thread:$0]  %s2857, 4096, %s10, [#allocation13], 128, 128, 8
    $region65: #{tpu_custom_call.1} parent=1 // pred_fallthru
      _
    // Predicated region
    $region66: #{tpu_custom_call.1} parent=1 // pred_check
      _
    $region67: #{tpu_custom_call.1} parent=1 // pred_check_branch
      %2864 = sbr.rel (0) target = $region69
    $region68: #{tpu_custom_call.1} parent=1 // pred_region
      %2865 = dma.done [#allocation4], 4096
    $region69: #{tpu_custom_call.1} parent=1 // pred_fallthru
      _
    // Predicated region
    $region70: #{tpu_custom_call.1} parent=1 // pred_check
      _
    $region71: #{tpu_custom_call.1} parent=1 // pred_check_branch
      %2867 = sbr.rel (0) target = $region73
    $region72: #{tpu_custom_call.1} parent=1 // pred_region
      %2868 = dma.done [#allocation13], 16384
    $region73: #{tpu_custom_call.1} parent=1 // pred_fallthru
      _
    // Predicated region
    $region74: #{tpu_custom_call.1} parent=1 // pred_check
      _
    $region75: #{tpu_custom_call.1} parent=1 // pred_check_branch
      %2870 = sbr.rel (0) target = $region77
    $region76: #{tpu_custom_call.1} parent=1 // pred_region
      %2871 = dma.done [#allocation13], 4096
    $region77: #{tpu_custom_call.1} parent=1 // pred_fallthru
      _
    %2872 = vsyncpa [#allocation3], 1
    %2873 = vsyncpa [#allocation6], 1
    %2874 = vsyncpa [#allocation9], 1
    %2875 = vsyncpa [#allocation4], 1
    %2876 = vsyncpa [#allocation13], 1

</llo_original>
